<compile_context>
chip_gen: v6e
topology: v6e:2x2x1
jax: 0.10.0
libtpu: 0.0.40
codegen_flags: <defaults>
</compile_context>

<pallas_src>
import jax
import jax.numpy as jnp
from jax.experimental import pallas as pl
from jax.experimental.pallas import tpu as pltpu


# ---------------------------------------------------------------------------
# Fused Bottleneck(downsample=True) kernel: one grid step = one batch image.
# ---------------------------------------------------------------------------
def _bottleneck_kernel(xs_ref, w1_ref, b1_ref, w2_ref, b2_ref, w3_ref, b3_ref,
                       wsk_ref, bsk_ref, o_ref, h1p_ref):
    # xs_ref : (1, Ho, Wo, 4*Cin)  space-to-depth(2) input; channel group
    #          g = 2*dy + dx holds x[2*oy+dy, 2*ox+dx, :].
    # w2_ref : (4, 4*bc, bc)       shift-matmul weights, shift s = 2*r0 + c0.
    # h1p_ref: (Ho+1, Wo+1, 4*bc)  VMEM scratch, zero-padded by one row (top)
    #          and one col (left) to realize the conv's pad=1.
    _, Ho, Wo, C4 = xs_ref.shape
    Cin = C4 // 4
    bc, Cout = w3_ref.shape
    P = Ho * Wo

    xs = xs_ref[0].reshape(P, C4)                               # (P, 4*Cin)

    # --- 1x1 down-project + folded BN + ReLU.  Block-diagonal weight keeps the
    #     4 space-to-depth phases in separate channel groups (phase-major cols).
    h1 = jnp.maximum(
        jnp.dot(xs, w1_ref[...], preferred_element_type=jnp.float32)
        + b1_ref[...], 0.0)                                     # (P, 4*bc)

    # --- stage h1 into the zero-padded scratch with a single store ---
    h1p_ref[...] = jnp.zeros_like(h1p_ref)
    h1p_ref[1:, 1:, :] = h1.reshape(Ho, Wo, 4 * bc)

    # --- 3x3 stride-2 pad-1 conv as 4 accumulated shift matmuls.
    #     For shift (r0, c0) the slice h1p[r0:r0+Ho, c0:c0+Wo, :] carries all
    #     4 phases at full lane width; the packed weight w2_ref[s] is zero on
    #     the (phase, tap) combinations that shift does not touch, so the sum
    #     over the 4 shifts reproduces the 9-tap convolution exactly. ---
    acc = jnp.zeros((P, bc), jnp.float32)
    for s, (r0, c0) in enumerate(((0, 0), (0, 1), (1, 0), (1, 1))):
        sl = h1p_ref[r0:r0 + Ho, c0:c0 + Wo, :].reshape(P, 4 * bc)
        acc = acc + jnp.dot(sl, w2_ref[s], preferred_element_type=jnp.float32)
    h2 = jnp.maximum(acc + b2_ref[...], 0.0)                    # (P, bc)

    # --- 1x1 up-project + folded BN + ReLU (Dropout p=0 is identity) ---
    main = jnp.maximum(
        jnp.dot(h2, w3_ref[...], preferred_element_type=jnp.float32)
        + b3_ref[...], 0.0)                                     # (P, Cout)

    # --- skip: 2x2 max-pool (= max over the 4 phases) -> 1x1 conv -> BN ---
    pooled = jnp.maximum(
        jnp.maximum(xs[:, 0:Cin], xs[:, Cin:2 * Cin]),
        jnp.maximum(xs[:, 2 * Cin:3 * Cin], xs[:, 3 * Cin:4 * Cin]))
    skip = (jnp.dot(pooled, wsk_ref[...], preferred_element_type=jnp.float32)
            + bsk_ref[...])                                     # (P, Cout)

    o_ref[0] = (main + skip).reshape(Ho, Wo, Cout)


# ---------------------------------------------------------------------------
# Wrapper: one fused pallas_call per Bottleneck block
# ---------------------------------------------------------------------------
def _space_to_depth2(x):
    """NHWC (B,H,W,C) -> (B,H/2,W/2,4C); group 2*dy+dx holds pixel (2y+dy, 2x+dx)."""
    B, H, W, C = x.shape
    ho, wo = H // 2, W // 2
    x = x.reshape(B, ho, 2, wo, 2, C)
    x = jnp.transpose(x, (0, 1, 3, 2, 4, 5))
    return x.reshape(B, ho, wo, 4 * C)


def bottleneck_forward(x, p):
    """x: (B, H, W, Cin) NHWC -> (B, H//2, W//2, Cout)."""
    B, H, W, Cin = x.shape
    assert H % 2 == 0 and W % 2 == 0
    # TODO(synk): odd H/W would need the original module's F.pad(x,(0,1,0,1)) handling.
    Ho, Wo = H // 2, W // 2
    bc, Cout = p["w3"].shape

    xs = _space_to_depth2(x)                                    # (B, Ho, Wo, 4*Cin)

    args = (xs, p["w1"], p["b1"], p["w2"], p["b2"], p["w3"], p["b3"],
            p["wsk"], p["bsk"])
    flops = 2 * B * Ho * Wo * (16 * Cin * bc + 16 * bc * bc + bc * Cout + Cin * Cout)
    nbytes = 4 * (sum(int(a.size) for a in args) + B * Ho * Wo * Cout)

    return pl.pallas_call(
        _bottleneck_kernel,
        out_shape=jax.ShapeDtypeStruct((B, Ho, Wo, Cout), jnp.float32),
        grid=(B,),
        in_specs=[
            pl.BlockSpec((1, Ho, Wo, 4 * Cin), lambda b: (b, 0, 0, 0)),
            # weights / biases: constant index map -> stay VMEM-resident
            pl.BlockSpec((4 * Cin, 4 * bc), lambda b: (0, 0)),
            pl.BlockSpec((1, 4 * bc), lambda b: (0, 0)),
            pl.BlockSpec((4, 4 * bc, bc), lambda b: (0, 0, 0)),
            pl.BlockSpec((1, bc), lambda b: (0, 0)),
            pl.BlockSpec((bc, Cout), lambda b: (0, 0)),
            pl.BlockSpec((1, Cout), lambda b: (0, 0)),
            pl.BlockSpec((Cin, Cout), lambda b: (0, 0)),
            pl.BlockSpec((1, Cout), lambda b: (0, 0)),
        ],
        out_specs=pl.BlockSpec((1, Ho, Wo, Cout), lambda b: (b, 0, 0, 0)),
        scratch_shapes=[pltpu.VMEM((Ho + 1, Wo + 1, 4 * bc), jnp.float32)],
        compiler_params=pltpu.CompilerParams(
            dimension_semantics=("parallel",),       # batch axis -> both TCs on v7x
            vmem_limit_bytes=32 * 1024 * 1024,       # safe on v5e / v6e / v7x
        ),
        cost_estimate=pl.CostEstimate(
            flops=flops, transcendentals=0, bytes_accessed=nbytes),
    )(*args)


# ---------------------------------------------------------------------------
# Deterministic parameter construction (synthetic weights, eval-mode BN folded)
# ---------------------------------------------------------------------------
def _init_bn(key, c, eps=1e-5):
    k1, k2, k3, k4 = jax.random.split(key, 4)
    gamma = 1.0 + 0.1 * jax.random.normal(k1, (c,), jnp.float32)
    beta = 0.1 * jax.random.normal(k2, (c,), jnp.float32)
    mean = 0.1 * jax.random.normal(k3, (c,), jnp.float32)
    var = 0.5 + 0.5 * jax.random.uniform(k4, (c,), jnp.float32)
    scale = gamma / jnp.sqrt(var + eps)
    bias = beta - mean * scale
    return scale, bias


def _pack_w2(w2, s2):
    """OIHW 3x3 conv weight (BN scale folded) -> (4, 4*bc, bc) shift matmuls.

    Shift index s = 2*r0 + c0 over the 4 spatial shifts of the space-to-depth
    grid; rows are (phase g = 2*gr + gc, in-channel), cols are out-channel.
    Rows for (phase, shift) pairs that no 3x3 tap maps to are zero.
    Also returns the folded weight in HWIO layout for the pure-JAX reference.
    """
    bc = w2.shape[0]
    w2f = w2 * s2[:, None, None, None]                # (bc_out, bc_in, 3, 3)

    def k_of(off, g):
        # tap index along one axis for shift offset `off` and phase `g`
        if off == 0:
            return 0 if g == 1 else None
        return g + 1

    packed = jnp.zeros((2, 2, 4, bc, bc), jnp.float32)
    for r0 in range(2):
        for c0 in range(2):
            for gr in range(2):
                ky = k_of(r0, gr)
                if ky is None:
                    continue
                for gc in range(2):
                    kx = k_of(c0, gc)
                    if kx is None:
                        continue
                    g = 2 * gr + gc
                    packed = packed.at[r0, c0, g].set(w2f[:, :, ky, kx].T)
    return packed.reshape(4, 4 * bc, bc), jnp.transpose(w2f, (2, 3, 1, 0))


def init_bottleneck_params(key, cin, cout):
    bc = cin // 2
    ks = jax.random.split(key, 8)
    # PyTorch conv weights are OIHW.
    w1 = 0.1 * jax.random.normal(ks[0], (bc, cin, 1, 1), jnp.float32)
    w2 = 0.1 * jax.random.normal(ks[1], (bc, bc, 3, 3), jnp.float32)
    w3 = 0.1 * jax.random.normal(ks[2], (cout, bc, 1, 1), jnp.float32)
    wsk = 0.1 * jax.random.normal(ks[3], (cout, cin, 1, 1), jnp.float32)
    s1, b1 = _init_bn(ks[4], bc)
    s2, b2 = _init_bn(ks[5], bc)
    s3, b3 = _init_bn(ks[6], cout)
    ssk, bsk = _init_bn(ks[7], cout)
    # Fold eval-mode BN scale into the conv weights (bias stays separate).
    w1f = jnp.transpose(w1[:, :, 0, 0] * s1[:, None])                    # (cin, bc)
    w3f = jnp.transpose(w3[:, :, 0, 0] * s3[:, None])                    # (bc, cout)
    wskf = jnp.transpose(wsk[:, :, 0, 0] * ssk[:, None])                 # (cin, cout)
    w2p, w2_hwio = _pack_w2(w2, s2)
    # Block-diagonal down-project weight: one matmul applies the 1x1 conv to
    # all 4 space-to-depth phases while keeping them in separate groups.
    w1bd = jnp.kron(jnp.eye(4, dtype=jnp.float32), w1f)                  # (4cin, 4bc)
    return dict(
        w1=w1bd, b1=jnp.tile(b1, 4)[None, :],
        w2=w2p, b2=b2[None, :],
        w3=w3f, b3=b3[None, :],
        wsk=wskf, bsk=bsk[None, :],
        w2_hwio=w2_hwio,                      # used only by the pure-JAX reference
    )


def init_encoder_params(key, in_channels, out_channels):
    keys = jax.random.split(key, 4)
    params = [init_bottleneck_params(keys[0], in_channels, out_channels)]
    for i in range(1, 4):
        params.append(init_bottleneck_params(keys[i], out_channels, out_channels))
    return params


# ---------------------------------------------------------------------------
# DistributionEncoder forward (NCHW in / NCHW out, matching PyTorch)
# ---------------------------------------------------------------------------
def distribution_encoder_forward(x_nchw, params):
    x = jnp.transpose(x_nchw, (0, 2, 3, 1))   # NCHW -> NHWC
    for p in params:
        x = bottleneck_forward(x, p)
    return jnp.transpose(x, (0, 3, 1, 2))     # NHWC -> NCHW


# ---------------------------------------------------------------------------
# Pure-JAX reference (same folded parameters) for a correctness sanity check
# ---------------------------------------------------------------------------
def _reference_bottleneck(x, p):
    cin = p["wsk"].shape[0]
    bc, cout = p["w3"].shape
    hi = jax.lax.Precision.HIGHEST
    w1 = p["w1"][:cin, :bc]
    h1 = jax.nn.relu(jnp.einsum("bhwc,cd->bhwd", x, w1, precision=hi)
                     + p["b1"][0, :bc])
    h2 = jax.lax.conv_general_dilated(
        h1, p["w2_hwio"], window_strides=(2, 2), padding=((1, 1), (1, 1)),
        dimension_numbers=("NHWC", "HWIO", "NHWC"), precision=hi)
    h2 = jax.nn.relu(h2 + p["b2"][0])
    main = jax.nn.relu(jnp.einsum("bhwc,cd->bhwd", h2, p["w3"], precision=hi)
                       + p["b3"][0])
    pooled = jax.lax.reduce_window(x, -jnp.inf, jax.lax.max,
                                   (1, 2, 2, 1), (1, 2, 2, 1), "VALID")
    skip = jnp.einsum("bhwc,cd->bhwd", pooled, p["wsk"], precision=hi) + p["bsk"][0]
    return main + skip


def reference_forward(x_nchw, params):
    x = jnp.transpose(x_nchw, (0, 2, 3, 1))
    for p in params:
        x = _reference_bottleneck(x, p)
    return jnp.transpose(x, (0, 3, 1, 2))


if __name__ == "__main__":
    key = jax.random.PRNGKey(0)
    kx, kp = jax.random.split(key)

    in_channels, out_channels = 8, 16
    B, H, W = 2, 16, 16
    x = jax.random.normal(kx, (B, in_channels, H, W), dtype=jnp.float32)
    params = init_encoder_params(kp, in_channels, out_channels)

    fwd = jax.jit(distribution_encoder_forward)
    y = fwd(x, params)
    jax.block_until_ready(y)

    assert y.shape == (B, out_channels, H // 16, W // 16), y.shape
    assert y.dtype == jnp.float32

    y_ref = reference_forward(x, params)
    max_err = float(jnp.max(jnp.abs(y - y_ref)))
    assert jnp.allclose(y, y_ref, atol=1e-3, rtol=1e-3), max_err

    print("KERNEL_OK")
</pallas_src>

<mosaic_0001>
module attributes {stable_mosaic.version = 11 : i64} {
  func.func @_bottleneck_kernel(%arg0: i32, %arg1: memref<1x8x8x32xf32, #tpu.memory_space<vmem>>, %arg2: memref<32x16xf32, #tpu.memory_space<vmem>>, %arg3: memref<1x16xf32, #tpu.memory_space<vmem>>, %arg4: memref<4x16x4xf32, #tpu.memory_space<vmem>>, %arg5: memref<1x4xf32, #tpu.memory_space<vmem>>, %arg6: memref<4x16xf32, #tpu.memory_space<vmem>>, %arg7: memref<1x16xf32, #tpu.memory_space<vmem>>, %arg8: memref<8x16xf32, #tpu.memory_space<vmem>>, %arg9: memref<1x16xf32, #tpu.memory_space<vmem>>, %arg10: memref<1x8x8x16xf32, #tpu.memory_space<vmem>>, %arg11: memref<9x9x16xf32, #tpu.memory_space<vmem>>) attributes {dimension_semantics = [#tpu.dimension_semantics<parallel>], iteration_bounds = array<i64: 2>, scalar_prefetch = 0 : i64, scratch_operands = 1 : i64, tpu.core_type = #tpu.core_type<tc>, window_params = [{transform_indices = @transform_0, window_bounds = array<i64: 1, 8, 8, 32>}, {pipeline_mode = #tpu.pipeline_mode<synchronous>, transform_indices = @transform_1, window_bounds = array<i64: 32, 16>}, {pipeline_mode = #tpu.pipeline_mode<synchronous>, transform_indices = @transform_2, window_bounds = array<i64: 1, 16>}, {pipeline_mode = #tpu.pipeline_mode<synchronous>, transform_indices = @transform_3, window_bounds = array<i64: 4, 16, 4>}, {pipeline_mode = #tpu.pipeline_mode<synchronous>, transform_indices = @transform_4, window_bounds = array<i64: 1, 4>}, {pipeline_mode = #tpu.pipeline_mode<synchronous>, transform_indices = @transform_5, window_bounds = array<i64: 4, 16>}, {pipeline_mode = #tpu.pipeline_mode<synchronous>, transform_indices = @transform_6, window_bounds = array<i64: 1, 16>}, {pipeline_mode = #tpu.pipeline_mode<synchronous>, transform_indices = @transform_7, window_bounds = array<i64: 8, 16>}, {pipeline_mode = #tpu.pipeline_mode<synchronous>, transform_indices = @transform_8, window_bounds = array<i64: 1, 16>}, {transform_indices = @transform_9, window_bounds = array<i64: 1, 8, 8, 16>}]} {
    %c0 = arith.constant 0 : index
    %c0_0 = arith.constant 0 : index
    %c0_1 = arith.constant 0 : index
    %c0_2 = arith.constant 0 : index
    %0 = vector.load %arg1[%c0, %c0_0, %c0_1, %c0_2] : memref<1x8x8x32xf32, #tpu.memory_space<vmem>>, vector<1x8x8x32xf32>
    %1 = vector.shape_cast %0 : vector<1x8x8x32xf32> to vector<8x8x32xf32>
    %2 = vector.shape_cast %1 : vector<8x8x32xf32> to vector<64x32xf32>
    %c0_3 = arith.constant 0 : index
    %c0_4 = arith.constant 0 : index
    %3 = vector.load %arg2[%c0_3, %c0_4] : memref<32x16xf32, #tpu.memory_space<vmem>>, vector<32x16xf32>
    %cst = arith.constant dense<0.000000e+00> : vector<64x16xf32>
    %4 = tpu.matmul %2, %3, %cst {dimension_numbers = #tpu.dot_dimension_numbers<[1], [0], [0], [1], [0, 0, 1, 1], [], []>} : vector<64x32xf32>, vector<32x16xf32>, vector<64x16xf32> -> vector<64x16xf32>
    %c0_5 = arith.constant 0 : index
    %c0_6 = arith.constant 0 : index
    %5 = vector.load %arg3[%c0_5, %c0_6] : memref<1x16xf32, #tpu.memory_space<vmem>>, vector<1x16xf32>
    %6 = vector.broadcast %5 : vector<1x16xf32> to vector<64x16xf32>
    %7 = arith.addf %4, %6 : vector<64x16xf32>
    %cst_7 = arith.constant 0.000000e+00 : f32
    %8 = vector.broadcast %cst_7 : f32 to vector<64x16xf32>
    %9 = arith.maximumf %7, %8 : vector<64x16xf32>
    %cst_8 = arith.constant 0.000000e+00 : f32
    %10 = vector.broadcast %cst_8 : f32 to vector<9x9x16xf32>
    %c0_9 = arith.constant 0 : index
    %c0_10 = arith.constant 0 : index
    %c0_11 = arith.constant 0 : index
    %11 = vector.load %arg11[%c0_9, %c0_10, %c0_11] : memref<9x9x16xf32, #tpu.memory_space<vmem>>, vector<9x9x16xf32>
    tpu.vector_store %arg11[%c0_9, %c0_10, %c0_11], %10 {strides = array<i32>} : memref<9x9x16xf32, #tpu.memory_space<vmem>>, vector<9x9x16xf32>,
    %12 = vector.shape_cast %9 : vector<64x16xf32> to vector<8x8x16xf32>
    %c1 = arith.constant 1 : index
    %c1_12 = arith.constant 1 : index
    %c0_13 = arith.constant 0 : index
    %13 = vector.load %arg11[%c1, %c1_12, %c0_13] : memref<9x9x16xf32, #tpu.memory_space<vmem>>, vector<8x8x16xf32>
    tpu.vector_store %arg11[%c1, %c1_12, %c0_13], %12 {strides = array<i32>} : memref<9x9x16xf32, #tpu.memory_space<vmem>>, vector<8x8x16xf32>,
    %cst_14 = arith.constant 0.000000e+00 : f32
    %14 = vector.broadcast %cst_14 : f32 to vector<64x4xf32>
    %c0_15 = arith.constant 0 : index
    %c0_16 = arith.constant 0 : index
    %c0_17 = arith.constant 0 : index
    %15 = vector.load %arg11[%c0_15, %c0_16, %c0_17] : memref<9x9x16xf32, #tpu.memory_space<vmem>>, vector<8x8x16xf32>
    %16 = vector.shape_cast %15 : vector<8x8x16xf32> to vector<64x16xf32>
    %c0_18 = arith.constant 0 : index
    %c0_19 = arith.constant 0 : index
    %c0_20 = arith.constant 0 : index
    %17 = vector.load %arg4[%c0_18, %c0_19, %c0_20] : memref<4x16x4xf32, #tpu.memory_space<vmem>>, vector<1x16x4xf32>
    %18 = vector.shape_cast %17 : vector<1x16x4xf32> to vector<16x4xf32>
    %cst_21 = arith.constant dense<0.000000e+00> : vector<64x4xf32>
    %19 = tpu.matmul %16, %18, %cst_21 {dimension_numbers = #tpu.dot_dimension_numbers<[1], [0], [0], [1], [0, 0, 1, 1], [], []>} : vector<64x16xf32>, vector<16x4xf32>, vector<64x4xf32> -> vector<64x4xf32>
    %20 = arith.addf %14, %19 : vector<64x4xf32>
    %c0_22 = arith.constant 0 : index
    %c1_23 = arith.constant 1 : index
    %c0_24 = arith.constant 0 : index
    %21 = vector.load %arg11[%c0_22, %c1_23, %c0_24] : memref<9x9x16xf32, #tpu.memory_space<vmem>>, vector<8x8x16xf32>
    %22 = vector.shape_cast %21 : vector<8x8x16xf32> to vector<64x16xf32>
    %c1_25 = arith.constant 1 : index
    %c0_26 = arith.constant 0 : index
    %c0_27 = arith.constant 0 : index
    %23 = vector.load %arg4[%c1_25, %c0_26, %c0_27] : memref<4x16x4xf32, #tpu.memory_space<vmem>>, vector<1x16x4xf32>
    %24 = vector.shape_cast %23 : vector<1x16x4xf32> to vector<16x4xf32>
    %cst_28 = arith.constant dense<0.000000e+00> : vector<64x4xf32>
    %25 = tpu.matmul %22, %24, %cst_28 {dimension_numbers = #tpu.dot_dimension_numbers<[1], [0], [0], [1], [0, 0, 1, 1], [], []>} : vector<64x16xf32>, vector<16x4xf32>, vector<64x4xf32> -> vector<64x4xf32>
    %26 = arith.addf %20, %25 : vector<64x4xf32>
    %c1_29 = arith.constant 1 : index
    %c0_30 = arith.constant 0 : index
    %c0_31 = arith.constant 0 : index
    %27 = vector.load %arg11[%c1_29, %c0_30, %c0_31] : memref<9x9x16xf32, #tpu.memory_space<vmem>>, vector<8x8x16xf32>
    %28 = vector.shape_cast %27 : vector<8x8x16xf32> to vector<64x16xf32>
    %c2 = arith.constant 2 : index
    %c0_32 = arith.constant 0 : index
    %c0_33 = arith.constant 0 : index
    %29 = vector.load %arg4[%c2, %c0_32, %c0_33] : memref<4x16x4xf32, #tpu.memory_space<vmem>>, vector<1x16x4xf32>
    %30 = vector.shape_cast %29 : vector<1x16x4xf32> to vector<16x4xf32>
    %cst_34 = arith.constant dense<0.000000e+00> : vector<64x4xf32>
    %31 = tpu.matmul %28, %30, %cst_34 {dimension_numbers = #tpu.dot_dimension_numbers<[1], [0], [0], [1], [0, 0, 1, 1], [], []>} : vector<64x16xf32>, vector<16x4xf32>, vector<64x4xf32> -> vector<64x4xf32>
    %32 = arith.addf %26, %31 : vector<64x4xf32>
    %c1_35 = arith.constant 1 : index
    %c1_36 = arith.constant 1 : index
    %c0_37 = arith.constant 0 : index
    %33 = vector.load %arg11[%c1_35, %c1_36, %c0_37] : memref<9x9x16xf32, #tpu.memory_space<vmem>>, vector<8x8x16xf32>
    %34 = vector.shape_cast %33 : vector<8x8x16xf32> to vector<64x16xf32>
    %c3 = arith.constant 3 : index
    %c0_38 = arith.constant 0 : index
    %c0_39 = arith.constant 0 : index
    %35 = vector.load %arg4[%c3, %c0_38, %c0_39] : memref<4x16x4xf32, #tpu.memory_space<vmem>>, vector<1x16x4xf32>
    %36 = vector.shape_cast %35 : vector<1x16x4xf32> to vector<16x4xf32>
    %cst_40 = arith.constant dense<0.000000e+00> : vector<64x4xf32>
    %37 = tpu.matmul %34, %36, %cst_40 {dimension_numbers = #tpu.dot_dimension_numbers<[1], [0], [0], [1], [0, 0, 1, 1], [], []>} : vector<64x16xf32>, vector<16x4xf32>, vector<64x4xf32> -> vector<64x4xf32>
    %38 = arith.addf %32, %37 : vector<64x4xf32>
    %c0_41 = arith.constant 0 : index
    %c0_42 = arith.constant 0 : index
    %39 = vector.load %arg5[%c0_41, %c0_42] : memref<1x4xf32, #tpu.memory_space<vmem>>, vector<1x4xf32>
    %40 = vector.broadcast %39 : vector<1x4xf32> to vector<64x4xf32>
    %41 = arith.addf %38, %40 : vector<64x4xf32>
    %cst_43 = arith.constant 0.000000e+00 : f32
    %42 = vector.broadcast %cst_43 : f32 to vector<64x4xf32>
    %43 = arith.maximumf %41, %42 : vector<64x4xf32>
    %c0_44 = arith.constant 0 : index
    %c0_45 = arith.constant 0 : index
    %44 = vector.load %arg6[%c0_44, %c0_45] : memref<4x16xf32, #tpu.memory_space<vmem>>, vector<4x16xf32>
    %cst_46 = arith.constant dense<0.000000e+00> : vector<64x16xf32>
    %45 = tpu.matmul %43, %44, %cst_46 {dimension_numbers = #tpu.dot_dimension_numbers<[1], [0], [0], [1], [0, 0, 1, 1], [], []>} : vector<64x4xf32>, vector<4x16xf32>, vector<64x16xf32> -> vector<64x16xf32>
    %c0_47 = arith.constant 0 : index
    %c0_48 = arith.constant 0 : index
    %46 = vector.load %arg7[%c0_47, %c0_48] : memref<1x16xf32, #tpu.memory_space<vmem>>, vector<1x16xf32>
    %47 = vector.broadcast %46 : vector<1x16xf32> to vector<64x16xf32>
    %48 = arith.addf %45, %47 : vector<64x16xf32>
    %cst_49 = arith.constant 0.000000e+00 : f32
    %49 = vector.broadcast %cst_49 : f32 to vector<64x16xf32>
    %50 = arith.maximumf %48, %49 : vector<64x16xf32>
    %51 = vector.extract_strided_slice %2 {offsets = [0, 0], sizes = [64, 8], strides = [1, 1]} : vector<64x32xf32> to vector<64x8xf32>
    %52 = vector.extract_strided_slice %2 {offsets = [0, 8], sizes = [64, 8], strides = [1, 1]} : vector<64x32xf32> to vector<64x8xf32>
    %53 = arith.maximumf %51, %52 : vector<64x8xf32>
    %54 = vector.extract_strided_slice %2 {offsets = [0, 16], sizes = [64, 8], strides = [1, 1]} : vector<64x32xf32> to vector<64x8xf32>
    %55 = vector.extract_strided_slice %2 {offsets = [0, 24], sizes = [64, 8], strides = [1, 1]} : vector<64x32xf32> to vector<64x8xf32>
    %56 = arith.maximumf %54, %55 : vector<64x8xf32>
    %57 = arith.maximumf %53, %56 : vector<64x8xf32>
    %c0_50 = arith.constant 0 : index
    %c0_51 = arith.constant 0 : index
    %58 = vector.load %arg8[%c0_50, %c0_51] : memref<8x16xf32, #tpu.memory_space<vmem>>, vector<8x16xf32>
    %cst_52 = arith.constant dense<0.000000e+00> : vector<64x16xf32>
    %59 = tpu.matmul %57, %58, %cst_52 {dimension_numbers = #tpu.dot_dimension_numbers<[1], [0], [0], [1], [0, 0, 1, 1], [], []>} : vector<64x8xf32>, vector<8x16xf32>, vector<64x16xf32> -> vector<64x16xf32>
    %c0_53 = arith.constant 0 : index
    %c0_54 = arith.constant 0 : index
    %60 = vector.load %arg9[%c0_53, %c0_54] : memref<1x16xf32, #tpu.memory_space<vmem>>, vector<1x16xf32>
    %61 = vector.broadcast %60 : vector<1x16xf32> to vector<64x16xf32>
    %62 = arith.addf %59, %61 : vector<64x16xf32>
    %63 = arith.addf %50, %62 : vector<64x16xf32>
    %64 = vector.shape_cast %63 : vector<64x16xf32> to vector<8x8x16xf32>
    %c0_55 = arith.constant 0 : index
    %c0_56 = arith.constant 0 : index
    %c0_57 = arith.constant 0 : index
    %c0_58 = arith.constant 0 : index
    %65 = vector.load %arg10[%c0_55, %c0_56, %c0_57, %c0_58] : memref<1x8x8x16xf32, #tpu.memory_space<vmem>>, vector<1x8x8x16xf32>
    %66 = vector.shape_cast %65 : vector<1x8x8x16xf32> to vector<8x8x16xf32>
    %67 = vector.shape_cast %64 : vector<8x8x16xf32> to vector<1x8x8x16xf32>
    tpu.vector_store %arg10[%c0_55, %c0_56, %c0_57, %c0_58], %67 {strides = array<i32>} : memref<1x8x8x16xf32, #tpu.memory_space<vmem>>, vector<1x8x8x16xf32>,
    return
  }
  func.func @transform_0(%arg0: i32) -> (i32, i32, i32, i32) {
    %c0_i32 = arith.constant 0 : i32
    %c0_i32_0 = arith.constant 0 : i32
    %c0_i32_1 = arith.constant 0 : i32
    %c0_i32_2 = arith.constant 0 : i32
    return %arg0, %c0_i32, %c0_i32_0, %c0_i32_1 : i32, i32, i32, i32
  }
  func.func @transform_1(%arg0: i32) -> (i32, i32) {
    %c0_i32 = arith.constant 0 : i32
    %c0_i32_0 = arith.constant 0 : i32
    %c0_i32_1 = arith.constant 0 : i32
    return %c0_i32, %c0_i32_0 : i32, i32
  }
  func.func @transform_2(%arg0: i32) -> (i32, i32) {
    %c0_i32 = arith.constant 0 : i32
    %c0_i32_0 = arith.constant 0 : i32
    %c0_i32_1 = arith.constant 0 : i32
    return %c0_i32, %c0_i32_0 : i32, i32
  }
  func.func @transform_3(%arg0: i32) -> (i32, i32, i32) {
    %c0_i32 = arith.constant 0 : i32
    %c0_i32_0 = arith.constant 0 : i32
    %c0_i32_1 = arith.constant 0 : i32
    %c0_i32_2 = arith.constant 0 : i32
    return %c0_i32, %c0_i32_0, %c0_i32_1 : i32, i32, i32
  }
  func.func @transform_4(%arg0: i32) -> (i32, i32) {
    %c0_i32 = arith.constant 0 : i32
    %c0_i32_0 = arith.constant 0 : i32
    %c0_i32_1 = arith.constant 0 : i32
    return %c0_i32, %c0_i32_0 : i32, i32
  }
  func.func @transform_5(%arg0: i32) -> (i32, i32) {
    %c0_i32 = arith.constant 0 : i32
    %c0_i32_0 = arith.constant 0 : i32
    %c0_i32_1 = arith.constant 0 : i32
    return %c0_i32, %c0_i32_0 : i32, i32
  }
  func.func @transform_6(%arg0: i32) -> (i32, i32) {
    %c0_i32 = arith.constant 0 : i32
    %c0_i32_0 = arith.constant 0 : i32
    %c0_i32_1 = arith.constant 0 : i32
    return %c0_i32, %c0_i32_0 : i32, i32
  }
  func.func @transform_7(%arg0: i32) -> (i32, i32) {
    %c0_i32 = arith.constant 0 : i32
    %c0_i32_0 = arith.constant 0 : i32
    %c0_i32_1 = arith.constant 0 : i32
    return %c0_i32, %c0_i32_0 : i32, i32
  }
  func.func @transform_8(%arg0: i32) -> (i32, i32) {
    %c0_i32 = arith.constant 0 : i32
    %c0_i32_0 = arith.constant 0 : i32
    %c0_i32_1 = arith.constant 0 : i32
    return %c0_i32, %c0_i32_0 : i32, i32
  }
  func.func @transform_9(%arg0: i32) -> (i32, i32, i32, i32) {
    %c0_i32 = arith.constant 0 : i32
    %c0_i32_0 = arith.constant 0 : i32
    %c0_i32_1 = arith.constant 0 : i32
    %c0_i32_2 = arith.constant 0 : i32
    return %arg0, %c0_i32, %c0_i32_0, %c0_i32_1 : i32, i32, i32, i32
  }
}

module attributes {stable_mosaic.version = 11 : i64} {
  func.func @_bottleneck_kernel(%arg0: i32, %arg1: memref<1x4x4x64xf32, #tpu.memory_space<vmem>>, %arg2: memref<64x32xf32, #tpu.memory_space<vmem>>, %arg3: memref<1x32xf32, #tpu.memory_space<vmem>>, %arg4: memref<4x32x8xf32, #tpu.memory_space<vmem>>, %arg5: memref<1x8xf32, #tpu.memory_space<vmem>>, %arg6: memref<8x16xf32, #tpu.memory_space<vmem>>, %arg7: memref<1x16xf32, #tpu.memory_space<vmem>>, %arg8: memref<16x16xf32, #tpu.memory_space<vmem>>, %arg9: memref<1x16xf32, #tpu.memory_space<vmem>>, %arg10: memref<1x4x4x16xf32, #tpu.memory_space<vmem>>, %arg11: memref<5x5x32xf32, #tpu.memory_space<vmem>>) attributes {dimension_semantics = [#tpu.dimension_semantics<parallel>], iteration_bounds = array<i64: 2>, scalar_prefetch = 0 : i64, scratch_operands = 1 : i64, tpu.core_type = #tpu.core_type<tc>, window_params = [{transform_indices = @transform_0, window_bounds = array<i64: 1, 4, 4, 64>}, {pipeline_mode = #tpu.pipeline_mode<synchronous>, transform_indices = @transform_1, window_bounds = array<i64: 64, 32>}, {pipeline_mode = #tpu.pipeline_mode<synchronous>, transform_indices = @transform_2, window_bounds = array<i64: 1, 32>}, {pipeline_mode = #tpu.pipeline_mode<synchronous>, transform_indices = @transform_3, window_bounds = array<i64: 4, 32, 8>}, {pipeline_mode = #tpu.pipeline_mode<synchronous>, transform_indices = @transform_4, window_bounds = array<i64: 1, 8>}, {pipeline_mode = #tpu.pipeline_mode<synchronous>, transform_indices = @transform_5, window_bounds = array<i64: 8, 16>}, {pipeline_mode = #tpu.pipeline_mode<synchronous>, transform_indices = @transform_6, window_bounds = array<i64: 1, 16>}, {pipeline_mode = #tpu.pipeline_mode<synchronous>, transform_indices = @transform_7, window_bounds = array<i64: 16, 16>}, {pipeline_mode = #tpu.pipeline_mode<synchronous>, transform_indices = @transform_8, window_bounds = array<i64: 1, 16>}, {transform_indices = @transform_9, window_bounds = array<i64: 1, 4, 4, 16>}]} {
    %c0 = arith.constant 0 : index
    %c0_0 = arith.constant 0 : index
    %c0_1 = arith.constant 0 : index
    %c0_2 = arith.constant 0 : index
    %0 = vector.load %arg1[%c0, %c0_0, %c0_1, %c0_2] : memref<1x4x4x64xf32, #tpu.memory_space<vmem>>, vector<1x4x4x64xf32>
    %1 = vector.shape_cast %0 : vector<1x4x4x64xf32> to vector<4x4x64xf32>
    %2 = vector.shape_cast %1 : vector<4x4x64xf32> to vector<16x64xf32>
    %c0_3 = arith.constant 0 : index
    %c0_4 = arith.constant 0 : index
    %3 = vector.load %arg2[%c0_3, %c0_4] : memref<64x32xf32, #tpu.memory_space<vmem>>, vector<64x32xf32>
    %cst = arith.constant dense<0.000000e+00> : vector<16x32xf32>
    %4 = tpu.matmul %2, %3, %cst {dimension_numbers = #tpu.dot_dimension_numbers<[1], [0], [0], [1], [0, 0, 1, 1], [], []>} : vector<16x64xf32>, vector<64x32xf32>, vector<16x32xf32> -> vector<16x32xf32>
    %c0_5 = arith.constant 0 : index
    %c0_6 = arith.constant 0 : index
    %5 = vector.load %arg3[%c0_5, %c0_6] : memref<1x32xf32, #tpu.memory_space<vmem>>, vector<1x32xf32>
    %6 = vector.broadcast %5 : vector<1x32xf32> to vector<16x32xf32>
    %7 = arith.addf %4, %6 : vector<16x32xf32>
    %cst_7 = arith.constant 0.000000e+00 : f32
    %8 = vector.broadcast %cst_7 : f32 to vector<16x32xf32>
    %9 = arith.maximumf %7, %8 : vector<16x32xf32>
    %cst_8 = arith.constant 0.000000e+00 : f32
    %10 = vector.broadcast %cst_8 : f32 to vector<5x5x32xf32>
    %c0_9 = arith.constant 0 : index
    %c0_10 = arith.constant 0 : index
    %c0_11 = arith.constant 0 : index
    %11 = vector.load %arg11[%c0_9, %c0_10, %c0_11] : memref<5x5x32xf32, #tpu.memory_space<vmem>>, vector<5x5x32xf32>
    tpu.vector_store %arg11[%c0_9, %c0_10, %c0_11], %10 {strides = array<i32>} : memref<5x5x32xf32, #tpu.memory_space<vmem>>, vector<5x5x32xf32>,
    %12 = vector.shape_cast %9 : vector<16x32xf32> to vector<4x4x32xf32>
    %c1 = arith.constant 1 : index
    %c1_12 = arith.constant 1 : index
    %c0_13 = arith.constant 0 : index
    %13 = vector.load %arg11[%c1, %c1_12, %c0_13] : memref<5x5x32xf32, #tpu.memory_space<vmem>>, vector<4x4x32xf32>
    tpu.vector_store %arg11[%c1, %c1_12, %c0_13], %12 {strides = array<i32>} : memref<5x5x32xf32, #tpu.memory_space<vmem>>, vector<4x4x32xf32>,
    %cst_14 = arith.constant 0.000000e+00 : f32
    %14 = vector.broadcast %cst_14 : f32 to vector<16x8xf32>
    %c0_15 = arith.constant 0 : index
    %c0_16 = arith.constant 0 : index
    %c0_17 = arith.constant 0 : index
    %15 = vector.load %arg11[%c0_15, %c0_16, %c0_17] : memref<5x5x32xf32, #tpu.memory_space<vmem>>, vector<4x4x32xf32>
    %16 = vector.shape_cast %15 : vector<4x4x32xf32> to vector<16x32xf32>
    %c0_18 = arith.constant 0 : index
    %c0_19 = arith.constant 0 : index
    %c0_20 = arith.constant 0 : index
    %17 = vector.load %arg4[%c0_18, %c0_19, %c0_20] : memref<4x32x8xf32, #tpu.memory_space<vmem>>, vector<1x32x8xf32>
    %18 = vector.shape_cast %17 : vector<1x32x8xf32> to vector<32x8xf32>
    %cst_21 = arith.constant dense<0.000000e+00> : vector<16x8xf32>
    %19 = tpu.matmul %16, %18, %cst_21 {dimension_numbers = #tpu.dot_dimension_numbers<[1], [0], [0], [1], [0, 0, 1, 1], [], []>} : vector<16x32xf32>, vector<32x8xf32>, vector<16x8xf32> -> vector<16x8xf32>
    %20 = arith.addf %14, %19 : vector<16x8xf32>
    %c0_22 = arith.constant 0 : index
    %c1_23 = arith.constant 1 : index
    %c0_24 = arith.constant 0 : index
    %21 = vector.load %arg11[%c0_22, %c1_23, %c0_24] : memref<5x5x32xf32, #tpu.memory_space<vmem>>, vector<4x4x32xf32>
    %22 = vector.shape_cast %21 : vector<4x4x32xf32> to vector<16x32xf32>
    %c1_25 = arith.constant 1 : index
    %c0_26 = arith.constant 0 : index
    %c0_27 = arith.constant 0 : index
    %23 = vector.load %arg4[%c1_25, %c0_26, %c0_27] : memref<4x32x8xf32, #tpu.memory_space<vmem>>, vector<1x32x8xf32>
    %24 = vector.shape_cast %23 : vector<1x32x8xf32> to vector<32x8xf32>
    %cst_28 = arith.constant dense<0.000000e+00> : vector<16x8xf32>
    %25 = tpu.matmul %22, %24, %cst_28 {dimension_numbers = #tpu.dot_dimension_numbers<[1], [0], [0], [1], [0, 0, 1, 1], [], []>} : vector<16x32xf32>, vector<32x8xf32>, vector<16x8xf32> -> vector<16x8xf32>
    %26 = arith.addf %20, %25 : vector<16x8xf32>
    %c1_29 = arith.constant 1 : index
    %c0_30 = arith.constant 0 : index
    %c0_31 = arith.constant 0 : index
    %27 = vector.load %arg11[%c1_29, %c0_30, %c0_31] : memref<5x5x32xf32, #tpu.memory_space<vmem>>, vector<4x4x32xf32>
    %28 = vector.shape_cast %27 : vector<4x4x32xf32> to vector<16x32xf32>
    %c2 = arith.constant 2 : index
    %c0_32 = arith.constant 0 : index
    %c0_33 = arith.constant 0 : index
    %29 = vector.load %arg4[%c2, %c0_32, %c0_33] : memref<4x32x8xf32, #tpu.memory_space<vmem>>, vector<1x32x8xf32>
    %30 = vector.shape_cast %29 : vector<1x32x8xf32> to vector<32x8xf32>
    %cst_34 = arith.constant dense<0.000000e+00> : vector<16x8xf32>
    %31 = tpu.matmul %28, %30, %cst_34 {dimension_numbers = #tpu.dot_dimension_numbers<[1], [0], [0], [1], [0, 0, 1, 1], [], []>} : vector<16x32xf32>, vector<32x8xf32>, vector<16x8xf32> -> vector<16x8xf32>
    %32 = arith.addf %26, %31 : vector<16x8xf32>
    %c1_35 = arith.constant 1 : index
    %c1_36 = arith.constant 1 : index
    %c0_37 = arith.constant 0 : index
    %33 = vector.load %arg11[%c1_35, %c1_36, %c0_37] : memref<5x5x32xf32, #tpu.memory_space<vmem>>, vector<4x4x32xf32>
    %34 = vector.shape_cast %33 : vector<4x4x32xf32> to vector<16x32xf32>
    %c3 = arith.constant 3 : index
    %c0_38 = arith.constant 0 : index
    %c0_39 = arith.constant 0 : index
    %35 = vector.load %arg4[%c3, %c0_38, %c0_39] : memref<4x32x8xf32, #tpu.memory_space<vmem>>, vector<1x32x8xf32>
    %36 = vector.shape_cast %35 : vector<1x32x8xf32> to vector<32x8xf32>
    %cst_40 = arith.constant dense<0.000000e+00> : vector<16x8xf32>
    %37 = tpu.matmul %34, %36, %cst_40 {dimension_numbers = #tpu.dot_dimension_numbers<[1], [0], [0], [1], [0, 0, 1, 1], [], []>} : vector<16x32xf32>, vector<32x8xf32>, vector<16x8xf32> -> vector<16x8xf32>
    %38 = arith.addf %32, %37 : vector<16x8xf32>
    %c0_41 = arith.constant 0 : index
    %c0_42 = arith.constant 0 : index
    %39 = vector.load %arg5[%c0_41, %c0_42] : memref<1x8xf32, #tpu.memory_space<vmem>>, vector<1x8xf32>
    %40 = vector.broadcast %39 : vector<1x8xf32> to vector<16x8xf32>
    %41 = arith.addf %38, %40 : vector<16x8xf32>
    %cst_43 = arith.constant 0.000000e+00 : f32
    %42 = vector.broadcast %cst_43 : f32 to vector<16x8xf32>
    %43 = arith.maximumf %41, %42 : vector<16x8xf32>
    %c0_44 = arith.constant 0 : index
    %c0_45 = arith.constant 0 : index
    %44 = vector.load %arg6[%c0_44, %c0_45] : memref<8x16xf32, #tpu.memory_space<vmem>>, vector<8x16xf32>
    %cst_46 = arith.constant dense<0.000000e+00> : vector<16x16xf32>
    %45 = tpu.matmul %43, %44, %cst_46 {dimension_numbers = #tpu.dot_dimension_numbers<[1], [0], [0], [1], [0, 0, 1, 1], [], []>} : vector<16x8xf32>, vector<8x16xf32>, vector<16x16xf32> -> vector<16x16xf32>
    %c0_47 = arith.constant 0 : index
    %c0_48 = arith.constant 0 : index
    %46 = vector.load %arg7[%c0_47, %c0_48] : memref<1x16xf32, #tpu.memory_space<vmem>>, vector<1x16xf32>
    %47 = vector.broadcast %46 : vector<1x16xf32> to vector<16x16xf32>
    %48 = arith.addf %45, %47 : vector<16x16xf32>
    %cst_49 = arith.constant 0.000000e+00 : f32
    %49 = vector.broadcast %cst_49 : f32 to vector<16x16xf32>
    %50 = arith.maximumf %48, %49 : vector<16x16xf32>
    %51 = vector.extract_strided_slice %2 {offsets = [0, 0], sizes = [16, 16], strides = [1, 1]} : vector<16x64xf32> to vector<16x16xf32>
    %52 = vector.extract_strided_slice %2 {offsets = [0, 16], sizes = [16, 16], strides = [1, 1]} : vector<16x64xf32> to vector<16x16xf32>
    %53 = arith.maximumf %51, %52 : vector<16x16xf32>
    %54 = vector.extract_strided_slice %2 {offsets = [0, 32], sizes = [16, 16], strides = [1, 1]} : vector<16x64xf32> to vector<16x16xf32>
    %55 = vector.extract_strided_slice %2 {offsets = [0, 48], sizes = [16, 16], strides = [1, 1]} : vector<16x64xf32> to vector<16x16xf32>
    %56 = arith.maximumf %54, %55 : vector<16x16xf32>
    %57 = arith.maximumf %53, %56 : vector<16x16xf32>
    %c0_50 = arith.constant 0 : index
    %c0_51 = arith.constant 0 : index
    %58 = vector.load %arg8[%c0_50, %c0_51] : memref<16x16xf32, #tpu.memory_space<vmem>>, vector<16x16xf32>
    %cst_52 = arith.constant dense<0.000000e+00> : vector<16x16xf32>
    %59 = tpu.matmul %57, %58, %cst_52 {dimension_numbers = #tpu.dot_dimension_numbers<[1], [0], [0], [1], [0, 0, 1, 1], [], []>} : vector<16x16xf32>, vector<16x16xf32>, vector<16x16xf32> -> vector<16x16xf32>
    %c0_53 = arith.constant 0 : index
    %c0_54 = arith.constant 0 : index
    %60 = vector.load %arg9[%c0_53, %c0_54] : memref<1x16xf32, #tpu.memory_space<vmem>>, vector<1x16xf32>
    %61 = vector.broadcast %60 : vector<1x16xf32> to vector<16x16xf32>
    %62 = arith.addf %59, %61 : vector<16x16xf32>
    %63 = arith.addf %50, %62 : vector<16x16xf32>
    %64 = vector.shape_cast %63 : vector<16x16xf32> to vector<4x4x16xf32>
    %c0_55 = arith.constant 0 : index
    %c0_56 = arith.constant 0 : index
    %c0_57 = arith.constant 0 : index
    %c0_58 = arith.constant 0 : index
    %65 = vector.load %arg10[%c0_55, %c0_56, %c0_57, %c0_58] : memref<1x4x4x16xf32, #tpu.memory_space<vmem>>, vector<1x4x4x16xf32>
    %66 = vector.shape_cast %65 : vector<1x4x4x16xf32> to vector<4x4x16xf32>
    %67 = vector.shape_cast %64 : vector<4x4x16xf32> to vector<1x4x4x16xf32>
    tpu.vector_store %arg10[%c0_55, %c0_56, %c0_57, %c0_58], %67 {strides = array<i32>} : memref<1x4x4x16xf32, #tpu.memory_space<vmem>>, vector<1x4x4x16xf32>,
    return
  }
  func.func @transform_0(%arg0: i32) -> (i32, i32, i32, i32) {
    %c0_i32 = arith.constant 0 : i32
    %c0_i32_0 = arith.constant 0 : i32
    %c0_i32_1 = arith.constant 0 : i32
    %c0_i32_2 = arith.constant 0 : i32
    return %arg0, %c0_i32, %c0_i32_0, %c0_i32_1 : i32, i32, i32, i32
  }
  func.func @transform_1(%arg0: i32) -> (i32, i32) {
    %c0_i32 = arith.constant 0 : i32
    %c0_i32_0 = arith.constant 0 : i32
    %c0_i32_1 = arith.constant 0 : i32
    return %c0_i32, %c0_i32_0 : i32, i32
  }
  func.func @transform_2(%arg0: i32) -> (i32, i32) {
    %c0_i32 = arith.constant 0 : i32
    %c0_i32_0 = arith.constant 0 : i32
    %c0_i32_1 = arith.constant 0 : i32
    return %c0_i32, %c0_i32_0 : i32, i32
  }
  func.func @transform_3(%arg0: i32) -> (i32, i32, i32) {
    %c0_i32 = arith.constant 0 : i32
    %c0_i32_0 = arith.constant 0 : i32
    %c0_i32_1 = arith.constant 0 : i32
    %c0_i32_2 = arith.constant 0 : i32
    return %c0_i32, %c0_i32_0, %c0_i32_1 : i32, i32, i32
  }
  func.func @transform_4(%arg0: i32) -> (i32, i32) {
    %c0_i32 = arith.constant 0 : i32
    %c0_i32_0 = arith.constant 0 : i32
    %c0_i32_1 = arith.constant 0 : i32
    return %c0_i32, %c0_i32_0 : i32, i32
  }
  func.func @transform_5(%arg0: i32) -> (i32, i32) {
    %c0_i32 = arith.constant 0 : i32
    %c0_i32_0 = arith.constant 0 : i32
    %c0_i32_1 = arith.constant 0 : i32
    return %c0_i32, %c0_i32_0 : i32, i32
  }
  func.func @transform_6(%arg0: i32) -> (i32, i32) {
    %c0_i32 = arith.constant 0 : i32
    %c0_i32_0 = arith.constant 0 : i32
    %c0_i32_1 = arith.constant 0 : i32
    return %c0_i32, %c0_i32_0 : i32, i32
  }
  func.func @transform_7(%arg0: i32) -> (i32, i32) {
    %c0_i32 = arith.constant 0 : i32
    %c0_i32_0 = arith.constant 0 : i32
    %c0_i32_1 = arith.constant 0 : i32
    return %c0_i32, %c0_i32_0 : i32, i32
  }
  func.func @transform_8(%arg0: i32) -> (i32, i32) {
    %c0_i32 = arith.constant 0 : i32
    %c0_i32_0 = arith.constant 0 : i32
    %c0_i32_1 = arith.constant 0 : i32
    return %c0_i32, %c0_i32_0 : i32, i32
  }
  func.func @transform_9(%arg0: i32) -> (i32, i32, i32, i32) {
    %c0_i32 = arith.constant 0 : i32
    %c0_i32_0 = arith.constant 0 : i32
    %c0_i32_1 = arith.constant 0 : i32
    %c0_i32_2 = arith.constant 0 : i32
    return %arg0, %c0_i32, %c0_i32_0, %c0_i32_1 : i32, i32, i32, i32
  }
}

module attributes {stable_mosaic.version = 11 : i64} {
  func.func @_bottleneck_kernel(%arg0: i32, %arg1: memref<1x2x2x64xf32, #tpu.memory_space<vmem>>, %arg2: memref<64x32xf32, #tpu.memory_space<vmem>>, %arg3: memref<1x32xf32, #tpu.memory_space<vmem>>, %arg4: memref<4x32x8xf32, #tpu.memory_space<vmem>>, %arg5: memref<1x8xf32, #tpu.memory_space<vmem>>, %arg6: memref<8x16xf32, #tpu.memory_space<vmem>>, %arg7: memref<1x16xf32, #tpu.memory_space<vmem>>, %arg8: memref<16x16xf32, #tpu.memory_space<vmem>>, %arg9: memref<1x16xf32, #tpu.memory_space<vmem>>, %arg10: memref<1x2x2x16xf32, #tpu.memory_space<vmem>>, %arg11: memref<3x3x32xf32, #tpu.memory_space<vmem>>) attributes {dimension_semantics = [#tpu.dimension_semantics<parallel>], iteration_bounds = array<i64: 2>, scalar_prefetch = 0 : i64, scratch_operands = 1 : i64, tpu.core_type = #tpu.core_type<tc>, window_params = [{transform_indices = @transform_0, window_bounds = array<i64: 1, 2, 2, 64>}, {pipeline_mode = #tpu.pipeline_mode<synchronous>, transform_indices = @transform_1, window_bounds = array<i64: 64, 32>}, {pipeline_mode = #tpu.pipeline_mode<synchronous>, transform_indices = @transform_2, window_bounds = array<i64: 1, 32>}, {pipeline_mode = #tpu.pipeline_mode<synchronous>, transform_indices = @transform_3, window_bounds = array<i64: 4, 32, 8>}, {pipeline_mode = #tpu.pipeline_mode<synchronous>, transform_indices = @transform_4, window_bounds = array<i64: 1, 8>}, {pipeline_mode = #tpu.pipeline_mode<synchronous>, transform_indices = @transform_5, window_bounds = array<i64: 8, 16>}, {pipeline_mode = #tpu.pipeline_mode<synchronous>, transform_indices = @transform_6, window_bounds = array<i64: 1, 16>}, {pipeline_mode = #tpu.pipeline_mode<synchronous>, transform_indices = @transform_7, window_bounds = array<i64: 16, 16>}, {pipeline_mode = #tpu.pipeline_mode<synchronous>, transform_indices = @transform_8, window_bounds = array<i64: 1, 16>}, {transform_indices = @transform_9, window_bounds = array<i64: 1, 2, 2, 16>}]} {
    %c0 = arith.constant 0 : index
    %c0_0 = arith.constant 0 : index
    %c0_1 = arith.constant 0 : index
    %c0_2 = arith.constant 0 : index
    %0 = vector.load %arg1[%c0, %c0_0, %c0_1, %c0_2] : memref<1x2x2x64xf32, #tpu.memory_space<vmem>>, vector<1x2x2x64xf32>
    %1 = vector.shape_cast %0 : vector<1x2x2x64xf32> to vector<2x2x64xf32>
    %2 = vector.shape_cast %1 : vector<2x2x64xf32> to vector<4x64xf32>
    %c0_3 = arith.constant 0 : index
    %c0_4 = arith.constant 0 : index
    %3 = vector.load %arg2[%c0_3, %c0_4] : memref<64x32xf32, #tpu.memory_space<vmem>>, vector<64x32xf32>
    %cst = arith.constant dense<0.000000e+00> : vector<4x32xf32>
    %4 = tpu.matmul %2, %3, %cst {dimension_numbers = #tpu.dot_dimension_numbers<[1], [0], [0], [1], [0, 0, 1, 1], [], []>} : vector<4x64xf32>, vector<64x32xf32>, vector<4x32xf32> -> vector<4x32xf32>
    %c0_5 = arith.constant 0 : index
    %c0_6 = arith.constant 0 : index
    %5 = vector.load %arg3[%c0_5, %c0_6] : memref<1x32xf32, #tpu.memory_space<vmem>>, vector<1x32xf32>
    %6 = vector.broadcast %5 : vector<1x32xf32> to vector<4x32xf32>
    %7 = arith.addf %4, %6 : vector<4x32xf32>
    %cst_7 = arith.constant 0.000000e+00 : f32
    %8 = vector.broadcast %cst_7 : f32 to vector<4x32xf32>
    %9 = arith.maximumf %7, %8 : vector<4x32xf32>
    %cst_8 = arith.constant 0.000000e+00 : f32
    %10 = vector.broadcast %cst_8 : f32 to vector<3x3x32xf32>
    %c0_9 = arith.constant 0 : index
    %c0_10 = arith.constant 0 : index
    %c0_11 = arith.constant 0 : index
    %11 = vector.load %arg11[%c0_9, %c0_10, %c0_11] : memref<3x3x32xf32, #tpu.memory_space<vmem>>, vector<3x3x32xf32>
    tpu.vector_store %arg11[%c0_9, %c0_10, %c0_11], %10 {strides = array<i32>} : memref<3x3x32xf32, #tpu.memory_space<vmem>>, vector<3x3x32xf32>,
    %12 = vector.shape_cast %9 : vector<4x32xf32> to vector<2x2x32xf32>
    %c1 = arith.constant 1 : index
    %c1_12 = arith.constant 1 : index
    %c0_13 = arith.constant 0 : index
    %13 = vector.load %arg11[%c1, %c1_12, %c0_13] : memref<3x3x32xf32, #tpu.memory_space<vmem>>, vector<2x2x32xf32>
    tpu.vector_store %arg11[%c1, %c1_12, %c0_13], %12 {strides = array<i32>} : memref<3x3x32xf32, #tpu.memory_space<vmem>>, vector<2x2x32xf32>,
    %cst_14 = arith.constant 0.000000e+00 : f32
    %14 = vector.broadcast %cst_14 : f32 to vector<4x8xf32>
    %c0_15 = arith.constant 0 : index
    %c0_16 = arith.constant 0 : index
    %c0_17 = arith.constant 0 : index
    %15 = vector.load %arg11[%c0_15, %c0_16, %c0_17] : memref<3x3x32xf32, #tpu.memory_space<vmem>>, vector<2x2x32xf32>
    %16 = vector.shape_cast %15 : vector<2x2x32xf32> to vector<4x32xf32>
    %c0_18 = arith.constant 0 : index
    %c0_19 = arith.constant 0 : index
    %c0_20 = arith.constant 0 : index
    %17 = vector.load %arg4[%c0_18, %c0_19, %c0_20] : memref<4x32x8xf32, #tpu.memory_space<vmem>>, vector<1x32x8xf32>
    %18 = vector.shape_cast %17 : vector<1x32x8xf32> to vector<32x8xf32>
    %cst_21 = arith.constant dense<0.000000e+00> : vector<4x8xf32>
    %19 = tpu.matmul %16, %18, %cst_21 {dimension_numbers = #tpu.dot_dimension_numbers<[1], [0], [0], [1], [0, 0, 1, 1], [], []>} : vector<4x32xf32>, vector<32x8xf32>, vector<4x8xf32> -> vector<4x8xf32>
    %20 = arith.addf %14, %19 : vector<4x8xf32>
    %c0_22 = arith.constant 0 : index
    %c1_23 = arith.constant 1 : index
    %c0_24 = arith.constant 0 : index
    %21 = vector.load %arg11[%c0_22, %c1_23, %c0_24] : memref<3x3x32xf32, #tpu.memory_space<vmem>>, vector<2x2x32xf32>
    %22 = vector.shape_cast %21 : vector<2x2x32xf32> to vector<4x32xf32>
    %c1_25 = arith.constant 1 : index
    %c0_26 = arith.constant 0 : index
    %c0_27 = arith.constant 0 : index
    %23 = vector.load %arg4[%c1_25, %c0_26, %c0_27] : memref<4x32x8xf32, #tpu.memory_space<vmem>>, vector<1x32x8xf32>
    %24 = vector.shape_cast %23 : vector<1x32x8xf32> to vector<32x8xf32>
    %cst_28 = arith.constant dense<0.000000e+00> : vector<4x8xf32>
    %25 = tpu.matmul %22, %24, %cst_28 {dimension_numbers = #tpu.dot_dimension_numbers<[1], [0], [0], [1], [0, 0, 1, 1], [], []>} : vector<4x32xf32>, vector<32x8xf32>, vector<4x8xf32> -> vector<4x8xf32>
    %26 = arith.addf %20, %25 : vector<4x8xf32>
    %c1_29 = arith.constant 1 : index
    %c0_30 = arith.constant 0 : index
    %c0_31 = arith.constant 0 : index
    %27 = vector.load %arg11[%c1_29, %c0_30, %c0_31] : memref<3x3x32xf32, #tpu.memory_space<vmem>>, vector<2x2x32xf32>
    %28 = vector.shape_cast %27 : vector<2x2x32xf32> to vector<4x32xf32>
    %c2 = arith.constant 2 : index
    %c0_32 = arith.constant 0 : index
    %c0_33 = arith.constant 0 : index
    %29 = vector.load %arg4[%c2, %c0_32, %c0_33] : memref<4x32x8xf32, #tpu.memory_space<vmem>>, vector<1x32x8xf32>
    %30 = vector.shape_cast %29 : vector<1x32x8xf32> to vector<32x8xf32>
    %cst_34 = arith.constant dense<0.000000e+00> : vector<4x8xf32>
    %31 = tpu.matmul %28, %30, %cst_34 {dimension_numbers = #tpu.dot_dimension_numbers<[1], [0], [0], [1], [0, 0, 1, 1], [], []>} : vector<4x32xf32>, vector<32x8xf32>, vector<4x8xf32> -> vector<4x8xf32>
    %32 = arith.addf %26, %31 : vector<4x8xf32>
    %c1_35 = arith.constant 1 : index
    %c1_36 = arith.constant 1 : index
    %c0_37 = arith.constant 0 : index
    %33 = vector.load %arg11[%c1_35, %c1_36, %c0_37] : memref<3x3x32xf32, #tpu.memory_space<vmem>>, vector<2x2x32xf32>
    %34 = vector.shape_cast %33 : vector<2x2x32xf32> to vector<4x32xf32>
    %c3 = arith.constant 3 : index
    %c0_38 = arith.constant 0 : index
    %c0_39 = arith.constant 0 : index
    %35 = vector.load %arg4[%c3, %c0_38, %c0_39] : memref<4x32x8xf32, #tpu.memory_space<vmem>>, vector<1x32x8xf32>
    %36 = vector.shape_cast %35 : vector<1x32x8xf32> to vector<32x8xf32>
    %cst_40 = arith.constant dense<0.000000e+00> : vector<4x8xf32>
    %37 = tpu.matmul %34, %36, %cst_40 {dimension_numbers = #tpu.dot_dimension_numbers<[1], [0], [0], [1], [0, 0, 1, 1], [], []>} : vector<4x32xf32>, vector<32x8xf32>, vector<4x8xf32> -> vector<4x8xf32>
    %38 = arith.addf %32, %37 : vector<4x8xf32>
    %c0_41 = arith.constant 0 : index
    %c0_42 = arith.constant 0 : index
    %39 = vector.load %arg5[%c0_41, %c0_42] : memref<1x8xf32, #tpu.memory_space<vmem>>, vector<1x8xf32>
    %40 = vector.broadcast %39 : vector<1x8xf32> to vector<4x8xf32>
    %41 = arith.addf %38, %40 : vector<4x8xf32>
    %cst_43 = arith.constant 0.000000e+00 : f32
    %42 = vector.broadcast %cst_43 : f32 to vector<4x8xf32>
    %43 = arith.maximumf %41, %42 : vector<4x8xf32>
    %c0_44 = arith.constant 0 : index
    %c0_45 = arith.constant 0 : index
    %44 = vector.load %arg6[%c0_44, %c0_45] : memref<8x16xf32, #tpu.memory_space<vmem>>, vector<8x16xf32>
    %cst_46 = arith.constant dense<0.000000e+00> : vector<4x16xf32>
    %45 = tpu.matmul %43, %44, %cst_46 {dimension_numbers = #tpu.dot_dimension_numbers<[1], [0], [0], [1], [0, 0, 1, 1], [], []>} : vector<4x8xf32>, vector<8x16xf32>, vector<4x16xf32> -> vector<4x16xf32>
    %c0_47 = arith.constant 0 : index
    %c0_48 = arith.constant 0 : index
    %46 = vector.load %arg7[%c0_47, %c0_48] : memref<1x16xf32, #tpu.memory_space<vmem>>, vector<1x16xf32>
    %47 = vector.broadcast %46 : vector<1x16xf32> to vector<4x16xf32>
    %48 = arith.addf %45, %47 : vector<4x16xf32>
    %cst_49 = arith.constant 0.000000e+00 : f32
    %49 = vector.broadcast %cst_49 : f32 to vector<4x16xf32>
    %50 = arith.maximumf %48, %49 : vector<4x16xf32>
    %51 = vector.extract_strided_slice %2 {offsets = [0, 0], sizes = [4, 16], strides = [1, 1]} : vector<4x64xf32> to vector<4x16xf32>
    %52 = vector.extract_strided_slice %2 {offsets = [0, 16], sizes = [4, 16], strides = [1, 1]} : vector<4x64xf32> to vector<4x16xf32>
    %53 = arith.maximumf %51, %52 : vector<4x16xf32>
    %54 = vector.extract_strided_slice %2 {offsets = [0, 32], sizes = [4, 16], strides = [1, 1]} : vector<4x64xf32> to vector<4x16xf32>
    %55 = vector.extract_strided_slice %2 {offsets = [0, 48], sizes = [4, 16], strides = [1, 1]} : vector<4x64xf32> to vector<4x16xf32>
    %56 = arith.maximumf %54, %55 : vector<4x16xf32>
    %57 = arith.maximumf %53, %56 : vector<4x16xf32>
    %c0_50 = arith.constant 0 : index
    %c0_51 = arith.constant 0 : index
    %58 = vector.load %arg8[%c0_50, %c0_51] : memref<16x16xf32, #tpu.memory_space<vmem>>, vector<16x16xf32>
    %cst_52 = arith.constant dense<0.000000e+00> : vector<4x16xf32>
    %59 = tpu.matmul %57, %58, %cst_52 {dimension_numbers = #tpu.dot_dimension_numbers<[1], [0], [0], [1], [0, 0, 1, 1], [], []>} : vector<4x16xf32>, vector<16x16xf32>, vector<4x16xf32> -> vector<4x16xf32>
    %c0_53 = arith.constant 0 : index
    %c0_54 = arith.constant 0 : index
    %60 = vector.load %arg9[%c0_53, %c0_54] : memref<1x16xf32, #tpu.memory_space<vmem>>, vector<1x16xf32>
    %61 = vector.broadcast %60 : vector<1x16xf32> to vector<4x16xf32>
    %62 = arith.addf %59, %61 : vector<4x16xf32>
    %63 = arith.addf %50, %62 : vector<4x16xf32>
    %64 = vector.shape_cast %63 : vector<4x16xf32> to vector<2x2x16xf32>
    %c0_55 = arith.constant 0 : index
    %c0_56 = arith.constant 0 : index
    %c0_57 = arith.constant 0 : index
    %c0_58 = arith.constant 0 : index
    %65 = vector.load %arg10[%c0_55, %c0_56, %c0_57, %c0_58] : memref<1x2x2x16xf32, #tpu.memory_space<vmem>>, vector<1x2x2x16xf32>
    %66 = vector.shape_cast %65 : vector<1x2x2x16xf32> to vector<2x2x16xf32>
    %67 = vector.shape_cast %64 : vector<2x2x16xf32> to vector<1x2x2x16xf32>
    tpu.vector_store %arg10[%c0_55, %c0_56, %c0_57, %c0_58], %67 {strides = array<i32>} : memref<1x2x2x16xf32, #tpu.memory_space<vmem>>, vector<1x2x2x16xf32>,
    return
  }
  func.func @transform_0(%arg0: i32) -> (i32, i32, i32, i32) {
    %c0_i32 = arith.constant 0 : i32
    %c0_i32_0 = arith.constant 0 : i32
    %c0_i32_1 = arith.constant 0 : i32
    %c0_i32_2 = arith.constant 0 : i32
    return %arg0, %c0_i32, %c0_i32_0, %c0_i32_1 : i32, i32, i32, i32
  }
  func.func @transform_1(%arg0: i32) -> (i32, i32) {
    %c0_i32 = arith.constant 0 : i32
    %c0_i32_0 = arith.constant 0 : i32
    %c0_i32_1 = arith.constant 0 : i32
    return %c0_i32, %c0_i32_0 : i32, i32
  }
  func.func @transform_2(%arg0: i32) -> (i32, i32) {
    %c0_i32 = arith.constant 0 : i32
    %c0_i32_0 = arith.constant 0 : i32
    %c0_i32_1 = arith.constant 0 : i32
    return %c0_i32, %c0_i32_0 : i32, i32
  }
  func.func @transform_3(%arg0: i32) -> (i32, i32, i32) {
    %c0_i32 = arith.constant 0 : i32
    %c0_i32_0 = arith.constant 0 : i32
    %c0_i32_1 = arith.constant 0 : i32
    %c0_i32_2 = arith.constant 0 : i32
    return %c0_i32, %c0_i32_0, %c0_i32_1 : i32, i32, i32
  }
  func.func @transform_4(%arg0: i32) -> (i32, i32) {
    %c0_i32 = arith.constant 0 : i32
    %c0_i32_0 = arith.constant 0 : i32
    %c0_i32_1 = arith.constant 0 : i32
    return %c0_i32, %c0_i32_0 : i32, i32
  }
  func.func @transform_5(%arg0: i32) -> (i32, i32) {
    %c0_i32 = arith.constant 0 : i32
    %c0_i32_0 = arith.constant 0 : i32
    %c0_i32_1 = arith.constant 0 : i32
    return %c0_i32, %c0_i32_0 : i32, i32
  }
  func.func @transform_6(%arg0: i32) -> (i32, i32) {
    %c0_i32 = arith.constant 0 : i32
    %c0_i32_0 = arith.constant 0 : i32
    %c0_i32_1 = arith.constant 0 : i32
    return %c0_i32, %c0_i32_0 : i32, i32
  }
  func.func @transform_7(%arg0: i32) -> (i32, i32) {
    %c0_i32 = arith.constant 0 : i32
    %c0_i32_0 = arith.constant 0 : i32
    %c0_i32_1 = arith.constant 0 : i32
    return %c0_i32, %c0_i32_0 : i32, i32
  }
  func.func @transform_8(%arg0: i32) -> (i32, i32) {
    %c0_i32 = arith.constant 0 : i32
    %c0_i32_0 = arith.constant 0 : i32
    %c0_i32_1 = arith.constant 0 : i32
    return %c0_i32, %c0_i32_0 : i32, i32
  }
  func.func @transform_9(%arg0: i32) -> (i32, i32, i32, i32) {
    %c0_i32 = arith.constant 0 : i32
    %c0_i32_0 = arith.constant 0 : i32
    %c0_i32_1 = arith.constant 0 : i32
    %c0_i32_2 = arith.constant 0 : i32
    return %arg0, %c0_i32, %c0_i32_0, %c0_i32_1 : i32, i32, i32, i32
  }
}

module attributes {stable_mosaic.version = 11 : i64} {
  func.func @_bottleneck_kernel(%arg0: i32, %arg1: memref<1x1x1x64xf32, #tpu.memory_space<vmem>>, %arg2: memref<64x32xf32, #tpu.memory_space<vmem>>, %arg3: memref<1x32xf32, #tpu.memory_space<vmem>>, %arg4: memref<4x32x8xf32, #tpu.memory_space<vmem>>, %arg5: memref<1x8xf32, #tpu.memory_space<vmem>>, %arg6: memref<8x16xf32, #tpu.memory_space<vmem>>, %arg7: memref<1x16xf32, #tpu.memory_space<vmem>>, %arg8: memref<16x16xf32, #tpu.memory_space<vmem>>, %arg9: memref<1x16xf32, #tpu.memory_space<vmem>>, %arg10: memref<1x1x1x16xf32, #tpu.memory_space<vmem>>, %arg11: memref<2x2x32xf32, #tpu.memory_space<vmem>>) attributes {dimension_semantics = [#tpu.dimension_semantics<parallel>], iteration_bounds = array<i64: 2>, scalar_prefetch = 0 : i64, scratch_operands = 1 : i64, tpu.core_type = #tpu.core_type<tc>, window_params = [{transform_indices = @transform_0, window_bounds = array<i64: 1, 1, 1, 64>}, {pipeline_mode = #tpu.pipeline_mode<synchronous>, transform_indices = @transform_1, window_bounds = array<i64: 64, 32>}, {pipeline_mode = #tpu.pipeline_mode<synchronous>, transform_indices = @transform_2, window_bounds = array<i64: 1, 32>}, {pipeline_mode = #tpu.pipeline_mode<synchronous>, transform_indices = @transform_3, window_bounds = array<i64: 4, 32, 8>}, {pipeline_mode = #tpu.pipeline_mode<synchronous>, transform_indices = @transform_4, window_bounds = array<i64: 1, 8>}, {pipeline_mode = #tpu.pipeline_mode<synchronous>, transform_indices = @transform_5, window_bounds = array<i64: 8, 16>}, {pipeline_mode = #tpu.pipeline_mode<synchronous>, transform_indices = @transform_6, window_bounds = array<i64: 1, 16>}, {pipeline_mode = #tpu.pipeline_mode<synchronous>, transform_indices = @transform_7, window_bounds = array<i64: 16, 16>}, {pipeline_mode = #tpu.pipeline_mode<synchronous>, transform_indices = @transform_8, window_bounds = array<i64: 1, 16>}, {transform_indices = @transform_9, window_bounds = array<i64: 1, 1, 1, 16>}]} {
    %c0 = arith.constant 0 : index
    %c0_0 = arith.constant 0 : index
    %c0_1 = arith.constant 0 : index
    %c0_2 = arith.constant 0 : index
    %0 = vector.load %arg1[%c0, %c0_0, %c0_1, %c0_2] : memref<1x1x1x64xf32, #tpu.memory_space<vmem>>, vector<1x1x1x64xf32>
    %1 = vector.shape_cast %0 : vector<1x1x1x64xf32> to vector<1x1x64xf32>
    %2 = vector.shape_cast %1 : vector<1x1x64xf32> to vector<1x64xf32>
    %c0_3 = arith.constant 0 : index
    %c0_4 = arith.constant 0 : index
    %3 = vector.load %arg2[%c0_3, %c0_4] : memref<64x32xf32, #tpu.memory_space<vmem>>, vector<64x32xf32>
    %cst = arith.constant dense<0.000000e+00> : vector<1x32xf32>
    %4 = tpu.matmul %2, %3, %cst {dimension_numbers = #tpu.dot_dimension_numbers<[1], [0], [0], [1], [0, 0, 1, 1], [], []>} : vector<1x64xf32>, vector<64x32xf32>, vector<1x32xf32> -> vector<1x32xf32>
    %c0_5 = arith.constant 0 : index
    %c0_6 = arith.constant 0 : index
    %5 = vector.load %arg3[%c0_5, %c0_6] : memref<1x32xf32, #tpu.memory_space<vmem>>, vector<1x32xf32>
    %6 = arith.addf %4, %5 : vector<1x32xf32>
    %cst_7 = arith.constant 0.000000e+00 : f32
    %7 = vector.broadcast %cst_7 : f32 to vector<1x32xf32>
    %8 = arith.maximumf %6, %7 : vector<1x32xf32>
    %cst_8 = arith.constant 0.000000e+00 : f32
    %9 = vector.broadcast %cst_8 : f32 to vector<2x2x32xf32>
    %c0_9 = arith.constant 0 : index
    %c0_10 = arith.constant 0 : index
    %c0_11 = arith.constant 0 : index
    %10 = vector.load %arg11[%c0_9, %c0_10, %c0_11] : memref<2x2x32xf32, #tpu.memory_space<vmem>>, vector<2x2x32xf32>
    tpu.vector_store %arg11[%c0_9, %c0_10, %c0_11], %9 {strides = array<i32>} : memref<2x2x32xf32, #tpu.memory_space<vmem>>, vector<2x2x32xf32>,
    %11 = vector.shape_cast %8 : vector<1x32xf32> to vector<1x1x32xf32>
    %c1 = arith.constant 1 : index
    %c1_12 = arith.constant 1 : index
    %c0_13 = arith.constant 0 : index
    %12 = vector.load %arg11[%c1, %c1_12, %c0_13] : memref<2x2x32xf32, #tpu.memory_space<vmem>>, vector<1x1x32xf32>
    tpu.vector_store %arg11[%c1, %c1_12, %c0_13], %11 {strides = array<i32>} : memref<2x2x32xf32, #tpu.memory_space<vmem>>, vector<1x1x32xf32>,
    %cst_14 = arith.constant 0.000000e+00 : f32
    %13 = vector.broadcast %cst_14 : f32 to vector<1x8xf32>
    %c0_15 = arith.constant 0 : index
    %c0_16 = arith.constant 0 : index
    %c0_17 = arith.constant 0 : index
    %14 = vector.load %arg11[%c0_15, %c0_16, %c0_17] : memref<2x2x32xf32, #tpu.memory_space<vmem>>, vector<1x1x32xf32>
    %15 = vector.shape_cast %14 : vector<1x1x32xf32> to vector<1x32xf32>
    %c0_18 = arith.constant 0 : index
    %c0_19 = arith.constant 0 : index
    %c0_20 = arith.constant 0 : index
    %16 = vector.load %arg4[%c0_18, %c0_19, %c0_20] : memref<4x32x8xf32, #tpu.memory_space<vmem>>, vector<1x32x8xf32>
    %17 = vector.shape_cast %16 : vector<1x32x8xf32> to vector<32x8xf32>
    %cst_21 = arith.constant dense<0.000000e+00> : vector<1x8xf32>
    %18 = tpu.matmul %15, %17, %cst_21 {dimension_numbers = #tpu.dot_dimension_numbers<[1], [0], [0], [1], [0, 0, 1, 1], [], []>} : vector<1x32xf32>, vector<32x8xf32>, vector<1x8xf32> -> vector<1x8xf32>
    %19 = arith.addf %13, %18 : vector<1x8xf32>
    %c0_22 = arith.constant 0 : index
    %c1_23 = arith.constant 1 : index
    %c0_24 = arith.constant 0 : index
    %20 = vector.load %arg11[%c0_22, %c1_23, %c0_24] : memref<2x2x32xf32, #tpu.memory_space<vmem>>, vector<1x1x32xf32>
    %21 = vector.shape_cast %20 : vector<1x1x32xf32> to vector<1x32xf32>
    %c1_25 = arith.constant 1 : index
    %c0_26 = arith.constant 0 : index
    %c0_27 = arith.constant 0 : index
    %22 = vector.load %arg4[%c1_25, %c0_26, %c0_27] : memref<4x32x8xf32, #tpu.memory_space<vmem>>, vector<1x32x8xf32>
    %23 = vector.shape_cast %22 : vector<1x32x8xf32> to vector<32x8xf32>
    %cst_28 = arith.constant dense<0.000000e+00> : vector<1x8xf32>
    %24 = tpu.matmul %21, %23, %cst_28 {dimension_numbers = #tpu.dot_dimension_numbers<[1], [0], [0], [1], [0, 0, 1, 1], [], []>} : vector<1x32xf32>, vector<32x8xf32>, vector<1x8xf32> -> vector<1x8xf32>
    %25 = arith.addf %19, %24 : vector<1x8xf32>
    %c1_29 = arith.constant 1 : index
    %c0_30 = arith.constant 0 : index
    %c0_31 = arith.constant 0 : index
    %26 = vector.load %arg11[%c1_29, %c0_30, %c0_31] : memref<2x2x32xf32, #tpu.memory_space<vmem>>, vector<1x1x32xf32>
    %27 = vector.shape_cast %26 : vector<1x1x32xf32> to vector<1x32xf32>
    %c2 = arith.constant 2 : index
    %c0_32 = arith.constant 0 : index
    %c0_33 = arith.constant 0 : index
    %28 = vector.load %arg4[%c2, %c0_32, %c0_33] : memref<4x32x8xf32, #tpu.memory_space<vmem>>, vector<1x32x8xf32>
    %29 = vector.shape_cast %28 : vector<1x32x8xf32> to vector<32x8xf32>
    %cst_34 = arith.constant dense<0.000000e+00> : vector<1x8xf32>
    %30 = tpu.matmul %27, %29, %cst_34 {dimension_numbers = #tpu.dot_dimension_numbers<[1], [0], [0], [1], [0, 0, 1, 1], [], []>} : vector<1x32xf32>, vector<32x8xf32>, vector<1x8xf32> -> vector<1x8xf32>
    %31 = arith.addf %25, %30 : vector<1x8xf32>
    %c1_35 = arith.constant 1 : index
    %c1_36 = arith.constant 1 : index
    %c0_37 = arith.constant 0 : index
    %32 = vector.load %arg11[%c1_35, %c1_36, %c0_37] : memref<2x2x32xf32, #tpu.memory_space<vmem>>, vector<1x1x32xf32>
    %33 = vector.shape_cast %32 : vector<1x1x32xf32> to vector<1x32xf32>
    %c3 = arith.constant 3 : index
    %c0_38 = arith.constant 0 : index
    %c0_39 = arith.constant 0 : index
    %34 = vector.load %arg4[%c3, %c0_38, %c0_39] : memref<4x32x8xf32, #tpu.memory_space<vmem>>, vector<1x32x8xf32>
    %35 = vector.shape_cast %34 : vector<1x32x8xf32> to vector<32x8xf32>
    %cst_40 = arith.constant dense<0.000000e+00> : vector<1x8xf32>
    %36 = tpu.matmul %33, %35, %cst_40 {dimension_numbers = #tpu.dot_dimension_numbers<[1], [0], [0], [1], [0, 0, 1, 1], [], []>} : vector<1x32xf32>, vector<32x8xf32>, vector<1x8xf32> -> vector<1x8xf32>
    %37 = arith.addf %31, %36 : vector<1x8xf32>
    %c0_41 = arith.constant 0 : index
    %c0_42 = arith.constant 0 : index
    %38 = vector.load %arg5[%c0_41, %c0_42] : memref<1x8xf32, #tpu.memory_space<vmem>>, vector<1x8xf32>
    %39 = arith.addf %37, %38 : vector<1x8xf32>
    %cst_43 = arith.constant 0.000000e+00 : f32
    %40 = vector.broadcast %cst_43 : f32 to vector<1x8xf32>
    %41 = arith.maximumf %39, %40 : vector<1x8xf32>
    %c0_44 = arith.constant 0 : index
    %c0_45 = arith.constant 0 : index
    %42 = vector.load %arg6[%c0_44, %c0_45] : memref<8x16xf32, #tpu.memory_space<vmem>>, vector<8x16xf32>
    %cst_46 = arith.constant dense<0.000000e+00> : vector<1x16xf32>
    %43 = tpu.matmul %41, %42, %cst_46 {dimension_numbers = #tpu.dot_dimension_numbers<[1], [0], [0], [1], [0, 0, 1, 1], [], []>} : vector<1x8xf32>, vector<8x16xf32>, vector<1x16xf32> -> vector<1x16xf32>
    %c0_47 = arith.constant 0 : index
    %c0_48 = arith.constant 0 : index
    %44 = vector.load %arg7[%c0_47, %c0_48] : memref<1x16xf32, #tpu.memory_space<vmem>>, vector<1x16xf32>
    %45 = arith.addf %43, %44 : vector<1x16xf32>
    %cst_49 = arith.constant 0.000000e+00 : f32
    %46 = vector.broadcast %cst_49 : f32 to vector<1x16xf32>
    %47 = arith.maximumf %45, %46 : vector<1x16xf32>
    %48 = vector.extract_strided_slice %2 {offsets = [0, 0], sizes = [1, 16], strides = [1, 1]} : vector<1x64xf32> to vector<1x16xf32>
    %49 = vector.extract_strided_slice %2 {offsets = [0, 16], sizes = [1, 16], strides = [1, 1]} : vector<1x64xf32> to vector<1x16xf32>
    %50 = arith.maximumf %48, %49 : vector<1x16xf32>
    %51 = vector.extract_strided_slice %2 {offsets = [0, 32], sizes = [1, 16], strides = [1, 1]} : vector<1x64xf32> to vector<1x16xf32>
    %52 = vector.extract_strided_slice %2 {offsets = [0, 48], sizes = [1, 16], strides = [1, 1]} : vector<1x64xf32> to vector<1x16xf32>
    %53 = arith.maximumf %51, %52 : vector<1x16xf32>
    %54 = arith.maximumf %50, %53 : vector<1x16xf32>
    %c0_50 = arith.constant 0 : index
    %c0_51 = arith.constant 0 : index
    %55 = vector.load %arg8[%c0_50, %c0_51] : memref<16x16xf32, #tpu.memory_space<vmem>>, vector<16x16xf32>
    %cst_52 = arith.constant dense<0.000000e+00> : vector<1x16xf32>
    %56 = tpu.matmul %54, %55, %cst_52 {dimension_numbers = #tpu.dot_dimension_numbers<[1], [0], [0], [1], [0, 0, 1, 1], [], []>} : vector<1x16xf32>, vector<16x16xf32>, vector<1x16xf32> -> vector<1x16xf32>
    %c0_53 = arith.constant 0 : index
    %c0_54 = arith.constant 0 : index
    %57 = vector.load %arg9[%c0_53, %c0_54] : memref<1x16xf32, #tpu.memory_space<vmem>>, vector<1x16xf32>
    %58 = arith.addf %56, %57 : vector<1x16xf32>
    %59 = arith.addf %47, %58 : vector<1x16xf32>
    %60 = vector.shape_cast %59 : vector<1x16xf32> to vector<1x1x16xf32>
    %c0_55 = arith.constant 0 : index
    %c0_56 = arith.constant 0 : index
    %c0_57 = arith.constant 0 : index
    %c0_58 = arith.constant 0 : index
    %61 = vector.load %arg10[%c0_55, %c0_56, %c0_57, %c0_58] : memref<1x1x1x16xf32, #tpu.memory_space<vmem>>, vector<1x1x1x16xf32>
    %62 = vector.shape_cast %61 : vector<1x1x1x16xf32> to vector<1x1x16xf32>
    %63 = vector.shape_cast %60 : vector<1x1x16xf32> to vector<1x1x1x16xf32>
    tpu.vector_store %arg10[%c0_55, %c0_56, %c0_57, %c0_58], %63 {strides = array<i32>} : memref<1x1x1x16xf32, #tpu.memory_space<vmem>>, vector<1x1x1x16xf32>,
    return
  }
  func.func @transform_0(%arg0: i32) -> (i32, i32, i32, i32) {
    %c0_i32 = arith.constant 0 : i32
    %c0_i32_0 = arith.constant 0 : i32
    %c0_i32_1 = arith.constant 0 : i32
    %c0_i32_2 = arith.constant 0 : i32
    return %arg0, %c0_i32, %c0_i32_0, %c0_i32_1 : i32, i32, i32, i32
  }
  func.func @transform_1(%arg0: i32) -> (i32, i32) {
    %c0_i32 = arith.constant 0 : i32
    %c0_i32_0 = arith.constant 0 : i32
    %c0_i32_1 = arith.constant 0 : i32
    return %c0_i32, %c0_i32_0 : i32, i32
  }
  func.func @transform_2(%arg0: i32) -> (i32, i32) {
    %c0_i32 = arith.constant 0 : i32
    %c0_i32_0 = arith.constant 0 : i32
    %c0_i32_1 = arith.constant 0 : i32
    return %c0_i32, %c0_i32_0 : i32, i32
  }
  func.func @transform_3(%arg0: i32) -> (i32, i32, i32) {
    %c0_i32 = arith.constant 0 : i32
    %c0_i32_0 = arith.constant 0 : i32
    %c0_i32_1 = arith.constant 0 : i32
    %c0_i32_2 = arith.constant 0 : i32
    return %c0_i32, %c0_i32_0, %c0_i32_1 : i32, i32, i32
  }
  func.func @transform_4(%arg0: i32) -> (i32, i32) {
    %c0_i32 = arith.constant 0 : i32
    %c0_i32_0 = arith.constant 0 : i32
    %c0_i32_1 = arith.constant 0 : i32
    return %c0_i32, %c0_i32_0 : i32, i32
  }
  func.func @transform_5(%arg0: i32) -> (i32, i32) {
    %c0_i32 = arith.constant 0 : i32
    %c0_i32_0 = arith.constant 0 : i32
    %c0_i32_1 = arith.constant 0 : i32
    return %c0_i32, %c0_i32_0 : i32, i32
  }
  func.func @transform_6(%arg0: i32) -> (i32, i32) {
    %c0_i32 = arith.constant 0 : i32
    %c0_i32_0 = arith.constant 0 : i32
    %c0_i32_1 = arith.constant 0 : i32
    return %c0_i32, %c0_i32_0 : i32, i32
  }
  func.func @transform_7(%arg0: i32) -> (i32, i32) {
    %c0_i32 = arith.constant 0 : i32
    %c0_i32_0 = arith.constant 0 : i32
    %c0_i32_1 = arith.constant 0 : i32
    return %c0_i32, %c0_i32_0 : i32, i32
  }
  func.func @transform_8(%arg0: i32) -> (i32, i32) {
    %c0_i32 = arith.constant 0 : i32
    %c0_i32_0 = arith.constant 0 : i32
    %c0_i32_1 = arith.constant 0 : i32
    return %c0_i32, %c0_i32_0 : i32, i32
  }
  func.func @transform_9(%arg0: i32) -> (i32, i32, i32, i32) {
    %c0_i32 = arith.constant 0 : i32
    %c0_i32_0 = arith.constant 0 : i32
    %c0_i32_1 = arith.constant 0 : i32
    %c0_i32_2 = arith.constant 0 : i32
    return %arg0, %c0_i32, %c0_i32_0, %c0_i32_1 : i32, i32, i32, i32
  }
}

</mosaic_0001>

<llo_original>
// kernel: distribution_encoder_forward.5
$region0: #{distribution_encoder_forward.5}
  #allocation0 [shape = 'u32[]', space=smem, size = 0x4, offset = 0x4, fixed_abs, tag = 'smem constant byte address 0x4 - core index']
  #allocation1 [shape = 'u32[144,128]{1,0:T(1,128)}', space=vmem, size = 0x12000, scoped, tag = 'internal scratch']
  #allocation2 [shape = 'f32[5,5,32]{2,1,0:T(8,128)}', space=vmem, size = 0x5000, scoped, tag = 'scratch operand']
  %s0 = inlined_call_operand.vmem [shape: f32[2,4,4,64], index: 0, kind: input, shape index: {}]
  %s1 = inlined_call_operand.vmem [shape: f32[64,32], index: 1, kind: input, shape index: {}]
  %s2 = inlined_call_operand.vmem [shape: f32[1,32], index: 2, kind: input, shape index: {}]
  %s3 = inlined_call_operand.vmem [shape: f32[4,32,8], index: 3, kind: input, shape index: {}]
  %s4 = inlined_call_operand.vmem [shape: f32[1,8], index: 4, kind: input, shape index: {}]
  %s5 = inlined_call_operand.vmem [shape: f32[8,16], index: 5, kind: input, shape index: {}]
  %s6 = inlined_call_operand.vmem [shape: f32[1,16], index: 6, kind: input, shape index: {}]
  %s7 = inlined_call_operand.vmem [shape: f32[16,16], index: 7, kind: input, shape index: {}]
  %s8 = inlined_call_operand.vmem [shape: f32[1,16], index: 8, kind: input, shape index: {}]
  %s9 = inlined_call_operand.vmem [shape: f32[2,4,4,16], index: 9, kind: output, shape index: {}]
  %s10 = sld [smem:[#allocation0]]
  $region69: #{distribution_encoder_forward.5} parent=0
    _
  %s12 = ssub.s32 1, %s10
  %s13 = scalar_select 0, %s12, %s10
  loop: start=0, step=1, limit=4
  $region2: #{distribution_encoder_forward.5} parent=0 // loop_pre_header
    _
  $region3: #{distribution_encoder_forward.5} parent=0 // loop_header
    %s15 = sphi 0, %s19
    %p16 = scmp.ge.s32.totalorder %s15, 4
    %s25 = sphi 0, %s27
    %s28 = sphi 0, %s25
    %s29 = sphi 0, %s28
    %s45 = sphi 0, %s29
    %s49 = sphi 0, %s49
    %s51 = sphi 0, %s49
    %s52 = sphi 0, %s51
    %s66 = sphi 0, %s52
    %s70 = sphi 0, %s70
    %s72 = sphi 0, %s70
    %s73 = sphi 0, %s72
    %s87 = sphi 0, %s73
    %s91 = sphi 0, %s91
    %s93 = sphi 0, %s91
    %s94 = sphi 0, %s93
    %s108 = sphi 0, %s94
    %s112 = sphi 0, %s112
    %s114 = sphi 0, %s112
    %s115 = sphi 0, %s114
    %s129 = sphi 0, %s115
    %s133 = sphi 0, %s133
    %s135 = sphi 0, %s133
    %s136 = sphi 0, %s135
    %s150 = sphi 0, %s136
    %s154 = sphi 0, %s154
    %s156 = sphi 0, %s154
    %s157 = sphi 0, %s156
    %s171 = sphi 0, %s157
    %s175 = sphi 0, %s175
    %s177 = sphi 0, %s175
    %s178 = sphi 0, %s177
    %s192 = sphi 0, %s178
    %s196 = sphi 0, %s196
    %s198 = sphi 0, %s196
    %s199 = sphi 0, %s198
    %s213 = sphi 0, %s199
    %s219 = sphi 0, %s221
    %s222 = sphi 0, %s219
    %s223 = sphi 0, %s222
    %s239 = sphi 0, %s223
  $region4: #{distribution_encoder_forward.5} parent=0 // loop_header_branch
    %18 = sbr.rel (%p16) target = $region8
  $region5: #{distribution_encoder_forward.5} parent=0 // loop_body
    %s20 = ssub.s32 %s15, 1
    %s21 = ssub.s32 %s15, 2
    %s22 = sadd.s32 %s15, 1
    %s23 = ssub.s32 %s15, %s22
    %p24 = scmp.eq.s32.totalorder %s23, 0
    %s26 = sadd.s32 %s25, 1
    %s27 = scalar_select %p24, %s25, %s26
    %p30 = pneg %p24
    %p31 = scmp.eq.s32.totalorder %s15, 1
    %p32 = por %p30, %p31
    %p33 = scmp.ne.s32.totalorder %s25, %s28
    %p34 = scmp.eq.s32.totalorder %s15, 0
    %p35 = por %p33, %p34
    %p36 = scmp.ne.s32.totalorder %s25, %s28
    %p37 = scmp.eq.s32.totalorder %s20, 1
    %p38 = por %p36, %p37
    %p39 = scmp.ne.s32.totalorder %s28, %s29
    %p40 = scmp.eq.s32.totalorder %s20, 0
    %p41 = por %p39, %p40
    %p42 = scmp.ne.s32.totalorder %s28, %s29
    %p43 = scmp.eq.s32.totalorder %s21, 1
    %p44 = por %p42, %p43
    %p46 = scmp.ne.s32.totalorder %s29, %s45
    %p47 = scmp.eq.s32.totalorder %s21, 0
    %p48 = por %p46, %p47
    %s50 = sadd.s32 %s49, 1
    %p53 = scmp.eq.s32.totalorder %s15, 1
    %p54 = scmp.ne.s32.totalorder %s49, %s51
    %p55 = scmp.eq.s32.totalorder %s15, 0
    %p56 = por %p54, %p55
    %p57 = scmp.ne.s32.totalorder %s49, %s51
    %p58 = scmp.eq.s32.totalorder %s20, 1
    %p59 = por %p57, %p58
    %p60 = scmp.ne.s32.totalorder %s51, %s52
    %p61 = scmp.eq.s32.totalorder %s20, 0
    %p62 = por %p60, %p61
    %p63 = scmp.ne.s32.totalorder %s51, %s52
    %p64 = scmp.eq.s32.totalorder %s21, 1
    %p65 = por %p63, %p64
    %p67 = scmp.ne.s32.totalorder %s52, %s66
    %p68 = scmp.eq.s32.totalorder %s21, 0
    %p69 = por %p67, %p68
    %s71 = sadd.s32 %s70, 1
    %p74 = scmp.eq.s32.totalorder %s15, 1
    %p75 = scmp.ne.s32.totalorder %s70, %s72
    %p76 = scmp.eq.s32.totalorder %s15, 0
    %p77 = por %p75, %p76
    %p78 = scmp.ne.s32.totalorder %s70, %s72
    %p79 = scmp.eq.s32.totalorder %s20, 1
    %p80 = por %p78, %p79
    %p81 = scmp.ne.s32.totalorder %s72, %s73
    %p82 = scmp.eq.s32.totalorder %s20, 0
    %p83 = por %p81, %p82
    %p84 = scmp.ne.s32.totalorder %s72, %s73
    %p85 = scmp.eq.s32.totalorder %s21, 1
    %p86 = por %p84, %p85
    %p88 = scmp.ne.s32.totalorder %s73, %s87
    %p89 = scmp.eq.s32.totalorder %s21, 0
    %p90 = por %p88, %p89
    %s92 = sadd.s32 %s91, 1
    %p95 = scmp.eq.s32.totalorder %s15, 1
    %p96 = scmp.ne.s32.totalorder %s91, %s93
    %p97 = scmp.eq.s32.totalorder %s15, 0
    %p98 = por %p96, %p97
    %p99 = scmp.ne.s32.totalorder %s91, %s93
    %p100 = scmp.eq.s32.totalorder %s20, 1
    %p101 = por %p99, %p100
    %p102 = scmp.ne.s32.totalorder %s93, %s94
    %p103 = scmp.eq.s32.totalorder %s20, 0
    %p104 = por %p102, %p103
    %p105 = scmp.ne.s32.totalorder %s93, %s94
    %p106 = scmp.eq.s32.totalorder %s21, 1
    %p107 = por %p105, %p106
    %p109 = scmp.ne.s32.totalorder %s94, %s108
    %p110 = scmp.eq.s32.totalorder %s21, 0
    %p111 = por %p109, %p110
    %s113 = sadd.s32 %s112, 1
    %p116 = scmp.eq.s32.totalorder %s15, 1
    %p117 = scmp.ne.s32.totalorder %s112, %s114
    %p118 = scmp.eq.s32.totalorder %s15, 0
    %p119 = por %p117, %p118
    %p120 = scmp.ne.s32.totalorder %s112, %s114
    %p121 = scmp.eq.s32.totalorder %s20, 1
    %p122 = por %p120, %p121
    %p123 = scmp.ne.s32.totalorder %s114, %s115
    %p124 = scmp.eq.s32.totalorder %s20, 0
    %p125 = por %p123, %p124
    %p126 = scmp.ne.s32.totalorder %s114, %s115
    %p127 = scmp.eq.s32.totalorder %s21, 1
    %p128 = por %p126, %p127
    %p130 = scmp.ne.s32.totalorder %s115, %s129
    %p131 = scmp.eq.s32.totalorder %s21, 0
    %p132 = por %p130, %p131
    %s134 = sadd.s32 %s133, 1
    %p137 = scmp.eq.s32.totalorder %s15, 1
    %p138 = scmp.ne.s32.totalorder %s133, %s135
    %p139 = scmp.eq.s32.totalorder %s15, 0
    %p140 = por %p138, %p139
    %p141 = scmp.ne.s32.totalorder %s133, %s135
    %p142 = scmp.eq.s32.totalorder %s20, 1
    %p143 = por %p141, %p142
    %p144 = scmp.ne.s32.totalorder %s135, %s136
    %p145 = scmp.eq.s32.totalorder %s20, 0
    %p146 = por %p144, %p145
    %p147 = scmp.ne.s32.totalorder %s135, %s136
    %p148 = scmp.eq.s32.totalorder %s21, 1
    %p149 = por %p147, %p148
    %p151 = scmp.ne.s32.totalorder %s136, %s150
    %p152 = scmp.eq.s32.totalorder %s21, 0
    %p153 = por %p151, %p152
    %s155 = sadd.s32 %s154, 1
    %p158 = scmp.eq.s32.totalorder %s15, 1
    %p159 = scmp.ne.s32.totalorder %s154, %s156
    %p160 = scmp.eq.s32.totalorder %s15, 0
    %p161 = por %p159, %p160
    %p162 = scmp.ne.s32.totalorder %s154, %s156
    %p163 = scmp.eq.s32.totalorder %s20, 1
    %p164 = por %p162, %p163
    %p165 = scmp.ne.s32.totalorder %s156, %s157
    %p166 = scmp.eq.s32.totalorder %s20, 0
    %p167 = por %p165, %p166
    %p168 = scmp.ne.s32.totalorder %s156, %s157
    %p169 = scmp.eq.s32.totalorder %s21, 1
    %p170 = por %p168, %p169
    %p172 = scmp.ne.s32.totalorder %s157, %s171
    %p173 = scmp.eq.s32.totalorder %s21, 0
    %p174 = por %p172, %p173
    %s176 = sadd.s32 %s175, 1
    %p179 = scmp.eq.s32.totalorder %s15, 1
    %p180 = scmp.ne.s32.totalorder %s175, %s177
    %p181 = scmp.eq.s32.totalorder %s15, 0
    %p182 = por %p180, %p181
    %p183 = scmp.ne.s32.totalorder %s175, %s177
    %p184 = scmp.eq.s32.totalorder %s20, 1
    %p185 = por %p183, %p184
    %p186 = scmp.ne.s32.totalorder %s177, %s178
    %p187 = scmp.eq.s32.totalorder %s20, 0
    %p188 = por %p186, %p187
    %p189 = scmp.ne.s32.totalorder %s177, %s178
    %p190 = scmp.eq.s32.totalorder %s21, 1
    %p191 = por %p189, %p190
    %p193 = scmp.ne.s32.totalorder %s178, %s192
    %p194 = scmp.eq.s32.totalorder %s21, 0
    %p195 = por %p193, %p194
    %s197 = sadd.s32 %s196, 1
    %p200 = scmp.eq.s32.totalorder %s15, 1
    %p201 = scmp.ne.s32.totalorder %s196, %s198
    %p202 = scmp.eq.s32.totalorder %s15, 0
    %p203 = por %p201, %p202
    %p204 = scmp.ne.s32.totalorder %s196, %s198
    %p205 = scmp.eq.s32.totalorder %s20, 1
    %p206 = por %p204, %p205
    %p207 = scmp.ne.s32.totalorder %s198, %s199
    %p208 = scmp.eq.s32.totalorder %s20, 0
    %p209 = por %p207, %p208
    %p210 = scmp.ne.s32.totalorder %s198, %s199
    %p211 = scmp.eq.s32.totalorder %s21, 1
    %p212 = por %p210, %p211
    %p214 = scmp.ne.s32.totalorder %s199, %s213
    %p215 = scmp.eq.s32.totalorder %s21, 0
    %p216 = por %p214, %p215
    %s217 = ssub.s32 %s15, %s22
    %p218 = scmp.eq.s32.totalorder %s217, 0
    %s220 = sadd.s32 %s219, 1
    %s221 = scalar_select %p218, %s219, %s220
    %p224 = pneg %p218
    %p225 = scmp.eq.s32.totalorder %s15, 1
    %p226 = por %p224, %p225
    %p227 = scmp.ne.s32.totalorder %s219, %s222
    %p228 = scmp.eq.s32.totalorder %s15, 0
    %p229 = por %p227, %p228
    %p230 = scmp.ne.s32.totalorder %s219, %s222
    %p231 = scmp.eq.s32.totalorder %s20, 1
    %p232 = por %p230, %p231
    %p233 = scmp.ne.s32.totalorder %s222, %s223
    %p234 = scmp.eq.s32.totalorder %s20, 0
    %p235 = por %p233, %p234
    %p236 = scmp.ne.s32.totalorder %s222, %s223
    %p237 = scmp.eq.s32.totalorder %s21, 1
    %p238 = por %p236, %p237
    %p240 = scmp.ne.s32.totalorder %s223, %s239
    %p241 = scmp.eq.s32.totalorder %s21, 0
    %p242 = por %p240, %p241
    %p243 = scmp.le.s32.totalorder 1, %s15
    %p244 = scmp.lt.s32.totalorder %s15, 3
    %p245 = pnand %p243, %p244
    %p246 = pneg %p245
    // Predicated region
    $region9: #{distribution_encoder_forward.5} parent=5 // pred_check
      _
    $region10: #{distribution_encoder_forward.5} parent=5 // pred_check_branch
      %248 = sbr.rel (%p245) target = $region12
    $region11: #{distribution_encoder_forward.5} parent=5 // pred_region
      %s249 = ssub.s32 %s15, 1
      // Predicated region
      $region13: #{distribution_encoder_forward.5} parent=11 // pred_check
        %p250 = pneg %p62
      $region14: #{distribution_encoder_forward.5} parent=11 // pred_check_branch
        %252 = sbr.rel (%p250) target = $region16
      $region15: #{distribution_encoder_forward.5} parent=11 // pred_region
        _
      $region16: #{distribution_encoder_forward.5} parent=11 // pred_fallthru
        _
      // Predicated region
      $region17: #{distribution_encoder_forward.5} parent=11 // pred_check
        %p253 = pneg %p83
      $region18: #{distribution_encoder_forward.5} parent=11 // pred_check_branch
        %255 = sbr.rel (%p253) target = $region20
      $region19: #{distribution_encoder_forward.5} parent=11 // pred_region
        _
      $region20: #{distribution_encoder_forward.5} parent=11 // pred_fallthru
        _
      // Predicated region
      $region21: #{distribution_encoder_forward.5} parent=11 // pred_check
        %p256 = pneg %p104
      $region22: #{distribution_encoder_forward.5} parent=11 // pred_check_branch
        %258 = sbr.rel (%p256) target = $region24
      $region23: #{distribution_encoder_forward.5} parent=11 // pred_region
        _
      $region24: #{distribution_encoder_forward.5} parent=11 // pred_fallthru
        _
      // Predicated region
      $region25: #{distribution_encoder_forward.5} parent=11 // pred_check
        %p259 = pneg %p125
      $region26: #{distribution_encoder_forward.5} parent=11 // pred_check_branch
        %261 = sbr.rel (%p259) target = $region28
      $region27: #{distribution_encoder_forward.5} parent=11 // pred_region
        _
      $region28: #{distribution_encoder_forward.5} parent=11 // pred_fallthru
        _
      // Predicated region
      $region29: #{distribution_encoder_forward.5} parent=11 // pred_check
        %p262 = pneg %p146
      $region30: #{distribution_encoder_forward.5} parent=11 // pred_check_branch
        %264 = sbr.rel (%p262) target = $region32
      $region31: #{distribution_encoder_forward.5} parent=11 // pred_region
        _
      $region32: #{distribution_encoder_forward.5} parent=11 // pred_fallthru
        _
      // Predicated region
      $region33: #{distribution_encoder_forward.5} parent=11 // pred_check
        %p265 = pneg %p167
      $region34: #{distribution_encoder_forward.5} parent=11 // pred_check_branch
        %267 = sbr.rel (%p265) target = $region36
      $region35: #{distribution_encoder_forward.5} parent=11 // pred_region
        _
      $region36: #{distribution_encoder_forward.5} parent=11 // pred_fallthru
        _
      // Predicated region
      $region37: #{distribution_encoder_forward.5} parent=11 // pred_check
        %p268 = pneg %p188
      $region38: #{distribution_encoder_forward.5} parent=11 // pred_check_branch
        %270 = sbr.rel (%p268) target = $region40
      $region39: #{distribution_encoder_forward.5} parent=11 // pred_region
        _
      $region40: #{distribution_encoder_forward.5} parent=11 // pred_fallthru
        _
      // Predicated region
      $region41: #{distribution_encoder_forward.5} parent=11 // pred_check
        %p271 = pneg %p209
      $region42: #{distribution_encoder_forward.5} parent=11 // pred_check_branch
        %273 = sbr.rel (%p271) target = $region44
      $region43: #{distribution_encoder_forward.5} parent=11 // pred_region
        _
      $region44: #{distribution_encoder_forward.5} parent=11 // pred_fallthru
        _
    $region12: #{distribution_encoder_forward.5} parent=5 // pred_fallthru
      _
    %p274 = scmp.lt.s32.totalorder %s15, 2
    // Predicated region
    $region45: #{distribution_encoder_forward.5} parent=5 // pred_check
      %p275 = pneg %p274
    $region46: #{distribution_encoder_forward.5} parent=5 // pred_check_branch
      %277 = sbr.rel (%p275) target = $region48
    $region47: #{distribution_encoder_forward.5} parent=5 // pred_region
      // Predicated region
      $region49: #{distribution_encoder_forward.5} parent=47 // pred_check
        %p278 = pneg %p35
      $region50: #{distribution_encoder_forward.5} parent=47 // pred_check_branch
        %280 = sbr.rel (%p278) target = $region52
      $region51: #{distribution_encoder_forward.5} parent=47 // pred_region
        %p281 = scmp.lt.s32.totalorder %s15, 1
        %s282 = scalar_select %p281, %s15, 1
        %s283 = smul.addr %s282, 4
        %s284 = smul.addr %s283, 4
        %s285 = scalar_lea.vmem %s0, %s284
      $region52: #{distribution_encoder_forward.5} parent=47 // pred_fallthru
        _
    $region48: #{distribution_encoder_forward.5} parent=5 // pred_fallthru
      _
    %p286 = scmp.le.s32.totalorder 1, %s15
    %p287 = scmp.lt.s32.totalorder %s15, 3
    %p288 = pnand %p286, %p287
    %p289 = pneg %p288
    // Predicated region
    $region53: #{distribution_encoder_forward.5} parent=5 // pred_check
      _
    $region54: #{distribution_encoder_forward.5} parent=5 // pred_check_branch
      %291 = sbr.rel (%p288) target = $region56
    $region55: #{distribution_encoder_forward.5} parent=5 // pred_region
      %s292 = ssub.s32 %s15, 1
      %p293 = scmp.lt.s32.totalorder %s20, 1
      %s294 = scalar_select %p293, %s20, 1
      %s295 = smul.addr %s294, 4
      %s296 = smul.addr %s295, 4
      %s297 = scalar_lea.vmem %s0, %s296
      %p298 = pneg %p41
      %p299 = pneg %p38
      %p300 = pneg %p62
      %p301 = pneg %p59
      %p302 = pneg %p83
      %p303 = pneg %p80
      %p304 = pneg %p104
      %p305 = pneg %p101
      %p306 = pneg %p125
      %p307 = pneg %p122
      %p308 = pneg %p146
      %p309 = pneg %p143
      %p310 = pneg %p167
      %p311 = pneg %p164
      %p312 = pneg %p188
      %p313 = pneg %p185
      %p314 = pneg %p209
      %p315 = pneg %p206
      %p316 = pneg %p235
      %p317 = pneg %p232
      %p318 = scmp.lt.s32.totalorder %s20, 1
      %s319 = scalar_select %p318, %s20, 1
      %s320 = smul.addr %s319, 4
      %s321 = smul.addr %s320, 4
      %s322 = scalar_lea.vmem %s9, %s321
      %p323 = scmp.lt.s32.totalorder %s20, 1
      %s324 = scalar_select %p323, %s20, 1
      %s325 = smul.addr %s324, 4
      %s326 = smul.addr %s325, 4
      %s327 = scalar_lea.vmem %s0, %s326
      %p328 = scmp.lt.s32.totalorder %s20, 1
      %s329 = scalar_select %p328, %s20, 1
      %s330 = smul.addr %s329, 4
      %s331 = smul.addr %s330, 4
      %s332 = scalar_lea.vmem %s9, %s331
      %v333 = vld [vmem:[%s327] sm:$0xf]
      %v334 = vld [vmem:[%s327 + $0x4] sm:$0xf]
      %v335 = vld [vmem:[%s327 + $0x8] sm:$0xf]
      %v336 = vld [vmem:[%s327 + $0xc] sm:$0xf]
      %v337 = vld [vmem:[%s1] sm:$0xff]
      %v338 = vld [vmem:[%s1 + $0x8] sm:$0xff]
      %v339 = vld [vmem:[%s1 + $0x10] sm:$0xff]
      %v340 = vld [vmem:[%s1 + $0x18] sm:$0xff]
      %v341 = vld [vmem:[%s1 + $0x20] sm:$0xff]
      %v342 = vld [vmem:[%s1 + $0x28] sm:$0xff]
      %v343 = vld [vmem:[%s1 + $0x30] sm:$0xff]
      %v344 = vld [vmem:[%s1 + $0x38] sm:$0xff]
      %v345 = vld [vmem:[%s2] sm:$0x1]
      %v347 = vlaneseq
      %v348 = vshrl.u32 %v347, 7
      %v349 = vsub.s32 0, %v348
      %v350 = vrot.slane %v345, %v349
      %v356 = vcombine.low %v333, %v334
      %v357 = vcombine.low %v335, %v336
      %vm358 = vcmask 523264
      %v359 = vsel %vm358, %v356, 0
      %v361 = vsel %vm358, %v357, 0
      %363 = vmatprep.subr.mxu0 0.0
      %364 = vmatpush1.msra.mxu0 0.0
      %365 = vmatprep.subr.mxu0 0.0
      %366 = vmatpush1.msra.mxu0 0.0
      %367 = vmatprep.subr.mxu0 0.0
      %368 = vmatpush1.msra.mxu0 0.0
      %369 = vmatprep.subr.mxu0 0.0
      %370 = vmatpush1.msra.mxu0 0.0
      %371 = vmatprep.subr.mxu0 0.0
      %372 = vmatpush1.msra.mxu0 0.0
      %373 = vmatprep.subr.mxu0 0.0
      %374 = vmatpush1.msra.mxu0 0.0
      %375 = vmatprep.subr.mxu0 0.0
      %376 = vmatpush1.msra.mxu0 0.0
      %377 = vmatprep.subr.mxu0 0.0
      %378 = vmatpush1.msra.mxu0 0.0
      %379 = vmatprep.subr.mxu0 0.0
      %380 = vmatpush1.msra.mxu0 %v344
      %381 = vmatprep.subr.mxu0 0.0
      %382 = vmatpush1.msra.mxu0 %v343
      %383 = vmatprep.subr.mxu0 0.0
      %384 = vmatpush1.msra.mxu0 %v342
      %385 = vmatprep.subr.mxu0 0.0
      %386 = vmatpush1.msra.mxu0 %v341
      %387 = vmatprep.subr.mxu0 0.0
      %388 = vmatpush1.msra.mxu0 %v340
      %389 = vmatprep.subr.mxu0 0.0
      %390 = vmatpush1.msra.mxu0 %v339
      %391 = vmatprep.subr.mxu0 0.0
      %392 = vmatpush1.msra.mxu0 %v338
      %393 = vmatprep.subr.mxu0 0.0
      %394 = vmatpush1.msra.mxu0 %v337
      %395 = vmatprep.subr.mxu0 0.0
      %396 = vmatpush2.msra.mxu0 0.0
      %397 = vmatprep.subr.mxu0 0.0
      %398 = vmatpush2.msra.mxu0 0.0
      %399 = vmatprep.subr.mxu0 0.0
      %400 = vmatpush2.msra.mxu0 0.0
      %401 = vmatprep.subr.mxu0 0.0
      %402 = vmatpush2.msra.mxu0 0.0
      %403 = vmatprep.subr.mxu0 0.0
      %404 = vmatpush2.msra.mxu0 0.0
      %405 = vmatprep.subr.mxu0 0.0
      %406 = vmatpush2.msra.mxu0 0.0
      %407 = vmatprep.subr.mxu0 0.0
      %408 = vmatpush2.msra.mxu0 0.0
      %409 = vmatprep.subr.mxu0 0.0
      %410 = vmatpush2.msra.mxu0 0.0
      %411 = vmatprep.subr.mxu0 0.0
      %412 = vmatpush2.msra.mxu0 0.0
      %413 = vmatprep.subr.mxu0 0.0
      %414 = vmatpush2.msra.mxu0 0.0
      %415 = vmatprep.subr.mxu0 0.0
      %416 = vmatpush2.msra.mxu0 0.0
      %417 = vmatprep.subr.mxu0 0.0
      %418 = vmatpush2.msra.mxu0 0.0
      %419 = vmatprep.subr.mxu0 0.0
      %420 = vmatpush2.msra.mxu0 0.0
      %421 = vmatprep.subr.mxu0 0.0
      %422 = vmatpush2.msra.mxu0 0.0
      %423 = vmatprep.subr.mxu0 0.0
      %424 = vmatpush2.msra.mxu0 0.0
      %425 = vmatprep.subr.mxu0 0.0
      %426 = vmatpush2.msra.mxu0 0.0
      %427 = vmatprep.mubr.f32.mxu0 0.0
      %428 = vmatmul.mubr.f32.gmra.mxu0 %v359
      %v429 = vpop.f32.mrf.mxu0
      %v430 = vadd.f32 %v350, %v429
      %v431 = vpop.f32.mrf.mxu0
      %432 = vmatprep.mubr.f32.mxu0 0.0
      %433 = vmatmul.mubr.f32.gmra.mxu0 %v361
      %v434 = vpop.f32.mrf.mxu0
      %v435 = vadd.f32 %v350, %v434
      %v436 = vpop.f32.mrf.mxu0
      %437 = vdwg.mxu0
      %v438 = vmax.f32 %v430, 0.0
      %v439 = vmax.f32 %v435, 0.0
      %vm440 = vcmask 258048
      %441 = vst.msk [vmem:[#allocation2] sm:$0x1f] %vm440, 0.0
      %442 = vst.msk [vmem:[#allocation2 + $0x8] sm:$0x1f] %vm440, 0.0
      %443 = vst.msk [vmem:[#allocation2 + $0x10] sm:$0x1f] %vm440, 0.0
      %444 = vst.msk [vmem:[#allocation2 + $0x18] sm:$0x1f] %vm440, 0.0
      %445 = vst.msk [vmem:[#allocation2 + $0x20] sm:$0x1f] %vm440, 0.0
      %v448 = vcombine.high %v438, %v438
      %v449 = vcombine.high %v439, %v439
      %s452 = scalar_lea.vmem [#allocation2], 8
      %vm453 = vcmask 257024
      %454 = vst.msk [vmem:[%s452 + $0x1] sm:$0xf] %vm453, %v438
      %455 = vst.msk [vmem:[%s452 + $0x9] sm:$0xf] %vm453, %v448
      %456 = vst.msk [vmem:[%s452 + $0x11] sm:$0xf] %vm453, %v439
      %457 = vst.msk [vmem:[%s452 + $0x19] sm:$0xf] %vm453, %v449
      %v458 = vld [vmem:[#allocation2] sm:$0xf]
      %v459 = vld [vmem:[#allocation2 + $0x8] sm:$0xf]
      %v460 = vld [vmem:[#allocation2 + $0x10] sm:$0xf]
      %v461 = vld [vmem:[#allocation2 + $0x18] sm:$0xf]
      %v462 = vld [vmem:[%s3] sm:$0xff]
      %v463 = vld [vmem:[%s3 + $0x8] sm:$0xff]
      %v464 = vld [vmem:[%s3 + $0x10] sm:$0xff]
      %v465 = vld [vmem:[%s3 + $0x18] sm:$0xff]
      %v466 = vld [vmem:[#allocation2 + $0x1] sm:$0xf]
      %v467 = vld [vmem:[#allocation2 + $0x9] sm:$0xf]
      %v468 = vld [vmem:[#allocation2 + $0x11] sm:$0xf]
      %v469 = vld [vmem:[#allocation2 + $0x19] sm:$0xf]
      %s470 = scalar_lea.vmem %s3, 32
      %v471 = vld [vmem:[%s470] sm:$0xff]
      %v472 = vld [vmem:[%s470 + $0x8] sm:$0xff]
      %v473 = vld [vmem:[%s470 + $0x10] sm:$0xff]
      %v474 = vld [vmem:[%s470 + $0x18] sm:$0xff]
      %v479 = vcombine.low %v466, %v467
      %v480 = vcombine.low %v468, %v469
      %vm481 = vcmask 261120
      %v482 = vsel %vm481, %v479, 0
      %v484 = vsel %vm481, %v480, 0
      %486 = vmatprep.subr.mxu0 0.0
      %487 = vmatpush1.msra.mxu0 0.0
      %488 = vmatprep.subr.mxu0 0.0
      %489 = vmatpush1.msra.mxu0 0.0
      %490 = vmatprep.subr.mxu0 0.0
      %491 = vmatpush1.msra.mxu0 0.0
      %492 = vmatprep.subr.mxu0 0.0
      %493 = vmatpush1.msra.mxu0 0.0
      %494 = vmatprep.subr.mxu0 0.0
      %495 = vmatpush1.msra.mxu0 0.0
      %496 = vmatprep.subr.mxu0 0.0
      %497 = vmatpush1.msra.mxu0 0.0
      %498 = vmatprep.subr.mxu0 0.0
      %499 = vmatpush1.msra.mxu0 0.0
      %500 = vmatprep.subr.mxu0 0.0
      %501 = vmatpush1.msra.mxu0 0.0
      %502 = vmatprep.subr.mxu0 0.0
      %503 = vmatpush1.msra.mxu0 0.0
      %504 = vmatprep.subr.mxu0 0.0
      %505 = vmatpush1.msra.mxu0 0.0
      %506 = vmatprep.subr.mxu0 0.0
      %507 = vmatpush1.msra.mxu0 0.0
      %508 = vmatprep.subr.mxu0 0.0
      %509 = vmatpush1.msra.mxu0 0.0
      %510 = vmatprep.subr.mxu0 0.0
      %511 = vmatpush1.msra.mxu0 %v474
      %512 = vmatprep.subr.mxu0 0.0
      %513 = vmatpush1.msra.mxu0 %v473
      %514 = vmatprep.subr.mxu0 0.0
      %515 = vmatpush1.msra.mxu0 %v472
      %516 = vmatprep.subr.mxu0 0.0
      %517 = vmatpush1.msra.mxu0 %v471
      %518 = vmatprep.subr.mxu0 0.0
      %519 = vmatpush2.msra.mxu0 0.0
      %520 = vmatprep.subr.mxu0 0.0
      %521 = vmatpush2.msra.mxu0 0.0
      %522 = vmatprep.subr.mxu0 0.0
      %523 = vmatpush2.msra.mxu0 0.0
      %524 = vmatprep.subr.mxu0 0.0
      %525 = vmatpush2.msra.mxu0 0.0
      %526 = vmatprep.subr.mxu0 0.0
      %527 = vmatpush2.msra.mxu0 0.0
      %528 = vmatprep.subr.mxu0 0.0
      %529 = vmatpush2.msra.mxu0 0.0
      %530 = vmatprep.subr.mxu0 0.0
      %531 = vmatpush2.msra.mxu0 0.0
      %532 = vmatprep.subr.mxu0 0.0
      %533 = vmatpush2.msra.mxu0 0.0
      %534 = vmatprep.subr.mxu0 0.0
      %535 = vmatpush2.msra.mxu0 0.0
      %536 = vmatprep.subr.mxu0 0.0
      %537 = vmatpush2.msra.mxu0 0.0
      %538 = vmatprep.subr.mxu0 0.0
      %539 = vmatpush2.msra.mxu0 0.0
      %540 = vmatprep.subr.mxu0 0.0
      %541 = vmatpush2.msra.mxu0 0.0
      %542 = vmatprep.subr.mxu0 0.0
      %543 = vmatpush2.msra.mxu0 0.0
      %544 = vmatprep.subr.mxu0 0.0
      %545 = vmatpush2.msra.mxu0 0.0
      %546 = vmatprep.subr.mxu0 0.0
      %547 = vmatpush2.msra.mxu0 0.0
      %548 = vmatprep.subr.mxu0 0.0
      %549 = vmatpush2.msra.mxu0 0.0
      %550 = vmatprep.mubr.f32.mxu0 0.0
      %551 = vmatmul.mubr.f32.gmra.mxu0 %v482
      %v552 = vpop.f32.mrf.mxu0
      %v553 = vadd.f32 0.0, %v552
      %v554 = vpop.f32.mrf.mxu0
      %555 = vmatprep.mubr.f32.mxu0 0.0
      %556 = vmatmul.mubr.f32.gmra.mxu0 %v484
      %v557 = vpop.f32.mrf.mxu0
      %v558 = vadd.f32 0.0, %v557
      %v559 = vpop.f32.mrf.mxu0
      %560 = vdwg.mxu0
      %v565 = vcombine.low %v458, %v459
      %v566 = vcombine.low %v460, %v461
      %v567 = vsel %vm481, %v565, 0
      %v569 = vsel %vm481, %v566, 0
      %571 = vmatprep.subr.mxu0 0.0
      %572 = vmatpush1.msra.mxu0 0.0
      %573 = vmatprep.subr.mxu0 0.0
      %574 = vmatpush1.msra.mxu0 0.0
      %575 = vmatprep.subr.mxu0 0.0
      %576 = vmatpush1.msra.mxu0 0.0
      %577 = vmatprep.subr.mxu0 0.0
      %578 = vmatpush1.msra.mxu0 0.0
      %579 = vmatprep.subr.mxu0 0.0
      %580 = vmatpush1.msra.mxu0 0.0
      %581 = vmatprep.subr.mxu0 0.0
      %582 = vmatpush1.msra.mxu0 0.0
      %583 = vmatprep.subr.mxu0 0.0
      %584 = vmatpush1.msra.mxu0 0.0
      %585 = vmatprep.subr.mxu0 0.0
      %586 = vmatpush1.msra.mxu0 0.0
      %587 = vmatprep.subr.mxu0 0.0
      %588 = vmatpush1.msra.mxu0 0.0
      %589 = vmatprep.subr.mxu0 0.0
      %590 = vmatpush1.msra.mxu0 0.0
      %591 = vmatprep.subr.mxu0 0.0
      %592 = vmatpush1.msra.mxu0 0.0
      %593 = vmatprep.subr.mxu0 0.0
      %594 = vmatpush1.msra.mxu0 0.0
      %595 = vmatprep.subr.mxu0 0.0
      %596 = vmatpush1.msra.mxu0 %v465
      %597 = vmatprep.subr.mxu0 0.0
      %598 = vmatpush1.msra.mxu0 %v464
      %599 = vmatprep.subr.mxu0 0.0
      %600 = vmatpush1.msra.mxu0 %v463
      %601 = vmatprep.subr.mxu0 0.0
      %602 = vmatpush1.msra.mxu0 %v462
      %603 = vmatprep.subr.mxu0 0.0
      %604 = vmatpush2.msra.mxu0 0.0
      %605 = vmatprep.subr.mxu0 0.0
      %606 = vmatpush2.msra.mxu0 0.0
      %607 = vmatprep.subr.mxu0 0.0
      %608 = vmatpush2.msra.mxu0 0.0
      %609 = vmatprep.subr.mxu0 0.0
      %610 = vmatpush2.msra.mxu0 0.0
      %611 = vmatprep.subr.mxu0 0.0
      %612 = vmatpush2.msra.mxu0 0.0
      %613 = vmatprep.subr.mxu0 0.0
      %614 = vmatpush2.msra.mxu0 0.0
      %615 = vmatprep.subr.mxu0 0.0
      %616 = vmatpush2.msra.mxu0 0.0
      %617 = vmatprep.subr.mxu0 0.0
      %618 = vmatpush2.msra.mxu0 0.0
      %619 = vmatprep.subr.mxu0 0.0
      %620 = vmatpush2.msra.mxu0 0.0
      %621 = vmatprep.subr.mxu0 0.0
      %622 = vmatpush2.msra.mxu0 0.0
      %623 = vmatprep.subr.mxu0 0.0
      %624 = vmatpush2.msra.mxu0 0.0
      %625 = vmatprep.subr.mxu0 0.0
      %626 = vmatpush2.msra.mxu0 0.0
      %627 = vmatprep.subr.mxu0 0.0
      %628 = vmatpush2.msra.mxu0 0.0
      %629 = vmatprep.subr.mxu0 0.0
      %630 = vmatpush2.msra.mxu0 0.0
      %631 = vmatprep.subr.mxu0 0.0
      %632 = vmatpush2.msra.mxu0 0.0
      %633 = vmatprep.subr.mxu0 0.0
      %634 = vmatpush2.msra.mxu0 0.0
      %635 = vmatprep.mubr.f32.mxu0 0.0
      %636 = vmatmul.mubr.f32.gmra.mxu0 %v567
      %v637 = vpop.f32.mrf.mxu0
      %v638 = vadd.f32 %v553, %v637
      %v639 = vpop.f32.mrf.mxu0
      %640 = vmatprep.mubr.f32.mxu0 0.0
      %641 = vmatmul.mubr.f32.gmra.mxu0 %v569
      %v642 = vpop.f32.mrf.mxu0
      %v643 = vadd.f32 %v558, %v642
      %v644 = vpop.f32.mrf.mxu0
      %645 = vdwg.mxu0
      %v646 = vld [vmem:[%s452] sm:$0xf]
      %v647 = vld [vmem:[%s452 + $0x8] sm:$0xf]
      %v648 = vld [vmem:[%s452 + $0x10] sm:$0xf]
      %v649 = vld [vmem:[%s452 + $0x18] sm:$0xf]
      %s650 = scalar_lea.vmem %s3, 64
      %v651 = vld [vmem:[%s650] sm:$0xff]
      %v652 = vld [vmem:[%s650 + $0x8] sm:$0xff]
      %v653 = vld [vmem:[%s650 + $0x10] sm:$0xff]
      %v654 = vld [vmem:[%s650 + $0x18] sm:$0xff]
      %v659 = vcombine.low %v646, %v647
      %v660 = vcombine.low %v648, %v649
      %v661 = vsel %vm481, %v659, 0
      %v663 = vsel %vm481, %v660, 0
      %665 = vmatprep.subr.mxu0 0.0
      %666 = vmatpush1.msra.mxu0 0.0
      %667 = vmatprep.subr.mxu0 0.0
      %668 = vmatpush1.msra.mxu0 0.0
      %669 = vmatprep.subr.mxu0 0.0
      %670 = vmatpush1.msra.mxu0 0.0
      %671 = vmatprep.subr.mxu0 0.0
      %672 = vmatpush1.msra.mxu0 0.0
      %673 = vmatprep.subr.mxu0 0.0
      %674 = vmatpush1.msra.mxu0 0.0
      %675 = vmatprep.subr.mxu0 0.0
      %676 = vmatpush1.msra.mxu0 0.0
      %677 = vmatprep.subr.mxu0 0.0
      %678 = vmatpush1.msra.mxu0 0.0
      %679 = vmatprep.subr.mxu0 0.0
      %680 = vmatpush1.msra.mxu0 0.0
      %681 = vmatprep.subr.mxu0 0.0
      %682 = vmatpush1.msra.mxu0 0.0
      %683 = vmatprep.subr.mxu0 0.0
      %684 = vmatpush1.msra.mxu0 0.0
      %685 = vmatprep.subr.mxu0 0.0
      %686 = vmatpush1.msra.mxu0 0.0
      %687 = vmatprep.subr.mxu0 0.0
      %688 = vmatpush1.msra.mxu0 0.0
      %689 = vmatprep.subr.mxu0 0.0
      %690 = vmatpush1.msra.mxu0 %v654
      %691 = vmatprep.subr.mxu0 0.0
      %692 = vmatpush1.msra.mxu0 %v653
      %693 = vmatprep.subr.mxu0 0.0
      %694 = vmatpush1.msra.mxu0 %v652
      %695 = vmatprep.subr.mxu0 0.0
      %696 = vmatpush1.msra.mxu0 %v651
      %697 = vmatprep.subr.mxu0 0.0
      %698 = vmatpush2.msra.mxu0 0.0
      %699 = vmatprep.subr.mxu0 0.0
      %700 = vmatpush2.msra.mxu0 0.0
      %701 = vmatprep.subr.mxu0 0.0
      %702 = vmatpush2.msra.mxu0 0.0
      %703 = vmatprep.subr.mxu0 0.0
      %704 = vmatpush2.msra.mxu0 0.0
      %705 = vmatprep.subr.mxu0 0.0
      %706 = vmatpush2.msra.mxu0 0.0
      %707 = vmatprep.subr.mxu0 0.0
      %708 = vmatpush2.msra.mxu0 0.0
      %709 = vmatprep.subr.mxu0 0.0
      %710 = vmatpush2.msra.mxu0 0.0
      %711 = vmatprep.subr.mxu0 0.0
      %712 = vmatpush2.msra.mxu0 0.0
      %713 = vmatprep.subr.mxu0 0.0
      %714 = vmatpush2.msra.mxu0 0.0
      %715 = vmatprep.subr.mxu0 0.0
      %716 = vmatpush2.msra.mxu0 0.0
      %717 = vmatprep.subr.mxu0 0.0
      %718 = vmatpush2.msra.mxu0 0.0
      %719 = vmatprep.subr.mxu0 0.0
      %720 = vmatpush2.msra.mxu0 0.0
      %721 = vmatprep.subr.mxu0 0.0
      %722 = vmatpush2.msra.mxu0 0.0
      %723 = vmatprep.subr.mxu0 0.0
      %724 = vmatpush2.msra.mxu0 0.0
      %725 = vmatprep.subr.mxu0 0.0
      %726 = vmatpush2.msra.mxu0 0.0
      %727 = vmatprep.subr.mxu0 0.0
      %728 = vmatpush2.msra.mxu0 0.0
      %729 = vmatprep.mubr.f32.mxu0 0.0
      %730 = vmatmul.mubr.f32.gmra.mxu0 %v661
      %v731 = vpop.f32.mrf.mxu0
      %v732 = vadd.f32 0.0, %v731
      %v733 = vpop.f32.mrf.mxu0
      %734 = vmatprep.mubr.f32.mxu0 0.0
      %735 = vmatmul.mubr.f32.gmra.mxu0 %v663
      %v736 = vpop.f32.mrf.mxu0
      %v737 = vadd.f32 0.0, %v736
      %v738 = vpop.f32.mrf.mxu0
      %739 = vdwg.mxu0
      %v740 = vadd.f32 %v638, %v732
      %v741 = vadd.f32 %v643, %v737
      %v742 = vld [vmem:[%s452 + $0x1] sm:$0xf]
      %v743 = vld [vmem:[%s452 + $0x9] sm:$0xf]
      %v744 = vld [vmem:[%s452 + $0x11] sm:$0xf]
      %v745 = vld [vmem:[%s452 + $0x19] sm:$0xf]
      %s746 = scalar_lea.vmem %s3, 96
      %v747 = vld [vmem:[%s746] sm:$0xff]
      %v748 = vld [vmem:[%s746 + $0x8] sm:$0xff]
      %v749 = vld [vmem:[%s746 + $0x10] sm:$0xff]
      %v750 = vld [vmem:[%s746 + $0x18] sm:$0xff]
      %v755 = vcombine.low %v742, %v743
      %v756 = vcombine.low %v744, %v745
      %v757 = vsel %vm481, %v755, 0
      %v759 = vsel %vm481, %v756, 0
      %761 = vmatprep.subr.mxu0 0.0
      %762 = vmatpush1.msra.mxu0 0.0
      %763 = vmatprep.subr.mxu0 0.0
      %764 = vmatpush1.msra.mxu0 0.0
      %765 = vmatprep.subr.mxu0 0.0
      %766 = vmatpush1.msra.mxu0 0.0
      %767 = vmatprep.subr.mxu0 0.0
      %768 = vmatpush1.msra.mxu0 0.0
      %769 = vmatprep.subr.mxu0 0.0
      %770 = vmatpush1.msra.mxu0 0.0
      %771 = vmatprep.subr.mxu0 0.0
      %772 = vmatpush1.msra.mxu0 0.0
      %773 = vmatprep.subr.mxu0 0.0
      %774 = vmatpush1.msra.mxu0 0.0
      %775 = vmatprep.subr.mxu0 0.0
      %776 = vmatpush1.msra.mxu0 0.0
      %777 = vmatprep.subr.mxu0 0.0
      %778 = vmatpush1.msra.mxu0 0.0
      %779 = vmatprep.subr.mxu0 0.0
      %780 = vmatpush1.msra.mxu0 0.0
      %781 = vmatprep.subr.mxu0 0.0
      %782 = vmatpush1.msra.mxu0 0.0
      %783 = vmatprep.subr.mxu0 0.0
      %784 = vmatpush1.msra.mxu0 0.0
      %785 = vmatprep.subr.mxu0 0.0
      %786 = vmatpush1.msra.mxu0 %v750
      %787 = vmatprep.subr.mxu0 0.0
      %788 = vmatpush1.msra.mxu0 %v749
      %789 = vmatprep.subr.mxu0 0.0
      %790 = vmatpush1.msra.mxu0 %v748
      %791 = vmatprep.subr.mxu0 0.0
      %792 = vmatpush1.msra.mxu0 %v747
      %793 = vmatprep.subr.mxu0 0.0
      %794 = vmatpush2.msra.mxu0 0.0
      %795 = vmatprep.subr.mxu0 0.0
      %796 = vmatpush2.msra.mxu0 0.0
      %797 = vmatprep.subr.mxu0 0.0
      %798 = vmatpush2.msra.mxu0 0.0
      %799 = vmatprep.subr.mxu0 0.0
      %800 = vmatpush2.msra.mxu0 0.0
      %801 = vmatprep.subr.mxu0 0.0
      %802 = vmatpush2.msra.mxu0 0.0
      %803 = vmatprep.subr.mxu0 0.0
      %804 = vmatpush2.msra.mxu0 0.0
      %805 = vmatprep.subr.mxu0 0.0
      %806 = vmatpush2.msra.mxu0 0.0
      %807 = vmatprep.subr.mxu0 0.0
      %808 = vmatpush2.msra.mxu0 0.0
      %809 = vmatprep.subr.mxu0 0.0
      %810 = vmatpush2.msra.mxu0 0.0
      %811 = vmatprep.subr.mxu0 0.0
      %812 = vmatpush2.msra.mxu0 0.0
      %813 = vmatprep.subr.mxu0 0.0
      %814 = vmatpush2.msra.mxu0 0.0
      %815 = vmatprep.subr.mxu0 0.0
      %816 = vmatpush2.msra.mxu0 0.0
      %817 = vmatprep.subr.mxu0 0.0
      %818 = vmatpush2.msra.mxu0 0.0
      %819 = vmatprep.subr.mxu0 0.0
      %820 = vmatpush2.msra.mxu0 0.0
      %821 = vmatprep.subr.mxu0 0.0
      %822 = vmatpush2.msra.mxu0 0.0
      %823 = vmatprep.subr.mxu0 0.0
      %824 = vmatpush2.msra.mxu0 0.0
      %825 = vmatprep.mubr.f32.mxu0 0.0
      %826 = vmatmul.mubr.f32.gmra.mxu0 %v757
      %v827 = vpop.f32.mrf.mxu0
      %v828 = vadd.f32 0.0, %v827
      %v829 = vpop.f32.mrf.mxu0
      %830 = vmatprep.mubr.f32.mxu0 0.0
      %831 = vmatmul.mubr.f32.gmra.mxu0 %v759
      %v832 = vpop.f32.mrf.mxu0
      %v833 = vadd.f32 0.0, %v832
      %v834 = vpop.f32.mrf.mxu0
      %835 = vdwg.mxu0
      %v836 = vadd.f32 %v740, %v828
      %v837 = vadd.f32 %v741, %v833
      %v838 = vld [vmem:[%s4] sm:$0x1]
      %v840 = vlaneseq
      %v841 = vshrl.u32 %v840, 7
      %v842 = vsub.s32 0, %v841
      %v843 = vrot.slane %v838, %v842
      %v845 = vadd.f32 %v836, %v843
      %v846 = vadd.f32 %v837, %v843
      %v847 = vmax.f32 %v845, 0.0
      %v848 = vmax.f32 %v846, 0.0
      %v849 = vld [vmem:[%s5] sm:$0xff]
      %v850 = vld [vmem:[%s6] sm:$0x1]
      %v852 = vlaneseq
      %v853 = vshrl.u32 %v852, 7
      %v854 = vsub.s32 0, %v853
      %v855 = vrot.slane %v850, %v854
      %vm857 = vcmask 64512
      %v859 = vsel %vm857, %v847, 0
      %v862 = vsel %vm857, %v848, 0
      %864 = vmatprep.subr.mxu0 0.0
      %865 = vmatpush1.msra.mxu0 0.0
      %866 = vmatprep.subr.mxu0 0.0
      %867 = vmatpush1.msra.mxu0 0.0
      %868 = vmatprep.subr.mxu0 0.0
      %869 = vmatpush1.msra.mxu0 0.0
      %870 = vmatprep.subr.mxu0 0.0
      %871 = vmatpush1.msra.mxu0 0.0
      %872 = vmatprep.subr.mxu0 0.0
      %873 = vmatpush1.msra.mxu0 0.0
      %874 = vmatprep.subr.mxu0 0.0
      %875 = vmatpush1.msra.mxu0 0.0
      %876 = vmatprep.subr.mxu0 0.0
      %877 = vmatpush1.msra.mxu0 0.0
      %878 = vmatprep.subr.mxu0 0.0
      %879 = vmatpush1.msra.mxu0 0.0
      %880 = vmatprep.subr.mxu0 0.0
      %881 = vmatpush1.msra.mxu0 0.0
      %882 = vmatprep.subr.mxu0 0.0
      %883 = vmatpush1.msra.mxu0 0.0
      %884 = vmatprep.subr.mxu0 0.0
      %885 = vmatpush1.msra.mxu0 0.0
      %886 = vmatprep.subr.mxu0 0.0
      %887 = vmatpush1.msra.mxu0 0.0
      %888 = vmatprep.subr.mxu0 0.0
      %889 = vmatpush1.msra.mxu0 0.0
      %890 = vmatprep.subr.mxu0 0.0
      %891 = vmatpush1.msra.mxu0 0.0
      %892 = vmatprep.subr.mxu0 0.0
      %893 = vmatpush1.msra.mxu0 0.0
      %894 = vmatprep.subr.mxu0 0.0
      %895 = vmatpush1.msra.mxu0 %v849
      %896 = vmatprep.subr.mxu0 0.0
      %897 = vmatpush2.msra.mxu0 0.0
      %898 = vmatprep.subr.mxu0 0.0
      %899 = vmatpush2.msra.mxu0 0.0
      %900 = vmatprep.subr.mxu0 0.0
      %901 = vmatpush2.msra.mxu0 0.0
      %902 = vmatprep.subr.mxu0 0.0
      %903 = vmatpush2.msra.mxu0 0.0
      %904 = vmatprep.subr.mxu0 0.0
      %905 = vmatpush2.msra.mxu0 0.0
      %906 = vmatprep.subr.mxu0 0.0
      %907 = vmatpush2.msra.mxu0 0.0
      %908 = vmatprep.subr.mxu0 0.0
      %909 = vmatpush2.msra.mxu0 0.0
      %910 = vmatprep.subr.mxu0 0.0
      %911 = vmatpush2.msra.mxu0 0.0
      %912 = vmatprep.subr.mxu0 0.0
      %913 = vmatpush2.msra.mxu0 0.0
      %914 = vmatprep.subr.mxu0 0.0
      %915 = vmatpush2.msra.mxu0 0.0
      %916 = vmatprep.subr.mxu0 0.0
      %917 = vmatpush2.msra.mxu0 0.0
      %918 = vmatprep.subr.mxu0 0.0
      %919 = vmatpush2.msra.mxu0 0.0
      %920 = vmatprep.subr.mxu0 0.0
      %921 = vmatpush2.msra.mxu0 0.0
      %922 = vmatprep.subr.mxu0 0.0
      %923 = vmatpush2.msra.mxu0 0.0
      %924 = vmatprep.subr.mxu0 0.0
      %925 = vmatpush2.msra.mxu0 0.0
      %926 = vmatprep.subr.mxu0 0.0
      %927 = vmatpush2.msra.mxu0 0.0
      %928 = vmatprep.mubr.f32.mxu0 0.0
      %929 = vmatmul.mubr.f32.gmra.mxu0 %v859
      %v930 = vpop.f32.mrf.mxu0
      %v931 = vadd.f32 %v855, %v930
      %v932 = vpop.f32.mrf.mxu0
      %933 = vmatprep.mubr.f32.mxu0 0.0
      %934 = vmatmul.mubr.f32.gmra.mxu0 %v862
      %v935 = vpop.f32.mrf.mxu0
      %v936 = vadd.f32 %v855, %v935
      %v937 = vpop.f32.mrf.mxu0
      %938 = vdwg.mxu0
      %v939 = vmax.f32 %v931, 0.0
      %v940 = vmax.f32 %v936, 0.0
      %941 = vrot.lane.b32.xlu0 %v333, 112
      %v942 = vpop.permute.xlu0 %941
      %943 = vrot.lane.b32.xlu0 %v334, 112
      %v944 = vpop.permute.xlu0 %943
      %945 = vrot.lane.b32.xlu0 %v335, 112
      %v946 = vpop.permute.xlu0 %945
      %947 = vrot.lane.b32.xlu0 %v336, 112
      %v948 = vpop.permute.xlu0 %947
      %v953 = vmax.f32 %v333, %v942
      %v954 = vmax.f32 %v334, %v944
      %v955 = vmax.f32 %v335, %v946
      %v956 = vmax.f32 %v336, %v948
      %961 = vrot.lane.b32.xlu0 %v953, 96
      %v962 = vpop.permute.xlu0 %961
      %963 = vrot.lane.b32.xlu0 %v954, 96
      %v964 = vpop.permute.xlu0 %963
      %965 = vrot.lane.b32.xlu0 %v955, 96
      %v966 = vpop.permute.xlu0 %965
      %967 = vrot.lane.b32.xlu0 %v956, 96
      %v968 = vpop.permute.xlu0 %967
      %v973 = vmax.f32 %v953, %v962
      %v974 = vmax.f32 %v954, %v964
      %v975 = vmax.f32 %v955, %v966
      %v976 = vmax.f32 %v956, %v968
      %v977 = vld [vmem:[%s7] sm:$0xff]
      %v978 = vld [vmem:[%s7 + $0x8] sm:$0xff]
      %v979 = vld [vmem:[%s8] sm:$0x1]
      %v981 = vlaneseq
      %v982 = vshrl.u32 %v981, 7
      %v983 = vsub.s32 0, %v982
      %v984 = vrot.slane %v979, %v983
      %v990 = vcombine.low %v973, %v974
      %v991 = vcombine.low %v975, %v976
      %vm992 = vcmask 130048
      %v993 = vsel %vm992, %v990, 0
      %v995 = vsel %vm992, %v991, 0
      %997 = vmatprep.subr.mxu0 0.0
      %998 = vmatpush1.msra.mxu0 0.0
      %999 = vmatprep.subr.mxu0 0.0
      %1000 = vmatpush1.msra.mxu0 0.0
      %1001 = vmatprep.subr.mxu0 0.0
      %1002 = vmatpush1.msra.mxu0 0.0
      %1003 = vmatprep.subr.mxu0 0.0
      %1004 = vmatpush1.msra.mxu0 0.0
      %1005 = vmatprep.subr.mxu0 0.0
      %1006 = vmatpush1.msra.mxu0 0.0
      %1007 = vmatprep.subr.mxu0 0.0
      %1008 = vmatpush1.msra.mxu0 0.0
      %1009 = vmatprep.subr.mxu0 0.0
      %1010 = vmatpush1.msra.mxu0 0.0
      %1011 = vmatprep.subr.mxu0 0.0
      %1012 = vmatpush1.msra.mxu0 0.0
      %1013 = vmatprep.subr.mxu0 0.0
      %1014 = vmatpush1.msra.mxu0 0.0
      %1015 = vmatprep.subr.mxu0 0.0
      %1016 = vmatpush1.msra.mxu0 0.0
      %1017 = vmatprep.subr.mxu0 0.0
      %1018 = vmatpush1.msra.mxu0 0.0
      %1019 = vmatprep.subr.mxu0 0.0
      %1020 = vmatpush1.msra.mxu0 0.0
      %1021 = vmatprep.subr.mxu0 0.0
      %1022 = vmatpush1.msra.mxu0 0.0
      %1023 = vmatprep.subr.mxu0 0.0
      %1024 = vmatpush1.msra.mxu0 0.0
      %1025 = vmatprep.subr.mxu0 0.0
      %1026 = vmatpush1.msra.mxu0 %v978
      %1027 = vmatprep.subr.mxu0 0.0
      %1028 = vmatpush1.msra.mxu0 %v977
      %1029 = vmatprep.subr.mxu0 0.0
      %1030 = vmatpush2.msra.mxu0 0.0
      %1031 = vmatprep.subr.mxu0 0.0
      %1032 = vmatpush2.msra.mxu0 0.0
      %1033 = vmatprep.subr.mxu0 0.0
      %1034 = vmatpush2.msra.mxu0 0.0
      %1035 = vmatprep.subr.mxu0 0.0
      %1036 = vmatpush2.msra.mxu0 0.0
      %1037 = vmatprep.subr.mxu0 0.0
      %1038 = vmatpush2.msra.mxu0 0.0
      %1039 = vmatprep.subr.mxu0 0.0
      %1040 = vmatpush2.msra.mxu0 0.0
      %1041 = vmatprep.subr.mxu0 0.0
      %1042 = vmatpush2.msra.mxu0 0.0
      %1043 = vmatprep.subr.mxu0 0.0
      %1044 = vmatpush2.msra.mxu0 0.0
      %1045 = vmatprep.subr.mxu0 0.0
      %1046 = vmatpush2.msra.mxu0 0.0
      %1047 = vmatprep.subr.mxu0 0.0
      %1048 = vmatpush2.msra.mxu0 0.0
      %1049 = vmatprep.subr.mxu0 0.0
      %1050 = vmatpush2.msra.mxu0 0.0
      %1051 = vmatprep.subr.mxu0 0.0
      %1052 = vmatpush2.msra.mxu0 0.0
      %1053 = vmatprep.subr.mxu0 0.0
      %1054 = vmatpush2.msra.mxu0 0.0
      %1055 = vmatprep.subr.mxu0 0.0
      %1056 = vmatpush2.msra.mxu0 0.0
      %1057 = vmatprep.subr.mxu0 0.0
      %1058 = vmatpush2.msra.mxu0 0.0
      %1059 = vmatprep.subr.mxu0 0.0
      %1060 = vmatpush2.msra.mxu0 0.0
      %1061 = vmatprep.mubr.f32.mxu0 0.0
      %1062 = vmatmul.mubr.f32.gmra.mxu0 %v993
      %v1063 = vpop.f32.mrf.mxu0
      %v1064 = vadd.f32 %v984, %v1063
      %v1065 = vpop.f32.mrf.mxu0
      %1066 = vmatprep.mubr.f32.mxu0 0.0
      %1067 = vmatmul.mubr.f32.gmra.mxu0 %v995
      %v1068 = vpop.f32.mrf.mxu0
      %v1069 = vadd.f32 %v984, %v1068
      %v1070 = vpop.f32.mrf.mxu0
      %1071 = vdwg.mxu0
      %v1072 = vadd.f32 %v939, %v1064
      %v1073 = vadd.f32 %v940, %v1069
      %v1076 = vcombine.high %v1072, %v1072
      %v1077 = vcombine.high %v1073, %v1073
      %vm1080 = vcmask 125952
      %1081 = vst.msk [vmem:[%s332] sm:$0xf] %vm1080, %v1072
      %1082 = vst.msk [vmem:[%s332 + $0x4] sm:$0xf] %vm1080, %v1076
      %1083 = vst.msk [vmem:[%s332 + $0x8] sm:$0xf] %vm1080, %v1073
      %1084 = vst.msk [vmem:[%s332 + $0xc] sm:$0xf] %vm1080, %v1077
      %p1085 = scmp.lt.s32.totalorder %s20, 1
      %s1086 = scalar_select %p1085, %s20, 1
      %s1087 = smul.addr %s1086, 4
      %s1088 = smul.addr %s1087, 4
      %s1089 = scalar_lea.vmem %s9, %s1088
      // Predicated region
      $region57: #{distribution_encoder_forward.5} parent=55 // pred_check
        %p1090 = pneg %p232
      $region58: #{distribution_encoder_forward.5} parent=55 // pred_check_branch
        %1092 = sbr.rel (%p1090) target = $region60
      $region59: #{distribution_encoder_forward.5} parent=55 // pred_region
        _
      $region60: #{distribution_encoder_forward.5} parent=55 // pred_fallthru
        _
    $region56: #{distribution_encoder_forward.5} parent=5 // pred_fallthru
      _
    %p1093 = scmp.le.s32.totalorder 2, %s15
    // Predicated region
    $region61: #{distribution_encoder_forward.5} parent=5 // pred_check
      %p1094 = pneg %p1093
    $region62: #{distribution_encoder_forward.5} parent=5 // pred_check_branch
      %1096 = sbr.rel (%p1094) target = $region64
    $region63: #{distribution_encoder_forward.5} parent=5 // pred_region
      %s1097 = ssub.s32 %s15, 2
      // Predicated region
      $region65: #{distribution_encoder_forward.5} parent=63 // pred_check
        %p1098 = pneg %p238
      $region66: #{distribution_encoder_forward.5} parent=63 // pred_check_branch
        %1100 = sbr.rel (%p1098) target = $region68
      $region67: #{distribution_encoder_forward.5} parent=63 // pred_region
        %p1101 = scmp.lt.s32.totalorder %s21, 1
        %s1102 = scalar_select %p1101, %s21, 1
        %s1103 = smul.addr %s1102, 4
        %s1104 = smul.addr %s1103, 4
        %s1105 = scalar_lea.vmem %s9, %s1104
      $region68: #{distribution_encoder_forward.5} parent=63 // pred_fallthru
        _
    $region64: #{distribution_encoder_forward.5} parent=5 // pred_fallthru
      _
  $region6: #{distribution_encoder_forward.5} parent=0 // loop_footer
    %s19 = sadd.s32 1, %s15
  $region7: #{distribution_encoder_forward.5} parent=0 // loop_footer_branch
    %14 = sbr.rel target = $region3
  $region8: #{distribution_encoder_forward.5} parent=0 // loop_exit
    _

// kernel: distribution_encoder_forward.4
$region0: #{distribution_encoder_forward.4}
  #allocation0 [shape = 'u32[]', space=smem, size = 0x4, offset = 0x4, fixed_abs, tag = 'smem constant byte address 0x4 - core index']
  #allocation1 [shape = 'u32[144,128]{1,0:T(1,128)}', space=vmem, size = 0x12000, scoped, tag = 'internal scratch']
  #allocation2 [shape = 'f32[9,9,16]{2,1,0:T(8,128)}', space=vmem, size = 0x12000, scoped, tag = 'scratch operand']
  %s0 = inlined_call_operand.vmem [shape: f32[2,8,8,32], index: 0, kind: input, shape index: {}]
  %s1 = inlined_call_operand.vmem [shape: f32[32,16], index: 1, kind: input, shape index: {}]
  %s2 = inlined_call_operand.vmem [shape: f32[1,16], index: 2, kind: input, shape index: {}]
  %s3 = inlined_call_operand.vmem [shape: f32[4,16,4], index: 3, kind: input, shape index: {}]
  %s4 = inlined_call_operand.vmem [shape: f32[1,4], index: 4, kind: input, shape index: {}]
  %s5 = inlined_call_operand.vmem [shape: f32[4,16], index: 5, kind: input, shape index: {}]
  %s6 = inlined_call_operand.vmem [shape: f32[1,16], index: 6, kind: input, shape index: {}]
  %s7 = inlined_call_operand.vmem [shape: f32[8,16], index: 7, kind: input, shape index: {}]
  %s8 = inlined_call_operand.vmem [shape: f32[1,16], index: 8, kind: input, shape index: {}]
  %s9 = inlined_call_operand.vmem [shape: f32[2,8,8,16], index: 9, kind: output, shape index: {}]
  %s10 = sld [smem:[#allocation0]]
  $region69: #{distribution_encoder_forward.4} parent=0
    _
  %s12 = ssub.s32 1, %s10
  %s13 = scalar_select 0, %s12, %s10
  loop: start=0, step=1, limit=4
  $region2: #{distribution_encoder_forward.4} parent=0 // loop_pre_header
    _
  $region3: #{distribution_encoder_forward.4} parent=0 // loop_header
    %s15 = sphi 0, %s19
    %p16 = scmp.ge.s32.totalorder %s15, 4
    %s25 = sphi 0, %s27
    %s28 = sphi 0, %s25
    %s29 = sphi 0, %s28
    %s45 = sphi 0, %s29
    %s49 = sphi 0, %s49
    %s51 = sphi 0, %s49
    %s52 = sphi 0, %s51
    %s66 = sphi 0, %s52
    %s70 = sphi 0, %s70
    %s72 = sphi 0, %s70
    %s73 = sphi 0, %s72
    %s87 = sphi 0, %s73
    %s91 = sphi 0, %s91
    %s93 = sphi 0, %s91
    %s94 = sphi 0, %s93
    %s108 = sphi 0, %s94
    %s112 = sphi 0, %s112
    %s114 = sphi 0, %s112
    %s115 = sphi 0, %s114
    %s129 = sphi 0, %s115
    %s133 = sphi 0, %s133
    %s135 = sphi 0, %s133
    %s136 = sphi 0, %s135
    %s150 = sphi 0, %s136
    %s154 = sphi 0, %s154
    %s156 = sphi 0, %s154
    %s157 = sphi 0, %s156
    %s171 = sphi 0, %s157
    %s175 = sphi 0, %s175
    %s177 = sphi 0, %s175
    %s178 = sphi 0, %s177
    %s192 = sphi 0, %s178
    %s196 = sphi 0, %s196
    %s198 = sphi 0, %s196
    %s199 = sphi 0, %s198
    %s213 = sphi 0, %s199
    %s219 = sphi 0, %s221
    %s222 = sphi 0, %s219
    %s223 = sphi 0, %s222
    %s239 = sphi 0, %s223
  $region4: #{distribution_encoder_forward.4} parent=0 // loop_header_branch
    %18 = sbr.rel (%p16) target = $region8
  $region5: #{distribution_encoder_forward.4} parent=0 // loop_body
    %s20 = ssub.s32 %s15, 1
    %s21 = ssub.s32 %s15, 2
    %s22 = sadd.s32 %s15, 1
    %s23 = ssub.s32 %s15, %s22
    %p24 = scmp.eq.s32.totalorder %s23, 0
    %s26 = sadd.s32 %s25, 1
    %s27 = scalar_select %p24, %s25, %s26
    %p30 = pneg %p24
    %p31 = scmp.eq.s32.totalorder %s15, 1
    %p32 = por %p30, %p31
    %p33 = scmp.ne.s32.totalorder %s25, %s28
    %p34 = scmp.eq.s32.totalorder %s15, 0
    %p35 = por %p33, %p34
    %p36 = scmp.ne.s32.totalorder %s25, %s28
    %p37 = scmp.eq.s32.totalorder %s20, 1
    %p38 = por %p36, %p37
    %p39 = scmp.ne.s32.totalorder %s28, %s29
    %p40 = scmp.eq.s32.totalorder %s20, 0
    %p41 = por %p39, %p40
    %p42 = scmp.ne.s32.totalorder %s28, %s29
    %p43 = scmp.eq.s32.totalorder %s21, 1
    %p44 = por %p42, %p43
    %p46 = scmp.ne.s32.totalorder %s29, %s45
    %p47 = scmp.eq.s32.totalorder %s21, 0
    %p48 = por %p46, %p47
    %s50 = sadd.s32 %s49, 1
    %p53 = scmp.eq.s32.totalorder %s15, 1
    %p54 = scmp.ne.s32.totalorder %s49, %s51
    %p55 = scmp.eq.s32.totalorder %s15, 0
    %p56 = por %p54, %p55
    %p57 = scmp.ne.s32.totalorder %s49, %s51
    %p58 = scmp.eq.s32.totalorder %s20, 1
    %p59 = por %p57, %p58
    %p60 = scmp.ne.s32.totalorder %s51, %s52
    %p61 = scmp.eq.s32.totalorder %s20, 0
    %p62 = por %p60, %p61
    %p63 = scmp.ne.s32.totalorder %s51, %s52
    %p64 = scmp.eq.s32.totalorder %s21, 1
    %p65 = por %p63, %p64
    %p67 = scmp.ne.s32.totalorder %s52, %s66
    %p68 = scmp.eq.s32.totalorder %s21, 0
    %p69 = por %p67, %p68
    %s71 = sadd.s32 %s70, 1
    %p74 = scmp.eq.s32.totalorder %s15, 1
    %p75 = scmp.ne.s32.totalorder %s70, %s72
    %p76 = scmp.eq.s32.totalorder %s15, 0
    %p77 = por %p75, %p76
    %p78 = scmp.ne.s32.totalorder %s70, %s72
    %p79 = scmp.eq.s32.totalorder %s20, 1
    %p80 = por %p78, %p79
    %p81 = scmp.ne.s32.totalorder %s72, %s73
    %p82 = scmp.eq.s32.totalorder %s20, 0
    %p83 = por %p81, %p82
    %p84 = scmp.ne.s32.totalorder %s72, %s73
    %p85 = scmp.eq.s32.totalorder %s21, 1
    %p86 = por %p84, %p85
    %p88 = scmp.ne.s32.totalorder %s73, %s87
    %p89 = scmp.eq.s32.totalorder %s21, 0
    %p90 = por %p88, %p89
    %s92 = sadd.s32 %s91, 1
    %p95 = scmp.eq.s32.totalorder %s15, 1
    %p96 = scmp.ne.s32.totalorder %s91, %s93
    %p97 = scmp.eq.s32.totalorder %s15, 0
    %p98 = por %p96, %p97
    %p99 = scmp.ne.s32.totalorder %s91, %s93
    %p100 = scmp.eq.s32.totalorder %s20, 1
    %p101 = por %p99, %p100
    %p102 = scmp.ne.s32.totalorder %s93, %s94
    %p103 = scmp.eq.s32.totalorder %s20, 0
    %p104 = por %p102, %p103
    %p105 = scmp.ne.s32.totalorder %s93, %s94
    %p106 = scmp.eq.s32.totalorder %s21, 1
    %p107 = por %p105, %p106
    %p109 = scmp.ne.s32.totalorder %s94, %s108
    %p110 = scmp.eq.s32.totalorder %s21, 0
    %p111 = por %p109, %p110
    %s113 = sadd.s32 %s112, 1
    %p116 = scmp.eq.s32.totalorder %s15, 1
    %p117 = scmp.ne.s32.totalorder %s112, %s114
    %p118 = scmp.eq.s32.totalorder %s15, 0
    %p119 = por %p117, %p118
    %p120 = scmp.ne.s32.totalorder %s112, %s114
    %p121 = scmp.eq.s32.totalorder %s20, 1
    %p122 = por %p120, %p121
    %p123 = scmp.ne.s32.totalorder %s114, %s115
    %p124 = scmp.eq.s32.totalorder %s20, 0
    %p125 = por %p123, %p124
    %p126 = scmp.ne.s32.totalorder %s114, %s115
    %p127 = scmp.eq.s32.totalorder %s21, 1
    %p128 = por %p126, %p127
    %p130 = scmp.ne.s32.totalorder %s115, %s129
    %p131 = scmp.eq.s32.totalorder %s21, 0
    %p132 = por %p130, %p131
    %s134 = sadd.s32 %s133, 1
    %p137 = scmp.eq.s32.totalorder %s15, 1
    %p138 = scmp.ne.s32.totalorder %s133, %s135
    %p139 = scmp.eq.s32.totalorder %s15, 0
    %p140 = por %p138, %p139
    %p141 = scmp.ne.s32.totalorder %s133, %s135
    %p142 = scmp.eq.s32.totalorder %s20, 1
    %p143 = por %p141, %p142
    %p144 = scmp.ne.s32.totalorder %s135, %s136
    %p145 = scmp.eq.s32.totalorder %s20, 0
    %p146 = por %p144, %p145
    %p147 = scmp.ne.s32.totalorder %s135, %s136
    %p148 = scmp.eq.s32.totalorder %s21, 1
    %p149 = por %p147, %p148
    %p151 = scmp.ne.s32.totalorder %s136, %s150
    %p152 = scmp.eq.s32.totalorder %s21, 0
    %p153 = por %p151, %p152
    %s155 = sadd.s32 %s154, 1
    %p158 = scmp.eq.s32.totalorder %s15, 1
    %p159 = scmp.ne.s32.totalorder %s154, %s156
    %p160 = scmp.eq.s32.totalorder %s15, 0
    %p161 = por %p159, %p160
    %p162 = scmp.ne.s32.totalorder %s154, %s156
    %p163 = scmp.eq.s32.totalorder %s20, 1
    %p164 = por %p162, %p163
    %p165 = scmp.ne.s32.totalorder %s156, %s157
    %p166 = scmp.eq.s32.totalorder %s20, 0
    %p167 = por %p165, %p166
    %p168 = scmp.ne.s32.totalorder %s156, %s157
    %p169 = scmp.eq.s32.totalorder %s21, 1
    %p170 = por %p168, %p169
    %p172 = scmp.ne.s32.totalorder %s157, %s171
    %p173 = scmp.eq.s32.totalorder %s21, 0
    %p174 = por %p172, %p173
    %s176 = sadd.s32 %s175, 1
    %p179 = scmp.eq.s32.totalorder %s15, 1
    %p180 = scmp.ne.s32.totalorder %s175, %s177
    %p181 = scmp.eq.s32.totalorder %s15, 0
    %p182 = por %p180, %p181
    %p183 = scmp.ne.s32.totalorder %s175, %s177
    %p184 = scmp.eq.s32.totalorder %s20, 1
    %p185 = por %p183, %p184
    %p186 = scmp.ne.s32.totalorder %s177, %s178
    %p187 = scmp.eq.s32.totalorder %s20, 0
    %p188 = por %p186, %p187
    %p189 = scmp.ne.s32.totalorder %s177, %s178
    %p190 = scmp.eq.s32.totalorder %s21, 1
    %p191 = por %p189, %p190
    %p193 = scmp.ne.s32.totalorder %s178, %s192
    %p194 = scmp.eq.s32.totalorder %s21, 0
    %p195 = por %p193, %p194
    %s197 = sadd.s32 %s196, 1
    %p200 = scmp.eq.s32.totalorder %s15, 1
    %p201 = scmp.ne.s32.totalorder %s196, %s198
    %p202 = scmp.eq.s32.totalorder %s15, 0
    %p203 = por %p201, %p202
    %p204 = scmp.ne.s32.totalorder %s196, %s198
    %p205 = scmp.eq.s32.totalorder %s20, 1
    %p206 = por %p204, %p205
    %p207 = scmp.ne.s32.totalorder %s198, %s199
    %p208 = scmp.eq.s32.totalorder %s20, 0
    %p209 = por %p207, %p208
    %p210 = scmp.ne.s32.totalorder %s198, %s199
    %p211 = scmp.eq.s32.totalorder %s21, 1
    %p212 = por %p210, %p211
    %p214 = scmp.ne.s32.totalorder %s199, %s213
    %p215 = scmp.eq.s32.totalorder %s21, 0
    %p216 = por %p214, %p215
    %s217 = ssub.s32 %s15, %s22
    %p218 = scmp.eq.s32.totalorder %s217, 0
    %s220 = sadd.s32 %s219, 1
    %s221 = scalar_select %p218, %s219, %s220
    %p224 = pneg %p218
    %p225 = scmp.eq.s32.totalorder %s15, 1
    %p226 = por %p224, %p225
    %p227 = scmp.ne.s32.totalorder %s219, %s222
    %p228 = scmp.eq.s32.totalorder %s15, 0
    %p229 = por %p227, %p228
    %p230 = scmp.ne.s32.totalorder %s219, %s222
    %p231 = scmp.eq.s32.totalorder %s20, 1
    %p232 = por %p230, %p231
    %p233 = scmp.ne.s32.totalorder %s222, %s223
    %p234 = scmp.eq.s32.totalorder %s20, 0
    %p235 = por %p233, %p234
    %p236 = scmp.ne.s32.totalorder %s222, %s223
    %p237 = scmp.eq.s32.totalorder %s21, 1
    %p238 = por %p236, %p237
    %p240 = scmp.ne.s32.totalorder %s223, %s239
    %p241 = scmp.eq.s32.totalorder %s21, 0
    %p242 = por %p240, %p241
    %p243 = scmp.le.s32.totalorder 1, %s15
    %p244 = scmp.lt.s32.totalorder %s15, 3
    %p245 = pnand %p243, %p244
    %p246 = pneg %p245
    // Predicated region
    $region9: #{distribution_encoder_forward.4} parent=5 // pred_check
      _
    $region10: #{distribution_encoder_forward.4} parent=5 // pred_check_branch
      %248 = sbr.rel (%p245) target = $region12
    $region11: #{distribution_encoder_forward.4} parent=5 // pred_region
      %s249 = ssub.s32 %s15, 1
      // Predicated region
      $region13: #{distribution_encoder_forward.4} parent=11 // pred_check
        %p250 = pneg %p62
      $region14: #{distribution_encoder_forward.4} parent=11 // pred_check_branch
        %252 = sbr.rel (%p250) target = $region16
      $region15: #{distribution_encoder_forward.4} parent=11 // pred_region
        _
      $region16: #{distribution_encoder_forward.4} parent=11 // pred_fallthru
        _
      // Predicated region
      $region17: #{distribution_encoder_forward.4} parent=11 // pred_check
        %p253 = pneg %p83
      $region18: #{distribution_encoder_forward.4} parent=11 // pred_check_branch
        %255 = sbr.rel (%p253) target = $region20
      $region19: #{distribution_encoder_forward.4} parent=11 // pred_region
        _
      $region20: #{distribution_encoder_forward.4} parent=11 // pred_fallthru
        _
      // Predicated region
      $region21: #{distribution_encoder_forward.4} parent=11 // pred_check
        %p256 = pneg %p104
      $region22: #{distribution_encoder_forward.4} parent=11 // pred_check_branch
        %258 = sbr.rel (%p256) target = $region24
      $region23: #{distribution_encoder_forward.4} parent=11 // pred_region
        _
      $region24: #{distribution_encoder_forward.4} parent=11 // pred_fallthru
        _
      // Predicated region
      $region25: #{distribution_encoder_forward.4} parent=11 // pred_check
        %p259 = pneg %p125
      $region26: #{distribution_encoder_forward.4} parent=11 // pred_check_branch
        %261 = sbr.rel (%p259) target = $region28
      $region27: #{distribution_encoder_forward.4} parent=11 // pred_region
        _
      $region28: #{distribution_encoder_forward.4} parent=11 // pred_fallthru
        _
      // Predicated region
      $region29: #{distribution_encoder_forward.4} parent=11 // pred_check
        %p262 = pneg %p146
      $region30: #{distribution_encoder_forward.4} parent=11 // pred_check_branch
        %264 = sbr.rel (%p262) target = $region32
      $region31: #{distribution_encoder_forward.4} parent=11 // pred_region
        _
      $region32: #{distribution_encoder_forward.4} parent=11 // pred_fallthru
        _
      // Predicated region
      $region33: #{distribution_encoder_forward.4} parent=11 // pred_check
        %p265 = pneg %p167
      $region34: #{distribution_encoder_forward.4} parent=11 // pred_check_branch
        %267 = sbr.rel (%p265) target = $region36
      $region35: #{distribution_encoder_forward.4} parent=11 // pred_region
        _
      $region36: #{distribution_encoder_forward.4} parent=11 // pred_fallthru
        _
      // Predicated region
      $region37: #{distribution_encoder_forward.4} parent=11 // pred_check
        %p268 = pneg %p188
      $region38: #{distribution_encoder_forward.4} parent=11 // pred_check_branch
        %270 = sbr.rel (%p268) target = $region40
      $region39: #{distribution_encoder_forward.4} parent=11 // pred_region
        _
      $region40: #{distribution_encoder_forward.4} parent=11 // pred_fallthru
        _
      // Predicated region
      $region41: #{distribution_encoder_forward.4} parent=11 // pred_check
        %p271 = pneg %p209
      $region42: #{distribution_encoder_forward.4} parent=11 // pred_check_branch
        %273 = sbr.rel (%p271) target = $region44
      $region43: #{distribution_encoder_forward.4} parent=11 // pred_region
        _
      $region44: #{distribution_encoder_forward.4} parent=11 // pred_fallthru
        _
    $region12: #{distribution_encoder_forward.4} parent=5 // pred_fallthru
      _
    %p274 = scmp.lt.s32.totalorder %s15, 2
    // Predicated region
    $region45: #{distribution_encoder_forward.4} parent=5 // pred_check
      %p275 = pneg %p274
    $region46: #{distribution_encoder_forward.4} parent=5 // pred_check_branch
      %277 = sbr.rel (%p275) target = $region48
    $region47: #{distribution_encoder_forward.4} parent=5 // pred_region
      // Predicated region
      $region49: #{distribution_encoder_forward.4} parent=47 // pred_check
        %p278 = pneg %p35
      $region50: #{distribution_encoder_forward.4} parent=47 // pred_check_branch
        %280 = sbr.rel (%p278) target = $region52
      $region51: #{distribution_encoder_forward.4} parent=47 // pred_region
        %p281 = scmp.lt.s32.totalorder %s15, 1
        %s282 = scalar_select %p281, %s15, 1
        %s283 = smul.addr %s282, 8
        %s284 = smul.addr %s283, 8
        %s285 = scalar_lea.vmem %s0, %s284
      $region52: #{distribution_encoder_forward.4} parent=47 // pred_fallthru
        _
    $region48: #{distribution_encoder_forward.4} parent=5 // pred_fallthru
      _
    %p286 = scmp.le.s32.totalorder 1, %s15
    %p287 = scmp.lt.s32.totalorder %s15, 3
    %p288 = pnand %p286, %p287
    %p289 = pneg %p288
    // Predicated region
    $region53: #{distribution_encoder_forward.4} parent=5 // pred_check
      _
    $region54: #{distribution_encoder_forward.4} parent=5 // pred_check_branch
      %291 = sbr.rel (%p288) target = $region56
    $region55: #{distribution_encoder_forward.4} parent=5 // pred_region
      %s292 = ssub.s32 %s15, 1
      %p293 = scmp.lt.s32.totalorder %s20, 1
      %s294 = scalar_select %p293, %s20, 1
      %s295 = smul.addr %s294, 8
      %s296 = smul.addr %s295, 8
      %s297 = scalar_lea.vmem %s0, %s296
      %p298 = pneg %p41
      %p299 = pneg %p38
      %p300 = pneg %p62
      %p301 = pneg %p59
      %p302 = pneg %p83
      %p303 = pneg %p80
      %p304 = pneg %p104
      %p305 = pneg %p101
      %p306 = pneg %p125
      %p307 = pneg %p122
      %p308 = pneg %p146
      %p309 = pneg %p143
      %p310 = pneg %p167
      %p311 = pneg %p164
      %p312 = pneg %p188
      %p313 = pneg %p185
      %p314 = pneg %p209
      %p315 = pneg %p206
      %p316 = pneg %p235
      %p317 = pneg %p232
      %p318 = scmp.lt.s32.totalorder %s20, 1
      %s319 = scalar_select %p318, %s20, 1
      %s320 = smul.addr %s319, 8
      %s321 = smul.addr %s320, 8
      %s322 = scalar_lea.vmem %s9, %s321
      %p323 = scmp.lt.s32.totalorder %s20, 1
      %s324 = scalar_select %p323, %s20, 1
      %s325 = smul.addr %s324, 8
      %s326 = smul.addr %s325, 8
      %s327 = scalar_lea.vmem %s0, %s326
      %p328 = scmp.lt.s32.totalorder %s20, 1
      %s329 = scalar_select %p328, %s20, 1
      %s330 = smul.addr %s329, 8
      %s331 = smul.addr %s330, 8
      %s332 = scalar_lea.vmem %s9, %s331
      %v333 = vld [vmem:[%s327] sm:$0xff]
      %v334 = vld [vmem:[%s327 + $0x8] sm:$0xff]
      %v335 = vld [vmem:[%s327 + $0x10] sm:$0xff]
      %v336 = vld [vmem:[%s327 + $0x18] sm:$0xff]
      %v337 = vld [vmem:[%s327 + $0x20] sm:$0xff]
      %v338 = vld [vmem:[%s327 + $0x28] sm:$0xff]
      %v339 = vld [vmem:[%s327 + $0x30] sm:$0xff]
      %v340 = vld [vmem:[%s327 + $0x38] sm:$0xff]
      %v341 = vld [vmem:[%s1] sm:$0xff]
      %v342 = vld [vmem:[%s1 + $0x8] sm:$0xff]
      %v343 = vld [vmem:[%s1 + $0x10] sm:$0xff]
      %v344 = vld [vmem:[%s1 + $0x18] sm:$0xff]
      %v345 = vld [vmem:[%s2] sm:$0x1]
      %v347 = vlaneseq
      %v348 = vshrl.u32 %v347, 7
      %v349 = vsub.s32 0, %v348
      %v350 = vrot.slane %v345, %v349
      %vm352 = vcmask 261120
      %v354 = vsel %vm352, %v333, 0
      %v357 = vsel %vm352, %v334, 0
      %v360 = vsel %vm352, %v335, 0
      %v363 = vsel %vm352, %v336, 0
      %v366 = vsel %vm352, %v337, 0
      %v369 = vsel %vm352, %v338, 0
      %v372 = vsel %vm352, %v339, 0
      %v375 = vsel %vm352, %v340, 0
      %377 = vmatprep.subr.mxu0 0.0
      %378 = vmatpush1.msra.mxu0 0.0
      %379 = vmatprep.subr.mxu0 0.0
      %380 = vmatpush1.msra.mxu0 0.0
      %381 = vmatprep.subr.mxu0 0.0
      %382 = vmatpush1.msra.mxu0 0.0
      %383 = vmatprep.subr.mxu0 0.0
      %384 = vmatpush1.msra.mxu0 0.0
      %385 = vmatprep.subr.mxu0 0.0
      %386 = vmatpush1.msra.mxu0 0.0
      %387 = vmatprep.subr.mxu0 0.0
      %388 = vmatpush1.msra.mxu0 0.0
      %389 = vmatprep.subr.mxu0 0.0
      %390 = vmatpush1.msra.mxu0 0.0
      %391 = vmatprep.subr.mxu0 0.0
      %392 = vmatpush1.msra.mxu0 0.0
      %393 = vmatprep.subr.mxu0 0.0
      %394 = vmatpush1.msra.mxu0 0.0
      %395 = vmatprep.subr.mxu0 0.0
      %396 = vmatpush1.msra.mxu0 0.0
      %397 = vmatprep.subr.mxu0 0.0
      %398 = vmatpush1.msra.mxu0 0.0
      %399 = vmatprep.subr.mxu0 0.0
      %400 = vmatpush1.msra.mxu0 0.0
      %401 = vmatprep.subr.mxu0 0.0
      %402 = vmatpush1.msra.mxu0 %v344
      %403 = vmatprep.subr.mxu0 0.0
      %404 = vmatpush1.msra.mxu0 %v343
      %405 = vmatprep.subr.mxu0 0.0
      %406 = vmatpush1.msra.mxu0 %v342
      %407 = vmatprep.subr.mxu0 0.0
      %408 = vmatpush1.msra.mxu0 %v341
      %409 = vmatprep.subr.mxu0 0.0
      %410 = vmatpush2.msra.mxu0 0.0
      %411 = vmatprep.subr.mxu0 0.0
      %412 = vmatpush2.msra.mxu0 0.0
      %413 = vmatprep.subr.mxu0 0.0
      %414 = vmatpush2.msra.mxu0 0.0
      %415 = vmatprep.subr.mxu0 0.0
      %416 = vmatpush2.msra.mxu0 0.0
      %417 = vmatprep.subr.mxu0 0.0
      %418 = vmatpush2.msra.mxu0 0.0
      %419 = vmatprep.subr.mxu0 0.0
      %420 = vmatpush2.msra.mxu0 0.0
      %421 = vmatprep.subr.mxu0 0.0
      %422 = vmatpush2.msra.mxu0 0.0
      %423 = vmatprep.subr.mxu0 0.0
      %424 = vmatpush2.msra.mxu0 0.0
      %425 = vmatprep.subr.mxu0 0.0
      %426 = vmatpush2.msra.mxu0 0.0
      %427 = vmatprep.subr.mxu0 0.0
      %428 = vmatpush2.msra.mxu0 0.0
      %429 = vmatprep.subr.mxu0 0.0
      %430 = vmatpush2.msra.mxu0 0.0
      %431 = vmatprep.subr.mxu0 0.0
      %432 = vmatpush2.msra.mxu0 0.0
      %433 = vmatprep.subr.mxu0 0.0
      %434 = vmatpush2.msra.mxu0 0.0
      %435 = vmatprep.subr.mxu0 0.0
      %436 = vmatpush2.msra.mxu0 0.0
      %437 = vmatprep.subr.mxu0 0.0
      %438 = vmatpush2.msra.mxu0 0.0
      %439 = vmatprep.subr.mxu0 0.0
      %440 = vmatpush2.msra.mxu0 0.0
      %441 = vmatprep.mubr.f32.mxu0 0.0
      %442 = vmatmul.mubr.f32.gmra.mxu0 %v354
      %v443 = vpop.f32.mrf.mxu0
      %v444 = vadd.f32 %v350, %v443
      %v445 = vpop.f32.mrf.mxu0
      %446 = vmatprep.mubr.f32.mxu0 0.0
      %447 = vmatmul.mubr.f32.gmra.mxu0 %v357
      %v448 = vpop.f32.mrf.mxu0
      %v449 = vadd.f32 %v350, %v448
      %v450 = vpop.f32.mrf.mxu0
      %451 = vmatprep.mubr.f32.mxu0 0.0
      %452 = vmatmul.mubr.f32.gmra.mxu0 %v360
      %v453 = vpop.f32.mrf.mxu0
      %v454 = vadd.f32 %v350, %v453
      %v455 = vpop.f32.mrf.mxu0
      %456 = vmatprep.mubr.f32.mxu0 0.0
      %457 = vmatmul.mubr.f32.gmra.mxu0 %v363
      %v458 = vpop.f32.mrf.mxu0
      %v459 = vadd.f32 %v350, %v458
      %v460 = vpop.f32.mrf.mxu0
      %461 = vmatprep.mubr.f32.mxu0 0.0
      %462 = vmatmul.mubr.f32.gmra.mxu0 %v366
      %v463 = vpop.f32.mrf.mxu0
      %v464 = vadd.f32 %v350, %v463
      %v465 = vpop.f32.mrf.mxu0
      %466 = vmatprep.mubr.f32.mxu0 0.0
      %467 = vmatmul.mubr.f32.gmra.mxu0 %v369
      %v468 = vpop.f32.mrf.mxu0
      %v469 = vadd.f32 %v350, %v468
      %v470 = vpop.f32.mrf.mxu0
      %471 = vmatprep.mubr.f32.mxu0 0.0
      %472 = vmatmul.mubr.f32.gmra.mxu0 %v372
      %v473 = vpop.f32.mrf.mxu0
      %v474 = vadd.f32 %v350, %v473
      %v475 = vpop.f32.mrf.mxu0
      %476 = vmatprep.mubr.f32.mxu0 0.0
      %477 = vmatmul.mubr.f32.gmra.mxu0 %v375
      %v478 = vpop.f32.mrf.mxu0
      %v479 = vadd.f32 %v350, %v478
      %v480 = vpop.f32.mrf.mxu0
      %481 = vdwg.mxu0
      %v482 = vmax.f32 %v444, 0.0
      %v483 = vmax.f32 %v449, 0.0
      %v484 = vmax.f32 %v454, 0.0
      %v485 = vmax.f32 %v459, 0.0
      %v486 = vmax.f32 %v464, 0.0
      %v487 = vmax.f32 %v469, 0.0
      %v488 = vmax.f32 %v474, 0.0
      %v489 = vmax.f32 %v479, 0.0
      %vm490 = vcmask 130048
      %491 = vst.msk [vmem:[#allocation2] sm:$0xff] %vm490, 0.0
      %vm492 = vcmask 122880
      %493 = vst.msk [vmem:[#allocation2 + $0x8] sm:$0x1] %vm492, 0.0
      %494 = vst.msk [vmem:[#allocation2 + $0x10] sm:$0xff] %vm490, 0.0
      %495 = vst.msk [vmem:[#allocation2 + $0x18] sm:$0x1] %vm492, 0.0
      %496 = vst.msk [vmem:[#allocation2 + $0x20] sm:$0xff] %vm490, 0.0
      %497 = vst.msk [vmem:[#allocation2 + $0x28] sm:$0x1] %vm492, 0.0
      %498 = vst.msk [vmem:[#allocation2 + $0x30] sm:$0xff] %vm490, 0.0
      %499 = vst.msk [vmem:[#allocation2 + $0x38] sm:$0x1] %vm492, 0.0
      %500 = vst.msk [vmem:[#allocation2 + $0x40] sm:$0xff] %vm490, 0.0
      %501 = vst.msk [vmem:[#allocation2 + $0x48] sm:$0x1] %vm492, 0.0
      %502 = vst.msk [vmem:[#allocation2 + $0x50] sm:$0xff] %vm490, 0.0
      %503 = vst.msk [vmem:[#allocation2 + $0x58] sm:$0x1] %vm492, 0.0
      %504 = vst.msk [vmem:[#allocation2 + $0x60] sm:$0xff] %vm490, 0.0
      %505 = vst.msk [vmem:[#allocation2 + $0x68] sm:$0x1] %vm492, 0.0
      %506 = vst.msk [vmem:[#allocation2 + $0x70] sm:$0xff] %vm490, 0.0
      %507 = vst.msk [vmem:[#allocation2 + $0x78] sm:$0x1] %vm492, 0.0
      %508 = vst.msk [vmem:[#allocation2 + $0x80] sm:$0xff] %vm490, 0.0
      %509 = vst.msk [vmem:[#allocation2 + $0x88] sm:$0x1] %vm492, 0.0
      %s510 = scalar_lea.vmem [#allocation2], 16
      %511 = vst.msk [vmem:[%s510 + $0x1] sm:$0xff] %vm490, %v482
      %512 = vst.msk [vmem:[%s510 + $0x11] sm:$0xff] %vm490, %v483
      %513 = vst.msk [vmem:[%s510 + $0x21] sm:$0xff] %vm490, %v484
      %514 = vst.msk [vmem:[%s510 + $0x31] sm:$0xff] %vm490, %v485
      %515 = vst.msk [vmem:[%s510 + $0x41] sm:$0xff] %vm490, %v486
      %516 = vst.msk [vmem:[%s510 + $0x51] sm:$0xff] %vm490, %v487
      %517 = vst.msk [vmem:[%s510 + $0x61] sm:$0xff] %vm490, %v488
      %518 = vst.msk [vmem:[%s510 + $0x71] sm:$0xff] %vm490, %v489
      %v519 = vld [vmem:[#allocation2] sm:$0xff]
      %v520 = vld [vmem:[#allocation2 + $0x10] sm:$0xff]
      %v521 = vld [vmem:[#allocation2 + $0x20] sm:$0xff]
      %v522 = vld [vmem:[#allocation2 + $0x30] sm:$0xff]
      %v523 = vld [vmem:[#allocation2 + $0x40] sm:$0xff]
      %v524 = vld [vmem:[#allocation2 + $0x50] sm:$0xff]
      %v525 = vld [vmem:[#allocation2 + $0x60] sm:$0xff]
      %v526 = vld [vmem:[#allocation2 + $0x70] sm:$0xff]
      %v527 = vld [vmem:[%s3] sm:$0xff]
      %v528 = vld [vmem:[%s3 + $0x8] sm:$0xff]
      %v529 = vld [vmem:[#allocation2 + $0x1] sm:$0xff]
      %v530 = vld [vmem:[#allocation2 + $0x11] sm:$0xff]
      %v531 = vld [vmem:[#allocation2 + $0x21] sm:$0xff]
      %v532 = vld [vmem:[#allocation2 + $0x31] sm:$0xff]
      %v533 = vld [vmem:[#allocation2 + $0x41] sm:$0xff]
      %v534 = vld [vmem:[#allocation2 + $0x51] sm:$0xff]
      %v535 = vld [vmem:[#allocation2 + $0x61] sm:$0xff]
      %v536 = vld [vmem:[#allocation2 + $0x71] sm:$0xff]
      %s537 = scalar_lea.vmem %s3, 16
      %v538 = vld [vmem:[%s537] sm:$0xff]
      %v539 = vld [vmem:[%s537 + $0x8] sm:$0xff]
      %v541 = vsel %vm490, %v529, 0
      %v544 = vsel %vm490, %v530, 0
      %v547 = vsel %vm490, %v531, 0
      %v550 = vsel %vm490, %v532, 0
      %v553 = vsel %vm490, %v533, 0
      %v556 = vsel %vm490, %v534, 0
      %v559 = vsel %vm490, %v535, 0
      %v562 = vsel %vm490, %v536, 0
      %564 = vmatprep.subr.mxu0 0.0
      %565 = vmatpush1.msra.mxu0 0.0
      %566 = vmatprep.subr.mxu0 0.0
      %567 = vmatpush1.msra.mxu0 0.0
      %568 = vmatprep.subr.mxu0 0.0
      %569 = vmatpush1.msra.mxu0 0.0
      %570 = vmatprep.subr.mxu0 0.0
      %571 = vmatpush1.msra.mxu0 0.0
      %572 = vmatprep.subr.mxu0 0.0
      %573 = vmatpush1.msra.mxu0 0.0
      %574 = vmatprep.subr.mxu0 0.0
      %575 = vmatpush1.msra.mxu0 0.0
      %576 = vmatprep.subr.mxu0 0.0
      %577 = vmatpush1.msra.mxu0 0.0
      %578 = vmatprep.subr.mxu0 0.0
      %579 = vmatpush1.msra.mxu0 0.0
      %580 = vmatprep.subr.mxu0 0.0
      %581 = vmatpush1.msra.mxu0 0.0
      %582 = vmatprep.subr.mxu0 0.0
      %583 = vmatpush1.msra.mxu0 0.0
      %584 = vmatprep.subr.mxu0 0.0
      %585 = vmatpush1.msra.mxu0 0.0
      %586 = vmatprep.subr.mxu0 0.0
      %587 = vmatpush1.msra.mxu0 0.0
      %588 = vmatprep.subr.mxu0 0.0
      %589 = vmatpush1.msra.mxu0 0.0
      %590 = vmatprep.subr.mxu0 0.0
      %591 = vmatpush1.msra.mxu0 0.0
      %592 = vmatprep.subr.mxu0 0.0
      %593 = vmatpush1.msra.mxu0 %v539
      %594 = vmatprep.subr.mxu0 0.0
      %595 = vmatpush1.msra.mxu0 %v538
      %596 = vmatprep.subr.mxu0 0.0
      %597 = vmatpush2.msra.mxu0 0.0
      %598 = vmatprep.subr.mxu0 0.0
      %599 = vmatpush2.msra.mxu0 0.0
      %600 = vmatprep.subr.mxu0 0.0
      %601 = vmatpush2.msra.mxu0 0.0
      %602 = vmatprep.subr.mxu0 0.0
      %603 = vmatpush2.msra.mxu0 0.0
      %604 = vmatprep.subr.mxu0 0.0
      %605 = vmatpush2.msra.mxu0 0.0
      %606 = vmatprep.subr.mxu0 0.0
      %607 = vmatpush2.msra.mxu0 0.0
      %608 = vmatprep.subr.mxu0 0.0
      %609 = vmatpush2.msra.mxu0 0.0
      %610 = vmatprep.subr.mxu0 0.0
      %611 = vmatpush2.msra.mxu0 0.0
      %612 = vmatprep.subr.mxu0 0.0
      %613 = vmatpush2.msra.mxu0 0.0
      %614 = vmatprep.subr.mxu0 0.0
      %615 = vmatpush2.msra.mxu0 0.0
      %616 = vmatprep.subr.mxu0 0.0
      %617 = vmatpush2.msra.mxu0 0.0
      %618 = vmatprep.subr.mxu0 0.0
      %619 = vmatpush2.msra.mxu0 0.0
      %620 = vmatprep.subr.mxu0 0.0
      %621 = vmatpush2.msra.mxu0 0.0
      %622 = vmatprep.subr.mxu0 0.0
      %623 = vmatpush2.msra.mxu0 0.0
      %624 = vmatprep.subr.mxu0 0.0
      %625 = vmatpush2.msra.mxu0 0.0
      %626 = vmatprep.subr.mxu0 0.0
      %627 = vmatpush2.msra.mxu0 0.0
      %628 = vmatprep.mubr.f32.mxu0 0.0
      %629 = vmatmul.mubr.f32.gmra.mxu0 %v541
      %v630 = vpop.f32.mrf.mxu0
      %v631 = vadd.f32 0.0, %v630
      %v632 = vpop.f32.mrf.mxu0
      %633 = vmatprep.mubr.f32.mxu0 0.0
      %634 = vmatmul.mubr.f32.gmra.mxu0 %v544
      %v635 = vpop.f32.mrf.mxu0
      %v636 = vadd.f32 0.0, %v635
      %v637 = vpop.f32.mrf.mxu0
      %638 = vmatprep.mubr.f32.mxu0 0.0
      %639 = vmatmul.mubr.f32.gmra.mxu0 %v547
      %v640 = vpop.f32.mrf.mxu0
      %v641 = vadd.f32 0.0, %v640
      %v642 = vpop.f32.mrf.mxu0
      %643 = vmatprep.mubr.f32.mxu0 0.0
      %644 = vmatmul.mubr.f32.gmra.mxu0 %v550
      %v645 = vpop.f32.mrf.mxu0
      %v646 = vadd.f32 0.0, %v645
      %v647 = vpop.f32.mrf.mxu0
      %648 = vmatprep.mubr.f32.mxu0 0.0
      %649 = vmatmul.mubr.f32.gmra.mxu0 %v553
      %v650 = vpop.f32.mrf.mxu0
      %v651 = vadd.f32 0.0, %v650
      %v652 = vpop.f32.mrf.mxu0
      %653 = vmatprep.mubr.f32.mxu0 0.0
      %654 = vmatmul.mubr.f32.gmra.mxu0 %v556
      %v655 = vpop.f32.mrf.mxu0
      %v656 = vadd.f32 0.0, %v655
      %v657 = vpop.f32.mrf.mxu0
      %658 = vmatprep.mubr.f32.mxu0 0.0
      %659 = vmatmul.mubr.f32.gmra.mxu0 %v559
      %v660 = vpop.f32.mrf.mxu0
      %v661 = vadd.f32 0.0, %v660
      %v662 = vpop.f32.mrf.mxu0
      %663 = vmatprep.mubr.f32.mxu0 0.0
      %664 = vmatmul.mubr.f32.gmra.mxu0 %v562
      %v665 = vpop.f32.mrf.mxu0
      %v666 = vadd.f32 0.0, %v665
      %v667 = vpop.f32.mrf.mxu0
      %668 = vdwg.mxu0
      %v670 = vsel %vm490, %v519, 0
      %v673 = vsel %vm490, %v520, 0
      %v676 = vsel %vm490, %v521, 0
      %v679 = vsel %vm490, %v522, 0
      %v682 = vsel %vm490, %v523, 0
      %v685 = vsel %vm490, %v524, 0
      %v688 = vsel %vm490, %v525, 0
      %v691 = vsel %vm490, %v526, 0
      %693 = vmatprep.subr.mxu0 0.0
      %694 = vmatpush1.msra.mxu0 0.0
      %695 = vmatprep.subr.mxu0 0.0
      %696 = vmatpush1.msra.mxu0 0.0
      %697 = vmatprep.subr.mxu0 0.0
      %698 = vmatpush1.msra.mxu0 0.0
      %699 = vmatprep.subr.mxu0 0.0
      %700 = vmatpush1.msra.mxu0 0.0
      %701 = vmatprep.subr.mxu0 0.0
      %702 = vmatpush1.msra.mxu0 0.0
      %703 = vmatprep.subr.mxu0 0.0
      %704 = vmatpush1.msra.mxu0 0.0
      %705 = vmatprep.subr.mxu0 0.0
      %706 = vmatpush1.msra.mxu0 0.0
      %707 = vmatprep.subr.mxu0 0.0
      %708 = vmatpush1.msra.mxu0 0.0
      %709 = vmatprep.subr.mxu0 0.0
      %710 = vmatpush1.msra.mxu0 0.0
      %711 = vmatprep.subr.mxu0 0.0
      %712 = vmatpush1.msra.mxu0 0.0
      %713 = vmatprep.subr.mxu0 0.0
      %714 = vmatpush1.msra.mxu0 0.0
      %715 = vmatprep.subr.mxu0 0.0
      %716 = vmatpush1.msra.mxu0 0.0
      %717 = vmatprep.subr.mxu0 0.0
      %718 = vmatpush1.msra.mxu0 0.0
      %719 = vmatprep.subr.mxu0 0.0
      %720 = vmatpush1.msra.mxu0 0.0
      %721 = vmatprep.subr.mxu0 0.0
      %722 = vmatpush1.msra.mxu0 %v528
      %723 = vmatprep.subr.mxu0 0.0
      %724 = vmatpush1.msra.mxu0 %v527
      %725 = vmatprep.subr.mxu0 0.0
      %726 = vmatpush2.msra.mxu0 0.0
      %727 = vmatprep.subr.mxu0 0.0
      %728 = vmatpush2.msra.mxu0 0.0
      %729 = vmatprep.subr.mxu0 0.0
      %730 = vmatpush2.msra.mxu0 0.0
      %731 = vmatprep.subr.mxu0 0.0
      %732 = vmatpush2.msra.mxu0 0.0
      %733 = vmatprep.subr.mxu0 0.0
      %734 = vmatpush2.msra.mxu0 0.0
      %735 = vmatprep.subr.mxu0 0.0
      %736 = vmatpush2.msra.mxu0 0.0
      %737 = vmatprep.subr.mxu0 0.0
      %738 = vmatpush2.msra.mxu0 0.0
      %739 = vmatprep.subr.mxu0 0.0
      %740 = vmatpush2.msra.mxu0 0.0
      %741 = vmatprep.subr.mxu0 0.0
      %742 = vmatpush2.msra.mxu0 0.0
      %743 = vmatprep.subr.mxu0 0.0
      %744 = vmatpush2.msra.mxu0 0.0
      %745 = vmatprep.subr.mxu0 0.0
      %746 = vmatpush2.msra.mxu0 0.0
      %747 = vmatprep.subr.mxu0 0.0
      %748 = vmatpush2.msra.mxu0 0.0
      %749 = vmatprep.subr.mxu0 0.0
      %750 = vmatpush2.msra.mxu0 0.0
      %751 = vmatprep.subr.mxu0 0.0
      %752 = vmatpush2.msra.mxu0 0.0
      %753 = vmatprep.subr.mxu0 0.0
      %754 = vmatpush2.msra.mxu0 0.0
      %755 = vmatprep.subr.mxu0 0.0
      %756 = vmatpush2.msra.mxu0 0.0
      %757 = vmatprep.mubr.f32.mxu0 0.0
      %758 = vmatmul.mubr.f32.gmra.mxu0 %v670
      %v759 = vpop.f32.mrf.mxu0
      %v760 = vadd.f32 %v631, %v759
      %v761 = vpop.f32.mrf.mxu0
      %762 = vmatprep.mubr.f32.mxu0 0.0
      %763 = vmatmul.mubr.f32.gmra.mxu0 %v673
      %v764 = vpop.f32.mrf.mxu0
      %v765 = vadd.f32 %v636, %v764
      %v766 = vpop.f32.mrf.mxu0
      %767 = vmatprep.mubr.f32.mxu0 0.0
      %768 = vmatmul.mubr.f32.gmra.mxu0 %v676
      %v769 = vpop.f32.mrf.mxu0
      %v770 = vadd.f32 %v641, %v769
      %v771 = vpop.f32.mrf.mxu0
      %772 = vmatprep.mubr.f32.mxu0 0.0
      %773 = vmatmul.mubr.f32.gmra.mxu0 %v679
      %v774 = vpop.f32.mrf.mxu0
      %v775 = vadd.f32 %v646, %v774
      %v776 = vpop.f32.mrf.mxu0
      %777 = vmatprep.mubr.f32.mxu0 0.0
      %778 = vmatmul.mubr.f32.gmra.mxu0 %v682
      %v779 = vpop.f32.mrf.mxu0
      %v780 = vadd.f32 %v651, %v779
      %v781 = vpop.f32.mrf.mxu0
      %782 = vmatprep.mubr.f32.mxu0 0.0
      %783 = vmatmul.mubr.f32.gmra.mxu0 %v685
      %v784 = vpop.f32.mrf.mxu0
      %v785 = vadd.f32 %v656, %v784
      %v786 = vpop.f32.mrf.mxu0
      %787 = vmatprep.mubr.f32.mxu0 0.0
      %788 = vmatmul.mubr.f32.gmra.mxu0 %v688
      %v789 = vpop.f32.mrf.mxu0
      %v790 = vadd.f32 %v661, %v789
      %v791 = vpop.f32.mrf.mxu0
      %792 = vmatprep.mubr.f32.mxu0 0.0
      %793 = vmatmul.mubr.f32.gmra.mxu0 %v691
      %v794 = vpop.f32.mrf.mxu0
      %v795 = vadd.f32 %v666, %v794
      %v796 = vpop.f32.mrf.mxu0
      %797 = vdwg.mxu0
      %v798 = vld [vmem:[%s510] sm:$0xff]
      %v799 = vld [vmem:[%s510 + $0x10] sm:$0xff]
      %v800 = vld [vmem:[%s510 + $0x20] sm:$0xff]
      %v801 = vld [vmem:[%s510 + $0x30] sm:$0xff]
      %v802 = vld [vmem:[%s510 + $0x40] sm:$0xff]
      %v803 = vld [vmem:[%s510 + $0x50] sm:$0xff]
      %v804 = vld [vmem:[%s510 + $0x60] sm:$0xff]
      %v805 = vld [vmem:[%s510 + $0x70] sm:$0xff]
      %s806 = scalar_lea.vmem %s3, 32
      %v807 = vld [vmem:[%s806] sm:$0xff]
      %v808 = vld [vmem:[%s806 + $0x8] sm:$0xff]
      %v810 = vsel %vm490, %v798, 0
      %v813 = vsel %vm490, %v799, 0
      %v816 = vsel %vm490, %v800, 0
      %v819 = vsel %vm490, %v801, 0
      %v822 = vsel %vm490, %v802, 0
      %v825 = vsel %vm490, %v803, 0
      %v828 = vsel %vm490, %v804, 0
      %v831 = vsel %vm490, %v805, 0
      %833 = vmatprep.subr.mxu0 0.0
      %834 = vmatpush1.msra.mxu0 0.0
      %835 = vmatprep.subr.mxu0 0.0
      %836 = vmatpush1.msra.mxu0 0.0
      %837 = vmatprep.subr.mxu0 0.0
      %838 = vmatpush1.msra.mxu0 0.0
      %839 = vmatprep.subr.mxu0 0.0
      %840 = vmatpush1.msra.mxu0 0.0
      %841 = vmatprep.subr.mxu0 0.0
      %842 = vmatpush1.msra.mxu0 0.0
      %843 = vmatprep.subr.mxu0 0.0
      %844 = vmatpush1.msra.mxu0 0.0
      %845 = vmatprep.subr.mxu0 0.0
      %846 = vmatpush1.msra.mxu0 0.0
      %847 = vmatprep.subr.mxu0 0.0
      %848 = vmatpush1.msra.mxu0 0.0
      %849 = vmatprep.subr.mxu0 0.0
      %850 = vmatpush1.msra.mxu0 0.0
      %851 = vmatprep.subr.mxu0 0.0
      %852 = vmatpush1.msra.mxu0 0.0
      %853 = vmatprep.subr.mxu0 0.0
      %854 = vmatpush1.msra.mxu0 0.0
      %855 = vmatprep.subr.mxu0 0.0
      %856 = vmatpush1.msra.mxu0 0.0
      %857 = vmatprep.subr.mxu0 0.0
      %858 = vmatpush1.msra.mxu0 0.0
      %859 = vmatprep.subr.mxu0 0.0
      %860 = vmatpush1.msra.mxu0 0.0
      %861 = vmatprep.subr.mxu0 0.0
      %862 = vmatpush1.msra.mxu0 %v808
      %863 = vmatprep.subr.mxu0 0.0
      %864 = vmatpush1.msra.mxu0 %v807
      %865 = vmatprep.subr.mxu0 0.0
      %866 = vmatpush2.msra.mxu0 0.0
      %867 = vmatprep.subr.mxu0 0.0
      %868 = vmatpush2.msra.mxu0 0.0
      %869 = vmatprep.subr.mxu0 0.0
      %870 = vmatpush2.msra.mxu0 0.0
      %871 = vmatprep.subr.mxu0 0.0
      %872 = vmatpush2.msra.mxu0 0.0
      %873 = vmatprep.subr.mxu0 0.0
      %874 = vmatpush2.msra.mxu0 0.0
      %875 = vmatprep.subr.mxu0 0.0
      %876 = vmatpush2.msra.mxu0 0.0
      %877 = vmatprep.subr.mxu0 0.0
      %878 = vmatpush2.msra.mxu0 0.0
      %879 = vmatprep.subr.mxu0 0.0
      %880 = vmatpush2.msra.mxu0 0.0
      %881 = vmatprep.subr.mxu0 0.0
      %882 = vmatpush2.msra.mxu0 0.0
      %883 = vmatprep.subr.mxu0 0.0
      %884 = vmatpush2.msra.mxu0 0.0
      %885 = vmatprep.subr.mxu0 0.0
      %886 = vmatpush2.msra.mxu0 0.0
      %887 = vmatprep.subr.mxu0 0.0
      %888 = vmatpush2.msra.mxu0 0.0
      %889 = vmatprep.subr.mxu0 0.0
      %890 = vmatpush2.msra.mxu0 0.0
      %891 = vmatprep.subr.mxu0 0.0
      %892 = vmatpush2.msra.mxu0 0.0
      %893 = vmatprep.subr.mxu0 0.0
      %894 = vmatpush2.msra.mxu0 0.0
      %895 = vmatprep.subr.mxu0 0.0
      %896 = vmatpush2.msra.mxu0 0.0
      %897 = vmatprep.mubr.f32.mxu0 0.0
      %898 = vmatmul.mubr.f32.gmra.mxu0 %v810
      %v899 = vpop.f32.mrf.mxu0
      %v900 = vadd.f32 0.0, %v899
      %v901 = vpop.f32.mrf.mxu0
      %902 = vmatprep.mubr.f32.mxu0 0.0
      %903 = vmatmul.mubr.f32.gmra.mxu0 %v813
      %v904 = vpop.f32.mrf.mxu0
      %v905 = vadd.f32 0.0, %v904
      %v906 = vpop.f32.mrf.mxu0
      %907 = vmatprep.mubr.f32.mxu0 0.0
      %908 = vmatmul.mubr.f32.gmra.mxu0 %v816
      %v909 = vpop.f32.mrf.mxu0
      %v910 = vadd.f32 0.0, %v909
      %v911 = vpop.f32.mrf.mxu0
      %912 = vmatprep.mubr.f32.mxu0 0.0
      %913 = vmatmul.mubr.f32.gmra.mxu0 %v819
      %v914 = vpop.f32.mrf.mxu0
      %v915 = vadd.f32 0.0, %v914
      %v916 = vpop.f32.mrf.mxu0
      %917 = vmatprep.mubr.f32.mxu0 0.0
      %918 = vmatmul.mubr.f32.gmra.mxu0 %v822
      %v919 = vpop.f32.mrf.mxu0
      %v920 = vadd.f32 0.0, %v919
      %v921 = vpop.f32.mrf.mxu0
      %922 = vmatprep.mubr.f32.mxu0 0.0
      %923 = vmatmul.mubr.f32.gmra.mxu0 %v825
      %v924 = vpop.f32.mrf.mxu0
      %v925 = vadd.f32 0.0, %v924
      %v926 = vpop.f32.mrf.mxu0
      %927 = vmatprep.mubr.f32.mxu0 0.0
      %928 = vmatmul.mubr.f32.gmra.mxu0 %v828
      %v929 = vpop.f32.mrf.mxu0
      %v930 = vadd.f32 0.0, %v929
      %v931 = vpop.f32.mrf.mxu0
      %932 = vmatprep.mubr.f32.mxu0 0.0
      %933 = vmatmul.mubr.f32.gmra.mxu0 %v831
      %v934 = vpop.f32.mrf.mxu0
      %v935 = vadd.f32 0.0, %v934
      %v936 = vpop.f32.mrf.mxu0
      %937 = vdwg.mxu0
      %v938 = vadd.f32 %v760, %v900
      %v939 = vadd.f32 %v765, %v905
      %v940 = vadd.f32 %v770, %v910
      %v941 = vadd.f32 %v775, %v915
      %v942 = vadd.f32 %v780, %v920
      %v943 = vadd.f32 %v785, %v925
      %v944 = vadd.f32 %v790, %v930
      %v945 = vadd.f32 %v795, %v935
      %v946 = vld [vmem:[%s510 + $0x1] sm:$0xff]
      %v947 = vld [vmem:[%s510 + $0x11] sm:$0xff]
      %v948 = vld [vmem:[%s510 + $0x21] sm:$0xff]
      %v949 = vld [vmem:[%s510 + $0x31] sm:$0xff]
      %v950 = vld [vmem:[%s510 + $0x41] sm:$0xff]
      %v951 = vld [vmem:[%s510 + $0x51] sm:$0xff]
      %v952 = vld [vmem:[%s510 + $0x61] sm:$0xff]
      %v953 = vld [vmem:[%s510 + $0x71] sm:$0xff]
      %s954 = scalar_lea.vmem %s3, 48
      %v955 = vld [vmem:[%s954] sm:$0xff]
      %v956 = vld [vmem:[%s954 + $0x8] sm:$0xff]
      %v958 = vsel %vm490, %v946, 0
      %v961 = vsel %vm490, %v947, 0
      %v964 = vsel %vm490, %v948, 0
      %v967 = vsel %vm490, %v949, 0
      %v970 = vsel %vm490, %v950, 0
      %v973 = vsel %vm490, %v951, 0
      %v976 = vsel %vm490, %v952, 0
      %v979 = vsel %vm490, %v953, 0
      %981 = vmatprep.subr.mxu0 0.0
      %982 = vmatpush1.msra.mxu0 0.0
      %983 = vmatprep.subr.mxu0 0.0
      %984 = vmatpush1.msra.mxu0 0.0
      %985 = vmatprep.subr.mxu0 0.0
      %986 = vmatpush1.msra.mxu0 0.0
      %987 = vmatprep.subr.mxu0 0.0
      %988 = vmatpush1.msra.mxu0 0.0
      %989 = vmatprep.subr.mxu0 0.0
      %990 = vmatpush1.msra.mxu0 0.0
      %991 = vmatprep.subr.mxu0 0.0
      %992 = vmatpush1.msra.mxu0 0.0
      %993 = vmatprep.subr.mxu0 0.0
      %994 = vmatpush1.msra.mxu0 0.0
      %995 = vmatprep.subr.mxu0 0.0
      %996 = vmatpush1.msra.mxu0 0.0
      %997 = vmatprep.subr.mxu0 0.0
      %998 = vmatpush1.msra.mxu0 0.0
      %999 = vmatprep.subr.mxu0 0.0
      %1000 = vmatpush1.msra.mxu0 0.0
      %1001 = vmatprep.subr.mxu0 0.0
      %1002 = vmatpush1.msra.mxu0 0.0
      %1003 = vmatprep.subr.mxu0 0.0
      %1004 = vmatpush1.msra.mxu0 0.0
      %1005 = vmatprep.subr.mxu0 0.0
      %1006 = vmatpush1.msra.mxu0 0.0
      %1007 = vmatprep.subr.mxu0 0.0
      %1008 = vmatpush1.msra.mxu0 0.0
      %1009 = vmatprep.subr.mxu0 0.0
      %1010 = vmatpush1.msra.mxu0 %v956
      %1011 = vmatprep.subr.mxu0 0.0
      %1012 = vmatpush1.msra.mxu0 %v955
      %1013 = vmatprep.subr.mxu0 0.0
      %1014 = vmatpush2.msra.mxu0 0.0
      %1015 = vmatprep.subr.mxu0 0.0
      %1016 = vmatpush2.msra.mxu0 0.0
      %1017 = vmatprep.subr.mxu0 0.0
      %1018 = vmatpush2.msra.mxu0 0.0
      %1019 = vmatprep.subr.mxu0 0.0
      %1020 = vmatpush2.msra.mxu0 0.0
      %1021 = vmatprep.subr.mxu0 0.0
      %1022 = vmatpush2.msra.mxu0 0.0
      %1023 = vmatprep.subr.mxu0 0.0
      %1024 = vmatpush2.msra.mxu0 0.0
      %1025 = vmatprep.subr.mxu0 0.0
      %1026 = vmatpush2.msra.mxu0 0.0
      %1027 = vmatprep.subr.mxu0 0.0
      %1028 = vmatpush2.msra.mxu0 0.0
      %1029 = vmatprep.subr.mxu0 0.0
      %1030 = vmatpush2.msra.mxu0 0.0
      %1031 = vmatprep.subr.mxu0 0.0
      %1032 = vmatpush2.msra.mxu0 0.0
      %1033 = vmatprep.subr.mxu0 0.0
      %1034 = vmatpush2.msra.mxu0 0.0
      %1035 = vmatprep.subr.mxu0 0.0
      %1036 = vmatpush2.msra.mxu0 0.0
      %1037 = vmatprep.subr.mxu0 0.0
      %1038 = vmatpush2.msra.mxu0 0.0
      %1039 = vmatprep.subr.mxu0 0.0
      %1040 = vmatpush2.msra.mxu0 0.0
      %1041 = vmatprep.subr.mxu0 0.0
      %1042 = vmatpush2.msra.mxu0 0.0
      %1043 = vmatprep.subr.mxu0 0.0
      %1044 = vmatpush2.msra.mxu0 0.0
      %1045 = vmatprep.mubr.f32.mxu0 0.0
      %1046 = vmatmul.mubr.f32.gmra.mxu0 %v958
      %v1047 = vpop.f32.mrf.mxu0
      %v1048 = vadd.f32 0.0, %v1047
      %v1049 = vpop.f32.mrf.mxu0
      %1050 = vmatprep.mubr.f32.mxu0 0.0
      %1051 = vmatmul.mubr.f32.gmra.mxu0 %v961
      %v1052 = vpop.f32.mrf.mxu0
      %v1053 = vadd.f32 0.0, %v1052
      %v1054 = vpop.f32.mrf.mxu0
      %1055 = vmatprep.mubr.f32.mxu0 0.0
      %1056 = vmatmul.mubr.f32.gmra.mxu0 %v964
      %v1057 = vpop.f32.mrf.mxu0
      %v1058 = vadd.f32 0.0, %v1057
      %v1059 = vpop.f32.mrf.mxu0
      %1060 = vmatprep.mubr.f32.mxu0 0.0
      %1061 = vmatmul.mubr.f32.gmra.mxu0 %v967
      %v1062 = vpop.f32.mrf.mxu0
      %v1063 = vadd.f32 0.0, %v1062
      %v1064 = vpop.f32.mrf.mxu0
      %1065 = vmatprep.mubr.f32.mxu0 0.0
      %1066 = vmatmul.mubr.f32.gmra.mxu0 %v970
      %v1067 = vpop.f32.mrf.mxu0
      %v1068 = vadd.f32 0.0, %v1067
      %v1069 = vpop.f32.mrf.mxu0
      %1070 = vmatprep.mubr.f32.mxu0 0.0
      %1071 = vmatmul.mubr.f32.gmra.mxu0 %v973
      %v1072 = vpop.f32.mrf.mxu0
      %v1073 = vadd.f32 0.0, %v1072
      %v1074 = vpop.f32.mrf.mxu0
      %1075 = vmatprep.mubr.f32.mxu0 0.0
      %1076 = vmatmul.mubr.f32.gmra.mxu0 %v976
      %v1077 = vpop.f32.mrf.mxu0
      %v1078 = vadd.f32 0.0, %v1077
      %v1079 = vpop.f32.mrf.mxu0
      %1080 = vmatprep.mubr.f32.mxu0 0.0
      %1081 = vmatmul.mubr.f32.gmra.mxu0 %v979
      %v1082 = vpop.f32.mrf.mxu0
      %v1083 = vadd.f32 0.0, %v1082
      %v1084 = vpop.f32.mrf.mxu0
      %1085 = vdwg.mxu0
      %v1086 = vadd.f32 %v938, %v1048
      %v1087 = vadd.f32 %v939, %v1053
      %v1088 = vadd.f32 %v940, %v1058
      %v1089 = vadd.f32 %v941, %v1063
      %v1090 = vadd.f32 %v942, %v1068
      %v1091 = vadd.f32 %v943, %v1073
      %v1092 = vadd.f32 %v944, %v1078
      %v1093 = vadd.f32 %v945, %v1083
      %v1094 = vld [vmem:[%s4] sm:$0x1]
      %v1096 = vlaneseq
      %v1097 = vshrl.u32 %v1096, 7
      %v1098 = vsub.s32 0, %v1097
      %v1099 = vrot.slane %v1094, %v1098
      %v1101 = vadd.f32 %v1086, %v1099
      %v1102 = vadd.f32 %v1087, %v1099
      %v1103 = vadd.f32 %v1088, %v1099
      %v1104 = vadd.f32 %v1089, %v1099
      %v1105 = vadd.f32 %v1090, %v1099
      %v1106 = vadd.f32 %v1091, %v1099
      %v1107 = vadd.f32 %v1092, %v1099
      %v1108 = vadd.f32 %v1093, %v1099
      %v1109 = vmax.f32 %v1101, 0.0
      %v1110 = vmax.f32 %v1102, 0.0
      %v1111 = vmax.f32 %v1103, 0.0
      %v1112 = vmax.f32 %v1104, 0.0
      %v1113 = vmax.f32 %v1105, 0.0
      %v1114 = vmax.f32 %v1106, 0.0
      %v1115 = vmax.f32 %v1107, 0.0
      %v1116 = vmax.f32 %v1108, 0.0
      %v1117 = vld [vmem:[%s5] sm:$0xf]
      %v1118 = vld [vmem:[%s6] sm:$0x1]
      %v1120 = vlaneseq
      %v1121 = vshrl.u32 %v1120, 7
      %v1122 = vsub.s32 0, %v1121
      %v1123 = vrot.slane %v1118, %v1122
      %vm1125 = vcmask 31744
      %v1127 = vsel %vm1125, %v1109, 0
      %v1130 = vsel %vm1125, %v1110, 0
      %v1133 = vsel %vm1125, %v1111, 0
      %v1136 = vsel %vm1125, %v1112, 0
      %v1139 = vsel %vm1125, %v1113, 0
      %v1142 = vsel %vm1125, %v1114, 0
      %v1145 = vsel %vm1125, %v1115, 0
      %v1148 = vsel %vm1125, %v1116, 0
      %vm1150 = vcmask 1043456
      %v1152 = vsel %vm1150, %v1117, 0
      %1154 = vmatprep.subr.mxu0 0.0
      %1155 = vmatpush1.msra.mxu0 0.0
      %1156 = vmatprep.subr.mxu0 0.0
      %1157 = vmatpush1.msra.mxu0 0.0
      %1158 = vmatprep.subr.mxu0 0.0
      %1159 = vmatpush1.msra.mxu0 0.0
      %1160 = vmatprep.subr.mxu0 0.0
      %1161 = vmatpush1.msra.mxu0 0.0
      %1162 = vmatprep.subr.mxu0 0.0
      %1163 = vmatpush1.msra.mxu0 0.0
      %1164 = vmatprep.subr.mxu0 0.0
      %1165 = vmatpush1.msra.mxu0 0.0
      %1166 = vmatprep.subr.mxu0 0.0
      %1167 = vmatpush1.msra.mxu0 0.0
      %1168 = vmatprep.subr.mxu0 0.0
      %1169 = vmatpush1.msra.mxu0 0.0
      %1170 = vmatprep.subr.mxu0 0.0
      %1171 = vmatpush1.msra.mxu0 0.0
      %1172 = vmatprep.subr.mxu0 0.0
      %1173 = vmatpush1.msra.mxu0 0.0
      %1174 = vmatprep.subr.mxu0 0.0
      %1175 = vmatpush1.msra.mxu0 0.0
      %1176 = vmatprep.subr.mxu0 0.0
      %1177 = vmatpush1.msra.mxu0 0.0
      %1178 = vmatprep.subr.mxu0 0.0
      %1179 = vmatpush1.msra.mxu0 0.0
      %1180 = vmatprep.subr.mxu0 0.0
      %1181 = vmatpush1.msra.mxu0 0.0
      %1182 = vmatprep.subr.mxu0 0.0
      %1183 = vmatpush1.msra.mxu0 0.0
      %1184 = vmatprep.subr.mxu0 0.0
      %1185 = vmatpush1.msra.mxu0 %v1152
      %1186 = vmatprep.subr.mxu0 0.0
      %1187 = vmatpush2.msra.mxu0 0.0
      %1188 = vmatprep.subr.mxu0 0.0
      %1189 = vmatpush2.msra.mxu0 0.0
      %1190 = vmatprep.subr.mxu0 0.0
      %1191 = vmatpush2.msra.mxu0 0.0
      %1192 = vmatprep.subr.mxu0 0.0
      %1193 = vmatpush2.msra.mxu0 0.0
      %1194 = vmatprep.subr.mxu0 0.0
      %1195 = vmatpush2.msra.mxu0 0.0
      %1196 = vmatprep.subr.mxu0 0.0
      %1197 = vmatpush2.msra.mxu0 0.0
      %1198 = vmatprep.subr.mxu0 0.0
      %1199 = vmatpush2.msra.mxu0 0.0
      %1200 = vmatprep.subr.mxu0 0.0
      %1201 = vmatpush2.msra.mxu0 0.0
      %1202 = vmatprep.subr.mxu0 0.0
      %1203 = vmatpush2.msra.mxu0 0.0
      %1204 = vmatprep.subr.mxu0 0.0
      %1205 = vmatpush2.msra.mxu0 0.0
      %1206 = vmatprep.subr.mxu0 0.0
      %1207 = vmatpush2.msra.mxu0 0.0
      %1208 = vmatprep.subr.mxu0 0.0
      %1209 = vmatpush2.msra.mxu0 0.0
      %1210 = vmatprep.subr.mxu0 0.0
      %1211 = vmatpush2.msra.mxu0 0.0
      %1212 = vmatprep.subr.mxu0 0.0
      %1213 = vmatpush2.msra.mxu0 0.0
      %1214 = vmatprep.subr.mxu0 0.0
      %1215 = vmatpush2.msra.mxu0 0.0
      %1216 = vmatprep.subr.mxu0 0.0
      %1217 = vmatpush2.msra.mxu0 0.0
      %1218 = vmatprep.mubr.f32.mxu0 0.0
      %1219 = vmatmul.mubr.f32.gmra.mxu0 %v1127
      %v1220 = vpop.f32.mrf.mxu0
      %v1221 = vadd.f32 %v1123, %v1220
      %v1222 = vpop.f32.mrf.mxu0
      %1223 = vmatprep.mubr.f32.mxu0 0.0
      %1224 = vmatmul.mubr.f32.gmra.mxu0 %v1130
      %v1225 = vpop.f32.mrf.mxu0
      %v1226 = vadd.f32 %v1123, %v1225
      %v1227 = vpop.f32.mrf.mxu0
      %1228 = vmatprep.mubr.f32.mxu0 0.0
      %1229 = vmatmul.mubr.f32.gmra.mxu0 %v1133
      %v1230 = vpop.f32.mrf.mxu0
      %v1231 = vadd.f32 %v1123, %v1230
      %v1232 = vpop.f32.mrf.mxu0
      %1233 = vmatprep.mubr.f32.mxu0 0.0
      %1234 = vmatmul.mubr.f32.gmra.mxu0 %v1136
      %v1235 = vpop.f32.mrf.mxu0
      %v1236 = vadd.f32 %v1123, %v1235
      %v1237 = vpop.f32.mrf.mxu0
      %1238 = vmatprep.mubr.f32.mxu0 0.0
      %1239 = vmatmul.mubr.f32.gmra.mxu0 %v1139
      %v1240 = vpop.f32.mrf.mxu0
      %v1241 = vadd.f32 %v1123, %v1240
      %v1242 = vpop.f32.mrf.mxu0
      %1243 = vmatprep.mubr.f32.mxu0 0.0
      %1244 = vmatmul.mubr.f32.gmra.mxu0 %v1142
      %v1245 = vpop.f32.mrf.mxu0
      %v1246 = vadd.f32 %v1123, %v1245
      %v1247 = vpop.f32.mrf.mxu0
      %1248 = vmatprep.mubr.f32.mxu0 0.0
      %1249 = vmatmul.mubr.f32.gmra.mxu0 %v1145
      %v1250 = vpop.f32.mrf.mxu0
      %v1251 = vadd.f32 %v1123, %v1250
      %v1252 = vpop.f32.mrf.mxu0
      %1253 = vmatprep.mubr.f32.mxu0 0.0
      %1254 = vmatmul.mubr.f32.gmra.mxu0 %v1148
      %v1255 = vpop.f32.mrf.mxu0
      %v1256 = vadd.f32 %v1123, %v1255
      %v1257 = vpop.f32.mrf.mxu0
      %1258 = vdwg.mxu0
      %v1259 = vmax.f32 %v1221, 0.0
      %v1260 = vmax.f32 %v1226, 0.0
      %v1261 = vmax.f32 %v1231, 0.0
      %v1262 = vmax.f32 %v1236, 0.0
      %v1263 = vmax.f32 %v1241, 0.0
      %v1264 = vmax.f32 %v1246, 0.0
      %v1265 = vmax.f32 %v1251, 0.0
      %v1266 = vmax.f32 %v1256, 0.0
      %1267 = vrot.lane.b32.xlu0 %v333, 120
      %v1268 = vpop.permute.xlu0 %1267
      %1269 = vrot.lane.b32.xlu0 %v334, 120
      %v1270 = vpop.permute.xlu0 %1269
      %1271 = vrot.lane.b32.xlu0 %v335, 120
      %v1272 = vpop.permute.xlu0 %1271
      %1273 = vrot.lane.b32.xlu0 %v336, 120
      %v1274 = vpop.permute.xlu0 %1273
      %1275 = vrot.lane.b32.xlu0 %v337, 120
      %v1276 = vpop.permute.xlu0 %1275
      %1277 = vrot.lane.b32.xlu0 %v338, 120
      %v1278 = vpop.permute.xlu0 %1277
      %1279 = vrot.lane.b32.xlu0 %v339, 120
      %v1280 = vpop.permute.xlu0 %1279
      %1281 = vrot.lane.b32.xlu0 %v340, 120
      %v1282 = vpop.permute.xlu0 %1281
      %v1291 = vmax.f32 %v333, %v1268
      %v1292 = vmax.f32 %v334, %v1270
      %v1293 = vmax.f32 %v335, %v1272
      %v1294 = vmax.f32 %v336, %v1274
      %v1295 = vmax.f32 %v337, %v1276
      %v1296 = vmax.f32 %v338, %v1278
      %v1297 = vmax.f32 %v339, %v1280
      %v1298 = vmax.f32 %v340, %v1282
      %1307 = vrot.lane.b32.xlu0 %v1291, 112
      %v1308 = vpop.permute.xlu0 %1307
      %1309 = vrot.lane.b32.xlu0 %v1292, 112
      %v1310 = vpop.permute.xlu0 %1309
      %1311 = vrot.lane.b32.xlu0 %v1293, 112
      %v1312 = vpop.permute.xlu0 %1311
      %1313 = vrot.lane.b32.xlu0 %v1294, 112
      %v1314 = vpop.permute.xlu0 %1313
      %1315 = vrot.lane.b32.xlu0 %v1295, 112
      %v1316 = vpop.permute.xlu0 %1315
      %1317 = vrot.lane.b32.xlu0 %v1296, 112
      %v1318 = vpop.permute.xlu0 %1317
      %1319 = vrot.lane.b32.xlu0 %v1297, 112
      %v1320 = vpop.permute.xlu0 %1319
      %1321 = vrot.lane.b32.xlu0 %v1298, 112
      %v1322 = vpop.permute.xlu0 %1321
      %v1331 = vmax.f32 %v1291, %v1308
      %v1332 = vmax.f32 %v1292, %v1310
      %v1333 = vmax.f32 %v1293, %v1312
      %v1334 = vmax.f32 %v1294, %v1314
      %v1335 = vmax.f32 %v1295, %v1316
      %v1336 = vmax.f32 %v1296, %v1318
      %v1337 = vmax.f32 %v1297, %v1320
      %v1338 = vmax.f32 %v1298, %v1322
      %v1339 = vld [vmem:[%s7] sm:$0xff]
      %v1340 = vld [vmem:[%s8] sm:$0x1]
      %v1342 = vlaneseq
      %v1343 = vshrl.u32 %v1342, 7
      %v1344 = vsub.s32 0, %v1343
      %v1345 = vrot.slane %v1340, %v1344
      %vm1347 = vcmask 64512
      %v1349 = vsel %vm1347, %v1331, 0
      %v1352 = vsel %vm1347, %v1332, 0
      %v1355 = vsel %vm1347, %v1333, 0
      %v1358 = vsel %vm1347, %v1334, 0
      %v1361 = vsel %vm1347, %v1335, 0
      %v1364 = vsel %vm1347, %v1336, 0
      %v1367 = vsel %vm1347, %v1337, 0
      %v1370 = vsel %vm1347, %v1338, 0
      %1372 = vmatprep.subr.mxu0 0.0
      %1373 = vmatpush1.msra.mxu0 0.0
      %1374 = vmatprep.subr.mxu0 0.0
      %1375 = vmatpush1.msra.mxu0 0.0
      %1376 = vmatprep.subr.mxu0 0.0
      %1377 = vmatpush1.msra.mxu0 0.0
      %1378 = vmatprep.subr.mxu0 0.0
      %1379 = vmatpush1.msra.mxu0 0.0
      %1380 = vmatprep.subr.mxu0 0.0
      %1381 = vmatpush1.msra.mxu0 0.0
      %1382 = vmatprep.subr.mxu0 0.0
      %1383 = vmatpush1.msra.mxu0 0.0
      %1384 = vmatprep.subr.mxu0 0.0
      %1385 = vmatpush1.msra.mxu0 0.0
      %1386 = vmatprep.subr.mxu0 0.0
      %1387 = vmatpush1.msra.mxu0 0.0
      %1388 = vmatprep.subr.mxu0 0.0
      %1389 = vmatpush1.msra.mxu0 0.0
      %1390 = vmatprep.subr.mxu0 0.0
      %1391 = vmatpush1.msra.mxu0 0.0
      %1392 = vmatprep.subr.mxu0 0.0
      %1393 = vmatpush1.msra.mxu0 0.0
      %1394 = vmatprep.subr.mxu0 0.0
      %1395 = vmatpush1.msra.mxu0 0.0
      %1396 = vmatprep.subr.mxu0 0.0
      %1397 = vmatpush1.msra.mxu0 0.0
      %1398 = vmatprep.subr.mxu0 0.0
      %1399 = vmatpush1.msra.mxu0 0.0
      %1400 = vmatprep.subr.mxu0 0.0
      %1401 = vmatpush1.msra.mxu0 0.0
      %1402 = vmatprep.subr.mxu0 0.0
      %1403 = vmatpush1.msra.mxu0 %v1339
      %1404 = vmatprep.subr.mxu0 0.0
      %1405 = vmatpush2.msra.mxu0 0.0
      %1406 = vmatprep.subr.mxu0 0.0
      %1407 = vmatpush2.msra.mxu0 0.0
      %1408 = vmatprep.subr.mxu0 0.0
      %1409 = vmatpush2.msra.mxu0 0.0
      %1410 = vmatprep.subr.mxu0 0.0
      %1411 = vmatpush2.msra.mxu0 0.0
      %1412 = vmatprep.subr.mxu0 0.0
      %1413 = vmatpush2.msra.mxu0 0.0
      %1414 = vmatprep.subr.mxu0 0.0
      %1415 = vmatpush2.msra.mxu0 0.0
      %1416 = vmatprep.subr.mxu0 0.0
      %1417 = vmatpush2.msra.mxu0 0.0
      %1418 = vmatprep.subr.mxu0 0.0
      %1419 = vmatpush2.msra.mxu0 0.0
      %1420 = vmatprep.subr.mxu0 0.0
      %1421 = vmatpush2.msra.mxu0 0.0
      %1422 = vmatprep.subr.mxu0 0.0
      %1423 = vmatpush2.msra.mxu0 0.0
      %1424 = vmatprep.subr.mxu0 0.0
      %1425 = vmatpush2.msra.mxu0 0.0
      %1426 = vmatprep.subr.mxu0 0.0
      %1427 = vmatpush2.msra.mxu0 0.0
      %1428 = vmatprep.subr.mxu0 0.0
      %1429 = vmatpush2.msra.mxu0 0.0
      %1430 = vmatprep.subr.mxu0 0.0
      %1431 = vmatpush2.msra.mxu0 0.0
      %1432 = vmatprep.subr.mxu0 0.0
      %1433 = vmatpush2.msra.mxu0 0.0
      %1434 = vmatprep.subr.mxu0 0.0
      %1435 = vmatpush2.msra.mxu0 0.0
      %1436 = vmatprep.mubr.f32.mxu0 0.0
      %1437 = vmatmul.mubr.f32.gmra.mxu0 %v1349
      %v1438 = vpop.f32.mrf.mxu0
      %v1439 = vadd.f32 %v1345, %v1438
      %v1440 = vpop.f32.mrf.mxu0
      %1441 = vmatprep.mubr.f32.mxu0 0.0
      %1442 = vmatmul.mubr.f32.gmra.mxu0 %v1352
      %v1443 = vpop.f32.mrf.mxu0
      %v1444 = vadd.f32 %v1345, %v1443
      %v1445 = vpop.f32.mrf.mxu0
      %1446 = vmatprep.mubr.f32.mxu0 0.0
      %1447 = vmatmul.mubr.f32.gmra.mxu0 %v1355
      %v1448 = vpop.f32.mrf.mxu0
      %v1449 = vadd.f32 %v1345, %v1448
      %v1450 = vpop.f32.mrf.mxu0
      %1451 = vmatprep.mubr.f32.mxu0 0.0
      %1452 = vmatmul.mubr.f32.gmra.mxu0 %v1358
      %v1453 = vpop.f32.mrf.mxu0
      %v1454 = vadd.f32 %v1345, %v1453
      %v1455 = vpop.f32.mrf.mxu0
      %1456 = vmatprep.mubr.f32.mxu0 0.0
      %1457 = vmatmul.mubr.f32.gmra.mxu0 %v1361
      %v1458 = vpop.f32.mrf.mxu0
      %v1459 = vadd.f32 %v1345, %v1458
      %v1460 = vpop.f32.mrf.mxu0
      %1461 = vmatprep.mubr.f32.mxu0 0.0
      %1462 = vmatmul.mubr.f32.gmra.mxu0 %v1364
      %v1463 = vpop.f32.mrf.mxu0
      %v1464 = vadd.f32 %v1345, %v1463
      %v1465 = vpop.f32.mrf.mxu0
      %1466 = vmatprep.mubr.f32.mxu0 0.0
      %1467 = vmatmul.mubr.f32.gmra.mxu0 %v1367
      %v1468 = vpop.f32.mrf.mxu0
      %v1469 = vadd.f32 %v1345, %v1468
      %v1470 = vpop.f32.mrf.mxu0
      %1471 = vmatprep.mubr.f32.mxu0 0.0
      %1472 = vmatmul.mubr.f32.gmra.mxu0 %v1370
      %v1473 = vpop.f32.mrf.mxu0
      %v1474 = vadd.f32 %v1345, %v1473
      %v1475 = vpop.f32.mrf.mxu0
      %1476 = vdwg.mxu0
      %v1477 = vadd.f32 %v1259, %v1439
      %v1478 = vadd.f32 %v1260, %v1444
      %v1479 = vadd.f32 %v1261, %v1449
      %v1480 = vadd.f32 %v1262, %v1454
      %v1481 = vadd.f32 %v1263, %v1459
      %v1482 = vadd.f32 %v1264, %v1464
      %v1483 = vadd.f32 %v1265, %v1469
      %v1484 = vadd.f32 %v1266, %v1474
      %1485 = vst.msk [vmem:[%s332] sm:$0xff] %vm490, %v1477
      %1486 = vst.msk [vmem:[%s332 + $0x8] sm:$0xff] %vm490, %v1478
      %1487 = vst.msk [vmem:[%s332 + $0x10] sm:$0xff] %vm490, %v1479
      %1488 = vst.msk [vmem:[%s332 + $0x18] sm:$0xff] %vm490, %v1480
      %1489 = vst.msk [vmem:[%s332 + $0x20] sm:$0xff] %vm490, %v1481
      %1490 = vst.msk [vmem:[%s332 + $0x28] sm:$0xff] %vm490, %v1482
      %1491 = vst.msk [vmem:[%s332 + $0x30] sm:$0xff] %vm490, %v1483
      %1492 = vst.msk [vmem:[%s332 + $0x38] sm:$0xff] %vm490, %v1484
      %p1493 = scmp.lt.s32.totalorder %s20, 1
      %s1494 = scalar_select %p1493, %s20, 1
      %s1495 = smul.addr %s1494, 8
      %s1496 = smul.addr %s1495, 8
      %s1497 = scalar_lea.vmem %s9, %s1496
      // Predicated region
      $region57: #{distribution_encoder_forward.4} parent=55 // pred_check
        %p1498 = pneg %p232
      $region58: #{distribution_encoder_forward.4} parent=55 // pred_check_branch
        %1500 = sbr.rel (%p1498) target = $region60
      $region59: #{distribution_encoder_forward.4} parent=55 // pred_region
        _
      $region60: #{distribution_encoder_forward.4} parent=55 // pred_fallthru
        _
    $region56: #{distribution_encoder_forward.4} parent=5 // pred_fallthru
      _
    %p1501 = scmp.le.s32.totalorder 2, %s15
    // Predicated region
    $region61: #{distribution_encoder_forward.4} parent=5 // pred_check
      %p1502 = pneg %p1501
    $region62: #{distribution_encoder_forward.4} parent=5 // pred_check_branch
      %1504 = sbr.rel (%p1502) target = $region64
    $region63: #{distribution_encoder_forward.4} parent=5 // pred_region
      %s1505 = ssub.s32 %s15, 2
      // Predicated region
      $region65: #{distribution_encoder_forward.4} parent=63 // pred_check
        %p1506 = pneg %p238
      $region66: #{distribution_encoder_forward.4} parent=63 // pred_check_branch
        %1508 = sbr.rel (%p1506) target = $region68
      $region67: #{distribution_encoder_forward.4} parent=63 // pred_region
        %p1509 = scmp.lt.s32.totalorder %s21, 1
        %s1510 = scalar_select %p1509, %s21, 1
        %s1511 = smul.addr %s1510, 8
        %s1512 = smul.addr %s1511, 8
        %s1513 = scalar_lea.vmem %s9, %s1512
      $region68: #{distribution_encoder_forward.4} parent=63 // pred_fallthru
        _
    $region64: #{distribution_encoder_forward.4} parent=5 // pred_fallthru
      _
  $region6: #{distribution_encoder_forward.4} parent=0 // loop_footer
    %s19 = sadd.s32 1, %s15
  $region7: #{distribution_encoder_forward.4} parent=0 // loop_footer_branch
    %14 = sbr.rel target = $region3
  $region8: #{distribution_encoder_forward.4} parent=0 // loop_exit
    _

// kernel: distribution_encoder_forward.6
$region0: #{distribution_encoder_forward.6}
  #allocation0 [shape = 'u32[]', space=smem, size = 0x4, offset = 0x4, fixed_abs, tag = 'smem constant byte address 0x4 - core index']
  #allocation1 [shape = 'u32[144,128]{1,0:T(1,128)}', space=vmem, size = 0x12000, scoped, tag = 'internal scratch']
  #allocation2 [shape = 'f32[3,3,32]{2,1,0:T(4,128)}', space=vmem, size = 0x1800, scoped, tag = 'scratch operand']
  %s0 = inlined_call_operand.vmem [shape: f32[2,2,2,64], index: 0, kind: input, shape index: {}]
  %s1 = inlined_call_operand.vmem [shape: f32[64,32], index: 1, kind: input, shape index: {}]
  %s2 = inlined_call_operand.vmem [shape: f32[1,32], index: 2, kind: input, shape index: {}]
  %s3 = inlined_call_operand.vmem [shape: f32[4,32,8], index: 3, kind: input, shape index: {}]
  %s4 = inlined_call_operand.vmem [shape: f32[1,8], index: 4, kind: input, shape index: {}]
  %s5 = inlined_call_operand.vmem [shape: f32[8,16], index: 5, kind: input, shape index: {}]
  %s6 = inlined_call_operand.vmem [shape: f32[1,16], index: 6, kind: input, shape index: {}]
  %s7 = inlined_call_operand.vmem [shape: f32[16,16], index: 7, kind: input, shape index: {}]
  %s8 = inlined_call_operand.vmem [shape: f32[1,16], index: 8, kind: input, shape index: {}]
  %s9 = inlined_call_operand.vmem [shape: f32[2,2,2,16], index: 9, kind: output, shape index: {}]
  %s10 = sld [smem:[#allocation0]]
  $region69: #{distribution_encoder_forward.6} parent=0
    _
  %s12 = ssub.s32 1, %s10
  %s13 = scalar_select 0, %s12, %s10
  loop: start=0, step=1, limit=4
  $region2: #{distribution_encoder_forward.6} parent=0 // loop_pre_header
    _
  $region3: #{distribution_encoder_forward.6} parent=0 // loop_header
    %s15 = sphi 0, %s19
    %p16 = scmp.ge.s32.totalorder %s15, 4
    %s25 = sphi 0, %s27
    %s28 = sphi 0, %s25
    %s29 = sphi 0, %s28
    %s45 = sphi 0, %s29
    %s49 = sphi 0, %s49
    %s51 = sphi 0, %s49
    %s52 = sphi 0, %s51
    %s66 = sphi 0, %s52
    %s70 = sphi 0, %s70
    %s72 = sphi 0, %s70
    %s73 = sphi 0, %s72
    %s87 = sphi 0, %s73
    %s91 = sphi 0, %s91
    %s93 = sphi 0, %s91
    %s94 = sphi 0, %s93
    %s108 = sphi 0, %s94
    %s112 = sphi 0, %s112
    %s114 = sphi 0, %s112
    %s115 = sphi 0, %s114
    %s129 = sphi 0, %s115
    %s133 = sphi 0, %s133
    %s135 = sphi 0, %s133
    %s136 = sphi 0, %s135
    %s150 = sphi 0, %s136
    %s154 = sphi 0, %s154
    %s156 = sphi 0, %s154
    %s157 = sphi 0, %s156
    %s171 = sphi 0, %s157
    %s175 = sphi 0, %s175
    %s177 = sphi 0, %s175
    %s178 = sphi 0, %s177
    %s192 = sphi 0, %s178
    %s196 = sphi 0, %s196
    %s198 = sphi 0, %s196
    %s199 = sphi 0, %s198
    %s213 = sphi 0, %s199
    %s219 = sphi 0, %s221
    %s222 = sphi 0, %s219
    %s223 = sphi 0, %s222
    %s239 = sphi 0, %s223
  $region4: #{distribution_encoder_forward.6} parent=0 // loop_header_branch
    %18 = sbr.rel (%p16) target = $region8
  $region5: #{distribution_encoder_forward.6} parent=0 // loop_body
    %s20 = ssub.s32 %s15, 1
    %s21 = ssub.s32 %s15, 2
    %s22 = sadd.s32 %s15, 1
    %s23 = ssub.s32 %s15, %s22
    %p24 = scmp.eq.s32.totalorder %s23, 0
    %s26 = sadd.s32 %s25, 1
    %s27 = scalar_select %p24, %s25, %s26
    %p30 = pneg %p24
    %p31 = scmp.eq.s32.totalorder %s15, 1
    %p32 = por %p30, %p31
    %p33 = scmp.ne.s32.totalorder %s25, %s28
    %p34 = scmp.eq.s32.totalorder %s15, 0
    %p35 = por %p33, %p34
    %p36 = scmp.ne.s32.totalorder %s25, %s28
    %p37 = scmp.eq.s32.totalorder %s20, 1
    %p38 = por %p36, %p37
    %p39 = scmp.ne.s32.totalorder %s28, %s29
    %p40 = scmp.eq.s32.totalorder %s20, 0
    %p41 = por %p39, %p40
    %p42 = scmp.ne.s32.totalorder %s28, %s29
    %p43 = scmp.eq.s32.totalorder %s21, 1
    %p44 = por %p42, %p43
    %p46 = scmp.ne.s32.totalorder %s29, %s45
    %p47 = scmp.eq.s32.totalorder %s21, 0
    %p48 = por %p46, %p47
    %s50 = sadd.s32 %s49, 1
    %p53 = scmp.eq.s32.totalorder %s15, 1
    %p54 = scmp.ne.s32.totalorder %s49, %s51
    %p55 = scmp.eq.s32.totalorder %s15, 0
    %p56 = por %p54, %p55
    %p57 = scmp.ne.s32.totalorder %s49, %s51
    %p58 = scmp.eq.s32.totalorder %s20, 1
    %p59 = por %p57, %p58
    %p60 = scmp.ne.s32.totalorder %s51, %s52
    %p61 = scmp.eq.s32.totalorder %s20, 0
    %p62 = por %p60, %p61
    %p63 = scmp.ne.s32.totalorder %s51, %s52
    %p64 = scmp.eq.s32.totalorder %s21, 1
    %p65 = por %p63, %p64
    %p67 = scmp.ne.s32.totalorder %s52, %s66
    %p68 = scmp.eq.s32.totalorder %s21, 0
    %p69 = por %p67, %p68
    %s71 = sadd.s32 %s70, 1
    %p74 = scmp.eq.s32.totalorder %s15, 1
    %p75 = scmp.ne.s32.totalorder %s70, %s72
    %p76 = scmp.eq.s32.totalorder %s15, 0
    %p77 = por %p75, %p76
    %p78 = scmp.ne.s32.totalorder %s70, %s72
    %p79 = scmp.eq.s32.totalorder %s20, 1
    %p80 = por %p78, %p79
    %p81 = scmp.ne.s32.totalorder %s72, %s73
    %p82 = scmp.eq.s32.totalorder %s20, 0
    %p83 = por %p81, %p82
    %p84 = scmp.ne.s32.totalorder %s72, %s73
    %p85 = scmp.eq.s32.totalorder %s21, 1
    %p86 = por %p84, %p85
    %p88 = scmp.ne.s32.totalorder %s73, %s87
    %p89 = scmp.eq.s32.totalorder %s21, 0
    %p90 = por %p88, %p89
    %s92 = sadd.s32 %s91, 1
    %p95 = scmp.eq.s32.totalorder %s15, 1
    %p96 = scmp.ne.s32.totalorder %s91, %s93
    %p97 = scmp.eq.s32.totalorder %s15, 0
    %p98 = por %p96, %p97
    %p99 = scmp.ne.s32.totalorder %s91, %s93
    %p100 = scmp.eq.s32.totalorder %s20, 1
    %p101 = por %p99, %p100
    %p102 = scmp.ne.s32.totalorder %s93, %s94
    %p103 = scmp.eq.s32.totalorder %s20, 0
    %p104 = por %p102, %p103
    %p105 = scmp.ne.s32.totalorder %s93, %s94
    %p106 = scmp.eq.s32.totalorder %s21, 1
    %p107 = por %p105, %p106
    %p109 = scmp.ne.s32.totalorder %s94, %s108
    %p110 = scmp.eq.s32.totalorder %s21, 0
    %p111 = por %p109, %p110
    %s113 = sadd.s32 %s112, 1
    %p116 = scmp.eq.s32.totalorder %s15, 1
    %p117 = scmp.ne.s32.totalorder %s112, %s114
    %p118 = scmp.eq.s32.totalorder %s15, 0
    %p119 = por %p117, %p118
    %p120 = scmp.ne.s32.totalorder %s112, %s114
    %p121 = scmp.eq.s32.totalorder %s20, 1
    %p122 = por %p120, %p121
    %p123 = scmp.ne.s32.totalorder %s114, %s115
    %p124 = scmp.eq.s32.totalorder %s20, 0
    %p125 = por %p123, %p124
    %p126 = scmp.ne.s32.totalorder %s114, %s115
    %p127 = scmp.eq.s32.totalorder %s21, 1
    %p128 = por %p126, %p127
    %p130 = scmp.ne.s32.totalorder %s115, %s129
    %p131 = scmp.eq.s32.totalorder %s21, 0
    %p132 = por %p130, %p131
    %s134 = sadd.s32 %s133, 1
    %p137 = scmp.eq.s32.totalorder %s15, 1
    %p138 = scmp.ne.s32.totalorder %s133, %s135
    %p139 = scmp.eq.s32.totalorder %s15, 0
    %p140 = por %p138, %p139
    %p141 = scmp.ne.s32.totalorder %s133, %s135
    %p142 = scmp.eq.s32.totalorder %s20, 1
    %p143 = por %p141, %p142
    %p144 = scmp.ne.s32.totalorder %s135, %s136
    %p145 = scmp.eq.s32.totalorder %s20, 0
    %p146 = por %p144, %p145
    %p147 = scmp.ne.s32.totalorder %s135, %s136
    %p148 = scmp.eq.s32.totalorder %s21, 1
    %p149 = por %p147, %p148
    %p151 = scmp.ne.s32.totalorder %s136, %s150
    %p152 = scmp.eq.s32.totalorder %s21, 0
    %p153 = por %p151, %p152
    %s155 = sadd.s32 %s154, 1
    %p158 = scmp.eq.s32.totalorder %s15, 1
    %p159 = scmp.ne.s32.totalorder %s154, %s156
    %p160 = scmp.eq.s32.totalorder %s15, 0
    %p161 = por %p159, %p160
    %p162 = scmp.ne.s32.totalorder %s154, %s156
    %p163 = scmp.eq.s32.totalorder %s20, 1
    %p164 = por %p162, %p163
    %p165 = scmp.ne.s32.totalorder %s156, %s157
    %p166 = scmp.eq.s32.totalorder %s20, 0
    %p167 = por %p165, %p166
    %p168 = scmp.ne.s32.totalorder %s156, %s157
    %p169 = scmp.eq.s32.totalorder %s21, 1
    %p170 = por %p168, %p169
    %p172 = scmp.ne.s32.totalorder %s157, %s171
    %p173 = scmp.eq.s32.totalorder %s21, 0
    %p174 = por %p172, %p173
    %s176 = sadd.s32 %s175, 1
    %p179 = scmp.eq.s32.totalorder %s15, 1
    %p180 = scmp.ne.s32.totalorder %s175, %s177
    %p181 = scmp.eq.s32.totalorder %s15, 0
    %p182 = por %p180, %p181
    %p183 = scmp.ne.s32.totalorder %s175, %s177
    %p184 = scmp.eq.s32.totalorder %s20, 1
    %p185 = por %p183, %p184
    %p186 = scmp.ne.s32.totalorder %s177, %s178
    %p187 = scmp.eq.s32.totalorder %s20, 0
    %p188 = por %p186, %p187
    %p189 = scmp.ne.s32.totalorder %s177, %s178
    %p190 = scmp.eq.s32.totalorder %s21, 1
    %p191 = por %p189, %p190
    %p193 = scmp.ne.s32.totalorder %s178, %s192
    %p194 = scmp.eq.s32.totalorder %s21, 0
    %p195 = por %p193, %p194
    %s197 = sadd.s32 %s196, 1
    %p200 = scmp.eq.s32.totalorder %s15, 1
    %p201 = scmp.ne.s32.totalorder %s196, %s198
    %p202 = scmp.eq.s32.totalorder %s15, 0
    %p203 = por %p201, %p202
    %p204 = scmp.ne.s32.totalorder %s196, %s198
    %p205 = scmp.eq.s32.totalorder %s20, 1
    %p206 = por %p204, %p205
    %p207 = scmp.ne.s32.totalorder %s198, %s199
    %p208 = scmp.eq.s32.totalorder %s20, 0
    %p209 = por %p207, %p208
    %p210 = scmp.ne.s32.totalorder %s198, %s199
    %p211 = scmp.eq.s32.totalorder %s21, 1
    %p212 = por %p210, %p211
    %p214 = scmp.ne.s32.totalorder %s199, %s213
    %p215 = scmp.eq.s32.totalorder %s21, 0
    %p216 = por %p214, %p215
    %s217 = ssub.s32 %s15, %s22
    %p218 = scmp.eq.s32.totalorder %s217, 0
    %s220 = sadd.s32 %s219, 1
    %s221 = scalar_select %p218, %s219, %s220
    %p224 = pneg %p218
    %p225 = scmp.eq.s32.totalorder %s15, 1
    %p226 = por %p224, %p225
    %p227 = scmp.ne.s32.totalorder %s219, %s222
    %p228 = scmp.eq.s32.totalorder %s15, 0
    %p229 = por %p227, %p228
    %p230 = scmp.ne.s32.totalorder %s219, %s222
    %p231 = scmp.eq.s32.totalorder %s20, 1
    %p232 = por %p230, %p231
    %p233 = scmp.ne.s32.totalorder %s222, %s223
    %p234 = scmp.eq.s32.totalorder %s20, 0
    %p235 = por %p233, %p234
    %p236 = scmp.ne.s32.totalorder %s222, %s223
    %p237 = scmp.eq.s32.totalorder %s21, 1
    %p238 = por %p236, %p237
    %p240 = scmp.ne.s32.totalorder %s223, %s239
    %p241 = scmp.eq.s32.totalorder %s21, 0
    %p242 = por %p240, %p241
    %p243 = scmp.le.s32.totalorder 1, %s15
    %p244 = scmp.lt.s32.totalorder %s15, 3
    %p245 = pnand %p243, %p244
    %p246 = pneg %p245
    // Predicated region
    $region9: #{distribution_encoder_forward.6} parent=5 // pred_check
      _
    $region10: #{distribution_encoder_forward.6} parent=5 // pred_check_branch
      %248 = sbr.rel (%p245) target = $region12
    $region11: #{distribution_encoder_forward.6} parent=5 // pred_region
      %s249 = ssub.s32 %s15, 1
      // Predicated region
      $region13: #{distribution_encoder_forward.6} parent=11 // pred_check
        %p250 = pneg %p62
      $region14: #{distribution_encoder_forward.6} parent=11 // pred_check_branch
        %252 = sbr.rel (%p250) target = $region16
      $region15: #{distribution_encoder_forward.6} parent=11 // pred_region
        _
      $region16: #{distribution_encoder_forward.6} parent=11 // pred_fallthru
        _
      // Predicated region
      $region17: #{distribution_encoder_forward.6} parent=11 // pred_check
        %p253 = pneg %p83
      $region18: #{distribution_encoder_forward.6} parent=11 // pred_check_branch
        %255 = sbr.rel (%p253) target = $region20
      $region19: #{distribution_encoder_forward.6} parent=11 // pred_region
        _
      $region20: #{distribution_encoder_forward.6} parent=11 // pred_fallthru
        _
      // Predicated region
      $region21: #{distribution_encoder_forward.6} parent=11 // pred_check
        %p256 = pneg %p104
      $region22: #{distribution_encoder_forward.6} parent=11 // pred_check_branch
        %258 = sbr.rel (%p256) target = $region24
      $region23: #{distribution_encoder_forward.6} parent=11 // pred_region
        _
      $region24: #{distribution_encoder_forward.6} parent=11 // pred_fallthru
        _
      // Predicated region
      $region25: #{distribution_encoder_forward.6} parent=11 // pred_check
        %p259 = pneg %p125
      $region26: #{distribution_encoder_forward.6} parent=11 // pred_check_branch
        %261 = sbr.rel (%p259) target = $region28
      $region27: #{distribution_encoder_forward.6} parent=11 // pred_region
        _
      $region28: #{distribution_encoder_forward.6} parent=11 // pred_fallthru
        _
      // Predicated region
      $region29: #{distribution_encoder_forward.6} parent=11 // pred_check
        %p262 = pneg %p146
      $region30: #{distribution_encoder_forward.6} parent=11 // pred_check_branch
        %264 = sbr.rel (%p262) target = $region32
      $region31: #{distribution_encoder_forward.6} parent=11 // pred_region
        _
      $region32: #{distribution_encoder_forward.6} parent=11 // pred_fallthru
        _
      // Predicated region
      $region33: #{distribution_encoder_forward.6} parent=11 // pred_check
        %p265 = pneg %p167
      $region34: #{distribution_encoder_forward.6} parent=11 // pred_check_branch
        %267 = sbr.rel (%p265) target = $region36
      $region35: #{distribution_encoder_forward.6} parent=11 // pred_region
        _
      $region36: #{distribution_encoder_forward.6} parent=11 // pred_fallthru
        _
      // Predicated region
      $region37: #{distribution_encoder_forward.6} parent=11 // pred_check
        %p268 = pneg %p188
      $region38: #{distribution_encoder_forward.6} parent=11 // pred_check_branch
        %270 = sbr.rel (%p268) target = $region40
      $region39: #{distribution_encoder_forward.6} parent=11 // pred_region
        _
      $region40: #{distribution_encoder_forward.6} parent=11 // pred_fallthru
        _
      // Predicated region
      $region41: #{distribution_encoder_forward.6} parent=11 // pred_check
        %p271 = pneg %p209
      $region42: #{distribution_encoder_forward.6} parent=11 // pred_check_branch
        %273 = sbr.rel (%p271) target = $region44
      $region43: #{distribution_encoder_forward.6} parent=11 // pred_region
        _
      $region44: #{distribution_encoder_forward.6} parent=11 // pred_fallthru
        _
    $region12: #{distribution_encoder_forward.6} parent=5 // pred_fallthru
      _
    %p274 = scmp.lt.s32.totalorder %s15, 2
    // Predicated region
    $region45: #{distribution_encoder_forward.6} parent=5 // pred_check
      %p275 = pneg %p274
    $region46: #{distribution_encoder_forward.6} parent=5 // pred_check_branch
      %277 = sbr.rel (%p275) target = $region48
    $region47: #{distribution_encoder_forward.6} parent=5 // pred_region
      // Predicated region
      $region49: #{distribution_encoder_forward.6} parent=47 // pred_check
        %p278 = pneg %p35
      $region50: #{distribution_encoder_forward.6} parent=47 // pred_check_branch
        %280 = sbr.rel (%p278) target = $region52
      $region51: #{distribution_encoder_forward.6} parent=47 // pred_region
        %p281 = scmp.lt.s32.totalorder %s15, 1
        %s282 = scalar_select %p281, %s15, 1
        %s283 = smul.addr %s282, 2
        %s284 = smul.addr %s283, 2
        %s285 = scalar_lea.vmem %s0, %s284
      $region52: #{distribution_encoder_forward.6} parent=47 // pred_fallthru
        _
    $region48: #{distribution_encoder_forward.6} parent=5 // pred_fallthru
      _
    %p286 = scmp.le.s32.totalorder 1, %s15
    %p287 = scmp.lt.s32.totalorder %s15, 3
    %p288 = pnand %p286, %p287
    %p289 = pneg %p288
    // Predicated region
    $region53: #{distribution_encoder_forward.6} parent=5 // pred_check
      _
    $region54: #{distribution_encoder_forward.6} parent=5 // pred_check_branch
      %291 = sbr.rel (%p288) target = $region56
    $region55: #{distribution_encoder_forward.6} parent=5 // pred_region
      %s292 = ssub.s32 %s15, 1
      %p293 = scmp.lt.s32.totalorder %s20, 1
      %s294 = scalar_select %p293, %s20, 1
      %s295 = smul.addr %s294, 2
      %s296 = smul.addr %s295, 2
      %s297 = scalar_lea.vmem %s0, %s296
      %p298 = pneg %p41
      %p299 = pneg %p38
      %p300 = pneg %p62
      %p301 = pneg %p59
      %p302 = pneg %p83
      %p303 = pneg %p80
      %p304 = pneg %p104
      %p305 = pneg %p101
      %p306 = pneg %p125
      %p307 = pneg %p122
      %p308 = pneg %p146
      %p309 = pneg %p143
      %p310 = pneg %p167
      %p311 = pneg %p164
      %p312 = pneg %p188
      %p313 = pneg %p185
      %p314 = pneg %p209
      %p315 = pneg %p206
      %p316 = pneg %p235
      %p317 = pneg %p232
      %p318 = scmp.lt.s32.totalorder %s20, 1
      %s319 = scalar_select %p318, %s20, 1
      %s320 = smul.addr %s319, 2
      %s321 = smul.addr %s320, 2
      %s322 = scalar_lea.vmem %s9, %s321
      %p323 = scmp.lt.s32.totalorder %s20, 1
      %s324 = scalar_select %p323, %s20, 1
      %s325 = smul.addr %s324, 2
      %s326 = smul.addr %s325, 2
      %s327 = scalar_lea.vmem %s0, %s326
      %p328 = scmp.lt.s32.totalorder %s20, 1
      %s329 = scalar_select %p328, %s20, 1
      %s330 = smul.addr %s329, 2
      %s331 = smul.addr %s330, 2
      %s332 = scalar_lea.vmem %s9, %s331
      %v333 = vld [vmem:[%s327] sm:$0x3]
      %v334 = vld [vmem:[%s327 + $0x2] sm:$0x3]
      %v335 = vld [vmem:[%s1] sm:$0xff]
      %v336 = vld [vmem:[%s1 + $0x8] sm:$0xff]
      %v337 = vld [vmem:[%s1 + $0x10] sm:$0xff]
      %v338 = vld [vmem:[%s1 + $0x18] sm:$0xff]
      %v339 = vld [vmem:[%s1 + $0x20] sm:$0xff]
      %v340 = vld [vmem:[%s1 + $0x28] sm:$0xff]
      %v341 = vld [vmem:[%s1 + $0x30] sm:$0xff]
      %v342 = vld [vmem:[%s1 + $0x38] sm:$0xff]
      %v343 = vld [vmem:[%s2] sm:$0x1]
      %v345 = vlaneseq
      %v346 = vshrl.u32 %v345, 7
      %v347 = vsub.s32 0, %v346
      %v348 = vrot.slane %v343, %v347
      %v352 = vcombine.low %v333, %v334
      %v354 = vunpack.c.l.s4 1983009808
      %v355 = vunpack.c.0.s8 %v354
      %v356 = vlaneseq
      %v357 = vshrl.u32 %v356, 7
      %v358 = vsub.s32 %v355, %v357
      %v359 = vrot.slane %v352, %v358
      %vm360 = vcmask 523264
      %v361 = vsel %vm360, %v359, 0
      %363 = vmatprep.subr.mxu0 0.0
      %364 = vmatpush1.msra.mxu0 0.0
      %365 = vmatprep.subr.mxu0 0.0
      %366 = vmatpush1.msra.mxu0 0.0
      %367 = vmatprep.subr.mxu0 0.0
      %368 = vmatpush1.msra.mxu0 0.0
      %369 = vmatprep.subr.mxu0 0.0
      %370 = vmatpush1.msra.mxu0 0.0
      %371 = vmatprep.subr.mxu0 0.0
      %372 = vmatpush1.msra.mxu0 0.0
      %373 = vmatprep.subr.mxu0 0.0
      %374 = vmatpush1.msra.mxu0 0.0
      %375 = vmatprep.subr.mxu0 0.0
      %376 = vmatpush1.msra.mxu0 0.0
      %377 = vmatprep.subr.mxu0 0.0
      %378 = vmatpush1.msra.mxu0 0.0
      %379 = vmatprep.subr.mxu0 0.0
      %380 = vmatpush1.msra.mxu0 %v342
      %381 = vmatprep.subr.mxu0 0.0
      %382 = vmatpush1.msra.mxu0 %v341
      %383 = vmatprep.subr.mxu0 0.0
      %384 = vmatpush1.msra.mxu0 %v340
      %385 = vmatprep.subr.mxu0 0.0
      %386 = vmatpush1.msra.mxu0 %v339
      %387 = vmatprep.subr.mxu0 0.0
      %388 = vmatpush1.msra.mxu0 %v338
      %389 = vmatprep.subr.mxu0 0.0
      %390 = vmatpush1.msra.mxu0 %v337
      %391 = vmatprep.subr.mxu0 0.0
      %392 = vmatpush1.msra.mxu0 %v336
      %393 = vmatprep.subr.mxu0 0.0
      %394 = vmatpush1.msra.mxu0 %v335
      %395 = vmatprep.subr.mxu0 0.0
      %396 = vmatpush2.msra.mxu0 0.0
      %397 = vmatprep.subr.mxu0 0.0
      %398 = vmatpush2.msra.mxu0 0.0
      %399 = vmatprep.subr.mxu0 0.0
      %400 = vmatpush2.msra.mxu0 0.0
      %401 = vmatprep.subr.mxu0 0.0
      %402 = vmatpush2.msra.mxu0 0.0
      %403 = vmatprep.subr.mxu0 0.0
      %404 = vmatpush2.msra.mxu0 0.0
      %405 = vmatprep.subr.mxu0 0.0
      %406 = vmatpush2.msra.mxu0 0.0
      %407 = vmatprep.subr.mxu0 0.0
      %408 = vmatpush2.msra.mxu0 0.0
      %409 = vmatprep.subr.mxu0 0.0
      %410 = vmatpush2.msra.mxu0 0.0
      %411 = vmatprep.subr.mxu0 0.0
      %412 = vmatpush2.msra.mxu0 0.0
      %413 = vmatprep.subr.mxu0 0.0
      %414 = vmatpush2.msra.mxu0 0.0
      %415 = vmatprep.subr.mxu0 0.0
      %416 = vmatpush2.msra.mxu0 0.0
      %417 = vmatprep.subr.mxu0 0.0
      %418 = vmatpush2.msra.mxu0 0.0
      %419 = vmatprep.subr.mxu0 0.0
      %420 = vmatpush2.msra.mxu0 0.0
      %421 = vmatprep.subr.mxu0 0.0
      %422 = vmatpush2.msra.mxu0 0.0
      %423 = vmatprep.subr.mxu0 0.0
      %424 = vmatpush2.msra.mxu0 0.0
      %425 = vmatprep.subr.mxu0 0.0
      %426 = vmatpush2.msra.mxu0 0.0
      %427 = vmatprep.mubr.f32.mxu0 0.0
      %428 = vmatmul.mubr.f32.gmra.mxu0 %v361
      %v429 = vpop.f32.mrf.mxu0
      %v430 = vadd.f32 %v348, %v429
      %v431 = vpop.f32.mrf.mxu0
      %432 = vdwg.mxu0
      %v433 = vmax.f32 %v430, 0.0
      %vm434 = vcmask 256000
      %435 = vst.msk [vmem:[#allocation2] sm:$0x7] %vm434, 0.0
      %436 = vst.msk [vmem:[#allocation2 + $0x4] sm:$0x7] %vm434, 0.0
      %437 = vst.msk [vmem:[#allocation2 + $0x8] sm:$0x7] %vm434, 0.0
      %v440 = vunpack.c.l.s4 1983009808
      %v441 = vunpack.c.0.s8 %v440
      %v442 = vlaneseq
      %v443 = vshrl.u32 %v442, 7
      %v444 = vsub.s32 %v441, %v443
      %v445 = vrot.slane %v433, %v444
      %v446 = vcombine.high %v445, %v445
      %s449 = scalar_lea.vmem [#allocation2], 4
      %vm450 = vcmask 254976
      %451 = vst.msk [vmem:[%s449 + $0x1] sm:$0x3] %vm450, %v445
      %452 = vst.msk [vmem:[%s449 + $0x5] sm:$0x3] %vm450, %v446
      %v453 = vld [vmem:[#allocation2] sm:$0x3]
      %v454 = vld [vmem:[#allocation2 + $0x4] sm:$0x3]
      %v455 = vld [vmem:[%s3] sm:$0xff]
      %v456 = vld [vmem:[%s3 + $0x8] sm:$0xff]
      %v457 = vld [vmem:[%s3 + $0x10] sm:$0xff]
      %v458 = vld [vmem:[%s3 + $0x18] sm:$0xff]
      %v459 = vld [vmem:[#allocation2 + $0x1] sm:$0x3]
      %v460 = vld [vmem:[#allocation2 + $0x5] sm:$0x3]
      %s461 = scalar_lea.vmem %s3, 32
      %v462 = vld [vmem:[%s461] sm:$0xff]
      %v463 = vld [vmem:[%s461 + $0x8] sm:$0xff]
      %v464 = vld [vmem:[%s461 + $0x10] sm:$0xff]
      %v465 = vld [vmem:[%s461 + $0x18] sm:$0xff]
      %v468 = vcombine.low %v459, %v460
      %v470 = vunpack.c.l.s4 1983009808
      %v471 = vunpack.c.0.s8 %v470
      %v472 = vlaneseq
      %v473 = vshrl.u32 %v472, 7
      %v474 = vsub.s32 %v471, %v473
      %v475 = vrot.slane %v468, %v474
      %vm476 = vcmask 261120
      %v477 = vsel %vm476, %v475, 0
      %479 = vmatprep.subr.mxu0 0.0
      %480 = vmatpush1.msra.mxu0 0.0
      %481 = vmatprep.subr.mxu0 0.0
      %482 = vmatpush1.msra.mxu0 0.0
      %483 = vmatprep.subr.mxu0 0.0
      %484 = vmatpush1.msra.mxu0 0.0
      %485 = vmatprep.subr.mxu0 0.0
      %486 = vmatpush1.msra.mxu0 0.0
      %487 = vmatprep.subr.mxu0 0.0
      %488 = vmatpush1.msra.mxu0 0.0
      %489 = vmatprep.subr.mxu0 0.0
      %490 = vmatpush1.msra.mxu0 0.0
      %491 = vmatprep.subr.mxu0 0.0
      %492 = vmatpush1.msra.mxu0 0.0
      %493 = vmatprep.subr.mxu0 0.0
      %494 = vmatpush1.msra.mxu0 0.0
      %495 = vmatprep.subr.mxu0 0.0
      %496 = vmatpush1.msra.mxu0 0.0
      %497 = vmatprep.subr.mxu0 0.0
      %498 = vmatpush1.msra.mxu0 0.0
      %499 = vmatprep.subr.mxu0 0.0
      %500 = vmatpush1.msra.mxu0 0.0
      %501 = vmatprep.subr.mxu0 0.0
      %502 = vmatpush1.msra.mxu0 0.0
      %503 = vmatprep.subr.mxu0 0.0
      %504 = vmatpush1.msra.mxu0 %v465
      %505 = vmatprep.subr.mxu0 0.0
      %506 = vmatpush1.msra.mxu0 %v464
      %507 = vmatprep.subr.mxu0 0.0
      %508 = vmatpush1.msra.mxu0 %v463
      %509 = vmatprep.subr.mxu0 0.0
      %510 = vmatpush1.msra.mxu0 %v462
      %511 = vmatprep.subr.mxu0 0.0
      %512 = vmatpush2.msra.mxu0 0.0
      %513 = vmatprep.subr.mxu0 0.0
      %514 = vmatpush2.msra.mxu0 0.0
      %515 = vmatprep.subr.mxu0 0.0
      %516 = vmatpush2.msra.mxu0 0.0
      %517 = vmatprep.subr.mxu0 0.0
      %518 = vmatpush2.msra.mxu0 0.0
      %519 = vmatprep.subr.mxu0 0.0
      %520 = vmatpush2.msra.mxu0 0.0
      %521 = vmatprep.subr.mxu0 0.0
      %522 = vmatpush2.msra.mxu0 0.0
      %523 = vmatprep.subr.mxu0 0.0
      %524 = vmatpush2.msra.mxu0 0.0
      %525 = vmatprep.subr.mxu0 0.0
      %526 = vmatpush2.msra.mxu0 0.0
      %527 = vmatprep.subr.mxu0 0.0
      %528 = vmatpush2.msra.mxu0 0.0
      %529 = vmatprep.subr.mxu0 0.0
      %530 = vmatpush2.msra.mxu0 0.0
      %531 = vmatprep.subr.mxu0 0.0
      %532 = vmatpush2.msra.mxu0 0.0
      %533 = vmatprep.subr.mxu0 0.0
      %534 = vmatpush2.msra.mxu0 0.0
      %535 = vmatprep.subr.mxu0 0.0
      %536 = vmatpush2.msra.mxu0 0.0
      %537 = vmatprep.subr.mxu0 0.0
      %538 = vmatpush2.msra.mxu0 0.0
      %539 = vmatprep.subr.mxu0 0.0
      %540 = vmatpush2.msra.mxu0 0.0
      %541 = vmatprep.subr.mxu0 0.0
      %542 = vmatpush2.msra.mxu0 0.0
      %543 = vmatprep.mubr.f32.mxu0 0.0
      %544 = vmatmul.mubr.f32.gmra.mxu0 %v477
      %v545 = vpop.f32.mrf.mxu0
      %v546 = vadd.f32 0.0, %v545
      %v547 = vpop.f32.mrf.mxu0
      %548 = vdwg.mxu0
      %v551 = vcombine.low %v453, %v454
      %v553 = vunpack.c.l.s4 1983009808
      %v554 = vunpack.c.0.s8 %v553
      %v555 = vlaneseq
      %v556 = vshrl.u32 %v555, 7
      %v557 = vsub.s32 %v554, %v556
      %v558 = vrot.slane %v551, %v557
      %v559 = vsel %vm476, %v558, 0
      %561 = vmatprep.subr.mxu0 0.0
      %562 = vmatpush1.msra.mxu0 0.0
      %563 = vmatprep.subr.mxu0 0.0
      %564 = vmatpush1.msra.mxu0 0.0
      %565 = vmatprep.subr.mxu0 0.0
      %566 = vmatpush1.msra.mxu0 0.0
      %567 = vmatprep.subr.mxu0 0.0
      %568 = vmatpush1.msra.mxu0 0.0
      %569 = vmatprep.subr.mxu0 0.0
      %570 = vmatpush1.msra.mxu0 0.0
      %571 = vmatprep.subr.mxu0 0.0
      %572 = vmatpush1.msra.mxu0 0.0
      %573 = vmatprep.subr.mxu0 0.0
      %574 = vmatpush1.msra.mxu0 0.0
      %575 = vmatprep.subr.mxu0 0.0
      %576 = vmatpush1.msra.mxu0 0.0
      %577 = vmatprep.subr.mxu0 0.0
      %578 = vmatpush1.msra.mxu0 0.0
      %579 = vmatprep.subr.mxu0 0.0
      %580 = vmatpush1.msra.mxu0 0.0
      %581 = vmatprep.subr.mxu0 0.0
      %582 = vmatpush1.msra.mxu0 0.0
      %583 = vmatprep.subr.mxu0 0.0
      %584 = vmatpush1.msra.mxu0 0.0
      %585 = vmatprep.subr.mxu0 0.0
      %586 = vmatpush1.msra.mxu0 %v458
      %587 = vmatprep.subr.mxu0 0.0
      %588 = vmatpush1.msra.mxu0 %v457
      %589 = vmatprep.subr.mxu0 0.0
      %590 = vmatpush1.msra.mxu0 %v456
      %591 = vmatprep.subr.mxu0 0.0
      %592 = vmatpush1.msra.mxu0 %v455
      %593 = vmatprep.subr.mxu0 0.0
      %594 = vmatpush2.msra.mxu0 0.0
      %595 = vmatprep.subr.mxu0 0.0
      %596 = vmatpush2.msra.mxu0 0.0
      %597 = vmatprep.subr.mxu0 0.0
      %598 = vmatpush2.msra.mxu0 0.0
      %599 = vmatprep.subr.mxu0 0.0
      %600 = vmatpush2.msra.mxu0 0.0
      %601 = vmatprep.subr.mxu0 0.0
      %602 = vmatpush2.msra.mxu0 0.0
      %603 = vmatprep.subr.mxu0 0.0
      %604 = vmatpush2.msra.mxu0 0.0
      %605 = vmatprep.subr.mxu0 0.0
      %606 = vmatpush2.msra.mxu0 0.0
      %607 = vmatprep.subr.mxu0 0.0
      %608 = vmatpush2.msra.mxu0 0.0
      %609 = vmatprep.subr.mxu0 0.0
      %610 = vmatpush2.msra.mxu0 0.0
      %611 = vmatprep.subr.mxu0 0.0
      %612 = vmatpush2.msra.mxu0 0.0
      %613 = vmatprep.subr.mxu0 0.0
      %614 = vmatpush2.msra.mxu0 0.0
      %615 = vmatprep.subr.mxu0 0.0
      %616 = vmatpush2.msra.mxu0 0.0
      %617 = vmatprep.subr.mxu0 0.0
      %618 = vmatpush2.msra.mxu0 0.0
      %619 = vmatprep.subr.mxu0 0.0
      %620 = vmatpush2.msra.mxu0 0.0
      %621 = vmatprep.subr.mxu0 0.0
      %622 = vmatpush2.msra.mxu0 0.0
      %623 = vmatprep.subr.mxu0 0.0
      %624 = vmatpush2.msra.mxu0 0.0
      %625 = vmatprep.mubr.f32.mxu0 0.0
      %626 = vmatmul.mubr.f32.gmra.mxu0 %v559
      %v627 = vpop.f32.mrf.mxu0
      %v628 = vadd.f32 %v546, %v627
      %v629 = vpop.f32.mrf.mxu0
      %630 = vdwg.mxu0
      %v631 = vld [vmem:[%s449] sm:$0x3]
      %v632 = vld [vmem:[%s449 + $0x4] sm:$0x3]
      %s633 = scalar_lea.vmem %s3, 64
      %v634 = vld [vmem:[%s633] sm:$0xff]
      %v635 = vld [vmem:[%s633 + $0x8] sm:$0xff]
      %v636 = vld [vmem:[%s633 + $0x10] sm:$0xff]
      %v637 = vld [vmem:[%s633 + $0x18] sm:$0xff]
      %v640 = vcombine.low %v631, %v632
      %v642 = vunpack.c.l.s4 1983009808
      %v643 = vunpack.c.0.s8 %v642
      %v644 = vlaneseq
      %v645 = vshrl.u32 %v644, 7
      %v646 = vsub.s32 %v643, %v645
      %v647 = vrot.slane %v640, %v646
      %v648 = vsel %vm476, %v647, 0
      %650 = vmatprep.subr.mxu0 0.0
      %651 = vmatpush1.msra.mxu0 0.0
      %652 = vmatprep.subr.mxu0 0.0
      %653 = vmatpush1.msra.mxu0 0.0
      %654 = vmatprep.subr.mxu0 0.0
      %655 = vmatpush1.msra.mxu0 0.0
      %656 = vmatprep.subr.mxu0 0.0
      %657 = vmatpush1.msra.mxu0 0.0
      %658 = vmatprep.subr.mxu0 0.0
      %659 = vmatpush1.msra.mxu0 0.0
      %660 = vmatprep.subr.mxu0 0.0
      %661 = vmatpush1.msra.mxu0 0.0
      %662 = vmatprep.subr.mxu0 0.0
      %663 = vmatpush1.msra.mxu0 0.0
      %664 = vmatprep.subr.mxu0 0.0
      %665 = vmatpush1.msra.mxu0 0.0
      %666 = vmatprep.subr.mxu0 0.0
      %667 = vmatpush1.msra.mxu0 0.0
      %668 = vmatprep.subr.mxu0 0.0
      %669 = vmatpush1.msra.mxu0 0.0
      %670 = vmatprep.subr.mxu0 0.0
      %671 = vmatpush1.msra.mxu0 0.0
      %672 = vmatprep.subr.mxu0 0.0
      %673 = vmatpush1.msra.mxu0 0.0
      %674 = vmatprep.subr.mxu0 0.0
      %675 = vmatpush1.msra.mxu0 %v637
      %676 = vmatprep.subr.mxu0 0.0
      %677 = vmatpush1.msra.mxu0 %v636
      %678 = vmatprep.subr.mxu0 0.0
      %679 = vmatpush1.msra.mxu0 %v635
      %680 = vmatprep.subr.mxu0 0.0
      %681 = vmatpush1.msra.mxu0 %v634
      %682 = vmatprep.subr.mxu0 0.0
      %683 = vmatpush2.msra.mxu0 0.0
      %684 = vmatprep.subr.mxu0 0.0
      %685 = vmatpush2.msra.mxu0 0.0
      %686 = vmatprep.subr.mxu0 0.0
      %687 = vmatpush2.msra.mxu0 0.0
      %688 = vmatprep.subr.mxu0 0.0
      %689 = vmatpush2.msra.mxu0 0.0
      %690 = vmatprep.subr.mxu0 0.0
      %691 = vmatpush2.msra.mxu0 0.0
      %692 = vmatprep.subr.mxu0 0.0
      %693 = vmatpush2.msra.mxu0 0.0
      %694 = vmatprep.subr.mxu0 0.0
      %695 = vmatpush2.msra.mxu0 0.0
      %696 = vmatprep.subr.mxu0 0.0
      %697 = vmatpush2.msra.mxu0 0.0
      %698 = vmatprep.subr.mxu0 0.0
      %699 = vmatpush2.msra.mxu0 0.0
      %700 = vmatprep.subr.mxu0 0.0
      %701 = vmatpush2.msra.mxu0 0.0
      %702 = vmatprep.subr.mxu0 0.0
      %703 = vmatpush2.msra.mxu0 0.0
      %704 = vmatprep.subr.mxu0 0.0
      %705 = vmatpush2.msra.mxu0 0.0
      %706 = vmatprep.subr.mxu0 0.0
      %707 = vmatpush2.msra.mxu0 0.0
      %708 = vmatprep.subr.mxu0 0.0
      %709 = vmatpush2.msra.mxu0 0.0
      %710 = vmatprep.subr.mxu0 0.0
      %711 = vmatpush2.msra.mxu0 0.0
      %712 = vmatprep.subr.mxu0 0.0
      %713 = vmatpush2.msra.mxu0 0.0
      %714 = vmatprep.mubr.f32.mxu0 0.0
      %715 = vmatmul.mubr.f32.gmra.mxu0 %v648
      %v716 = vpop.f32.mrf.mxu0
      %v717 = vadd.f32 0.0, %v716
      %v718 = vpop.f32.mrf.mxu0
      %719 = vdwg.mxu0
      %v720 = vadd.f32 %v628, %v717
      %v721 = vld [vmem:[%s449 + $0x1] sm:$0x3]
      %v722 = vld [vmem:[%s449 + $0x5] sm:$0x3]
      %s723 = scalar_lea.vmem %s3, 96
      %v724 = vld [vmem:[%s723] sm:$0xff]
      %v725 = vld [vmem:[%s723 + $0x8] sm:$0xff]
      %v726 = vld [vmem:[%s723 + $0x10] sm:$0xff]
      %v727 = vld [vmem:[%s723 + $0x18] sm:$0xff]
      %v730 = vcombine.low %v721, %v722
      %v732 = vunpack.c.l.s4 1983009808
      %v733 = vunpack.c.0.s8 %v732
      %v734 = vlaneseq
      %v735 = vshrl.u32 %v734, 7
      %v736 = vsub.s32 %v733, %v735
      %v737 = vrot.slane %v730, %v736
      %v738 = vsel %vm476, %v737, 0
      %740 = vmatprep.subr.mxu0 0.0
      %741 = vmatpush1.msra.mxu0 0.0
      %742 = vmatprep.subr.mxu0 0.0
      %743 = vmatpush1.msra.mxu0 0.0
      %744 = vmatprep.subr.mxu0 0.0
      %745 = vmatpush1.msra.mxu0 0.0
      %746 = vmatprep.subr.mxu0 0.0
      %747 = vmatpush1.msra.mxu0 0.0
      %748 = vmatprep.subr.mxu0 0.0
      %749 = vmatpush1.msra.mxu0 0.0
      %750 = vmatprep.subr.mxu0 0.0
      %751 = vmatpush1.msra.mxu0 0.0
      %752 = vmatprep.subr.mxu0 0.0
      %753 = vmatpush1.msra.mxu0 0.0
      %754 = vmatprep.subr.mxu0 0.0
      %755 = vmatpush1.msra.mxu0 0.0
      %756 = vmatprep.subr.mxu0 0.0
      %757 = vmatpush1.msra.mxu0 0.0
      %758 = vmatprep.subr.mxu0 0.0
      %759 = vmatpush1.msra.mxu0 0.0
      %760 = vmatprep.subr.mxu0 0.0
      %761 = vmatpush1.msra.mxu0 0.0
      %762 = vmatprep.subr.mxu0 0.0
      %763 = vmatpush1.msra.mxu0 0.0
      %764 = vmatprep.subr.mxu0 0.0
      %765 = vmatpush1.msra.mxu0 %v727
      %766 = vmatprep.subr.mxu0 0.0
      %767 = vmatpush1.msra.mxu0 %v726
      %768 = vmatprep.subr.mxu0 0.0
      %769 = vmatpush1.msra.mxu0 %v725
      %770 = vmatprep.subr.mxu0 0.0
      %771 = vmatpush1.msra.mxu0 %v724
      %772 = vmatprep.subr.mxu0 0.0
      %773 = vmatpush2.msra.mxu0 0.0
      %774 = vmatprep.subr.mxu0 0.0
      %775 = vmatpush2.msra.mxu0 0.0
      %776 = vmatprep.subr.mxu0 0.0
      %777 = vmatpush2.msra.mxu0 0.0
      %778 = vmatprep.subr.mxu0 0.0
      %779 = vmatpush2.msra.mxu0 0.0
      %780 = vmatprep.subr.mxu0 0.0
      %781 = vmatpush2.msra.mxu0 0.0
      %782 = vmatprep.subr.mxu0 0.0
      %783 = vmatpush2.msra.mxu0 0.0
      %784 = vmatprep.subr.mxu0 0.0
      %785 = vmatpush2.msra.mxu0 0.0
      %786 = vmatprep.subr.mxu0 0.0
      %787 = vmatpush2.msra.mxu0 0.0
      %788 = vmatprep.subr.mxu0 0.0
      %789 = vmatpush2.msra.mxu0 0.0
      %790 = vmatprep.subr.mxu0 0.0
      %791 = vmatpush2.msra.mxu0 0.0
      %792 = vmatprep.subr.mxu0 0.0
      %793 = vmatpush2.msra.mxu0 0.0
      %794 = vmatprep.subr.mxu0 0.0
      %795 = vmatpush2.msra.mxu0 0.0
      %796 = vmatprep.subr.mxu0 0.0
      %797 = vmatpush2.msra.mxu0 0.0
      %798 = vmatprep.subr.mxu0 0.0
      %799 = vmatpush2.msra.mxu0 0.0
      %800 = vmatprep.subr.mxu0 0.0
      %801 = vmatpush2.msra.mxu0 0.0
      %802 = vmatprep.subr.mxu0 0.0
      %803 = vmatpush2.msra.mxu0 0.0
      %804 = vmatprep.mubr.f32.mxu0 0.0
      %805 = vmatmul.mubr.f32.gmra.mxu0 %v738
      %v806 = vpop.f32.mrf.mxu0
      %v807 = vadd.f32 0.0, %v806
      %v808 = vpop.f32.mrf.mxu0
      %809 = vdwg.mxu0
      %v810 = vadd.f32 %v720, %v807
      %v811 = vld [vmem:[%s4] sm:$0x1]
      %v813 = vlaneseq
      %v814 = vshrl.u32 %v813, 7
      %v815 = vsub.s32 0, %v814
      %v816 = vrot.slane %v811, %v815
      %v818 = vadd.f32 %v810, %v816
      %v819 = vmax.f32 %v818, 0.0
      %v820 = vld [vmem:[%s5] sm:$0xff]
      %v821 = vld [vmem:[%s6] sm:$0x1]
      %v823 = vlaneseq
      %v824 = vshrl.u32 %v823, 7
      %v825 = vsub.s32 0, %v824
      %v826 = vrot.slane %v821, %v825
      %vm828 = vcmask 64512
      %v830 = vsel %vm828, %v819, 0
      %832 = vmatprep.subr.mxu0 0.0
      %833 = vmatpush1.msra.mxu0 0.0
      %834 = vmatprep.subr.mxu0 0.0
      %835 = vmatpush1.msra.mxu0 0.0
      %836 = vmatprep.subr.mxu0 0.0
      %837 = vmatpush1.msra.mxu0 0.0
      %838 = vmatprep.subr.mxu0 0.0
      %839 = vmatpush1.msra.mxu0 0.0
      %840 = vmatprep.subr.mxu0 0.0
      %841 = vmatpush1.msra.mxu0 0.0
      %842 = vmatprep.subr.mxu0 0.0
      %843 = vmatpush1.msra.mxu0 0.0
      %844 = vmatprep.subr.mxu0 0.0
      %845 = vmatpush1.msra.mxu0 0.0
      %846 = vmatprep.subr.mxu0 0.0
      %847 = vmatpush1.msra.mxu0 0.0
      %848 = vmatprep.subr.mxu0 0.0
      %849 = vmatpush1.msra.mxu0 0.0
      %850 = vmatprep.subr.mxu0 0.0
      %851 = vmatpush1.msra.mxu0 0.0
      %852 = vmatprep.subr.mxu0 0.0
      %853 = vmatpush1.msra.mxu0 0.0
      %854 = vmatprep.subr.mxu0 0.0
      %855 = vmatpush1.msra.mxu0 0.0
      %856 = vmatprep.subr.mxu0 0.0
      %857 = vmatpush1.msra.mxu0 0.0
      %858 = vmatprep.subr.mxu0 0.0
      %859 = vmatpush1.msra.mxu0 0.0
      %860 = vmatprep.subr.mxu0 0.0
      %861 = vmatpush1.msra.mxu0 0.0
      %862 = vmatprep.subr.mxu0 0.0
      %863 = vmatpush1.msra.mxu0 %v820
      %864 = vmatprep.subr.mxu0 0.0
      %865 = vmatpush2.msra.mxu0 0.0
      %866 = vmatprep.subr.mxu0 0.0
      %867 = vmatpush2.msra.mxu0 0.0
      %868 = vmatprep.subr.mxu0 0.0
      %869 = vmatpush2.msra.mxu0 0.0
      %870 = vmatprep.subr.mxu0 0.0
      %871 = vmatpush2.msra.mxu0 0.0
      %872 = vmatprep.subr.mxu0 0.0
      %873 = vmatpush2.msra.mxu0 0.0
      %874 = vmatprep.subr.mxu0 0.0
      %875 = vmatpush2.msra.mxu0 0.0
      %876 = vmatprep.subr.mxu0 0.0
      %877 = vmatpush2.msra.mxu0 0.0
      %878 = vmatprep.subr.mxu0 0.0
      %879 = vmatpush2.msra.mxu0 0.0
      %880 = vmatprep.subr.mxu0 0.0
      %881 = vmatpush2.msra.mxu0 0.0
      %882 = vmatprep.subr.mxu0 0.0
      %883 = vmatpush2.msra.mxu0 0.0
      %884 = vmatprep.subr.mxu0 0.0
      %885 = vmatpush2.msra.mxu0 0.0
      %886 = vmatprep.subr.mxu0 0.0
      %887 = vmatpush2.msra.mxu0 0.0
      %888 = vmatprep.subr.mxu0 0.0
      %889 = vmatpush2.msra.mxu0 0.0
      %890 = vmatprep.subr.mxu0 0.0
      %891 = vmatpush2.msra.mxu0 0.0
      %892 = vmatprep.subr.mxu0 0.0
      %893 = vmatpush2.msra.mxu0 0.0
      %894 = vmatprep.subr.mxu0 0.0
      %895 = vmatpush2.msra.mxu0 0.0
      %896 = vmatprep.mubr.f32.mxu0 0.0
      %897 = vmatmul.mubr.f32.gmra.mxu0 %v830
      %v898 = vpop.f32.mrf.mxu0
      %v899 = vadd.f32 %v826, %v898
      %v900 = vpop.f32.mrf.mxu0
      %901 = vdwg.mxu0
      %v902 = vmax.f32 %v899, 0.0
      %903 = vrot.lane.b32.xlu0 %v333, 112
      %v904 = vpop.permute.xlu0 %903
      %905 = vrot.lane.b32.xlu0 %v334, 112
      %v906 = vpop.permute.xlu0 %905
      %v909 = vmax.f32 %v333, %v904
      %v910 = vmax.f32 %v334, %v906
      %913 = vrot.lane.b32.xlu0 %v909, 96
      %v914 = vpop.permute.xlu0 %913
      %915 = vrot.lane.b32.xlu0 %v910, 96
      %v916 = vpop.permute.xlu0 %915
      %v919 = vmax.f32 %v909, %v914
      %v920 = vmax.f32 %v910, %v916
      %v921 = vld [vmem:[%s7] sm:$0xff]
      %v922 = vld [vmem:[%s7 + $0x8] sm:$0xff]
      %v923 = vld [vmem:[%s8] sm:$0x1]
      %v925 = vlaneseq
      %v926 = vshrl.u32 %v925, 7
      %v927 = vsub.s32 0, %v926
      %v928 = vrot.slane %v923, %v927
      %v932 = vcombine.low %v919, %v920
      %v934 = vunpack.c.l.s4 1983009808
      %v935 = vunpack.c.0.s8 %v934
      %v936 = vlaneseq
      %v937 = vshrl.u32 %v936, 7
      %v938 = vsub.s32 %v935, %v937
      %v939 = vrot.slane %v932, %v938
      %vm940 = vcmask 130048
      %v941 = vsel %vm940, %v939, 0
      %943 = vmatprep.subr.mxu0 0.0
      %944 = vmatpush1.msra.mxu0 0.0
      %945 = vmatprep.subr.mxu0 0.0
      %946 = vmatpush1.msra.mxu0 0.0
      %947 = vmatprep.subr.mxu0 0.0
      %948 = vmatpush1.msra.mxu0 0.0
      %949 = vmatprep.subr.mxu0 0.0
      %950 = vmatpush1.msra.mxu0 0.0
      %951 = vmatprep.subr.mxu0 0.0
      %952 = vmatpush1.msra.mxu0 0.0
      %953 = vmatprep.subr.mxu0 0.0
      %954 = vmatpush1.msra.mxu0 0.0
      %955 = vmatprep.subr.mxu0 0.0
      %956 = vmatpush1.msra.mxu0 0.0
      %957 = vmatprep.subr.mxu0 0.0
      %958 = vmatpush1.msra.mxu0 0.0
      %959 = vmatprep.subr.mxu0 0.0
      %960 = vmatpush1.msra.mxu0 0.0
      %961 = vmatprep.subr.mxu0 0.0
      %962 = vmatpush1.msra.mxu0 0.0
      %963 = vmatprep.subr.mxu0 0.0
      %964 = vmatpush1.msra.mxu0 0.0
      %965 = vmatprep.subr.mxu0 0.0
      %966 = vmatpush1.msra.mxu0 0.0
      %967 = vmatprep.subr.mxu0 0.0
      %968 = vmatpush1.msra.mxu0 0.0
      %969 = vmatprep.subr.mxu0 0.0
      %970 = vmatpush1.msra.mxu0 0.0
      %971 = vmatprep.subr.mxu0 0.0
      %972 = vmatpush1.msra.mxu0 %v922
      %973 = vmatprep.subr.mxu0 0.0
      %974 = vmatpush1.msra.mxu0 %v921
      %975 = vmatprep.subr.mxu0 0.0
      %976 = vmatpush2.msra.mxu0 0.0
      %977 = vmatprep.subr.mxu0 0.0
      %978 = vmatpush2.msra.mxu0 0.0
      %979 = vmatprep.subr.mxu0 0.0
      %980 = vmatpush2.msra.mxu0 0.0
      %981 = vmatprep.subr.mxu0 0.0
      %982 = vmatpush2.msra.mxu0 0.0
      %983 = vmatprep.subr.mxu0 0.0
      %984 = vmatpush2.msra.mxu0 0.0
      %985 = vmatprep.subr.mxu0 0.0
      %986 = vmatpush2.msra.mxu0 0.0
      %987 = vmatprep.subr.mxu0 0.0
      %988 = vmatpush2.msra.mxu0 0.0
      %989 = vmatprep.subr.mxu0 0.0
      %990 = vmatpush2.msra.mxu0 0.0
      %991 = vmatprep.subr.mxu0 0.0
      %992 = vmatpush2.msra.mxu0 0.0
      %993 = vmatprep.subr.mxu0 0.0
      %994 = vmatpush2.msra.mxu0 0.0
      %995 = vmatprep.subr.mxu0 0.0
      %996 = vmatpush2.msra.mxu0 0.0
      %997 = vmatprep.subr.mxu0 0.0
      %998 = vmatpush2.msra.mxu0 0.0
      %999 = vmatprep.subr.mxu0 0.0
      %1000 = vmatpush2.msra.mxu0 0.0
      %1001 = vmatprep.subr.mxu0 0.0
      %1002 = vmatpush2.msra.mxu0 0.0
      %1003 = vmatprep.subr.mxu0 0.0
      %1004 = vmatpush2.msra.mxu0 0.0
      %1005 = vmatprep.subr.mxu0 0.0
      %1006 = vmatpush2.msra.mxu0 0.0
      %1007 = vmatprep.mubr.f32.mxu0 0.0
      %1008 = vmatmul.mubr.f32.gmra.mxu0 %v941
      %v1009 = vpop.f32.mrf.mxu0
      %v1010 = vadd.f32 %v928, %v1009
      %v1011 = vpop.f32.mrf.mxu0
      %1012 = vdwg.mxu0
      %v1013 = vadd.f32 %v902, %v1010
      %v1016 = vunpack.c.l.s4 1983009808
      %v1017 = vunpack.c.0.s8 %v1016
      %v1018 = vlaneseq
      %v1019 = vshrl.u32 %v1018, 7
      %v1020 = vsub.s32 %v1017, %v1019
      %v1021 = vrot.slane %v1013, %v1020
      %v1022 = vcombine.high %v1021, %v1021
      %vm1025 = vcmask 123904
      %1026 = vst.msk [vmem:[%s332] sm:$0x3] %vm1025, %v1021
      %1027 = vst.msk [vmem:[%s332 + $0x2] sm:$0x3] %vm1025, %v1022
      %p1028 = scmp.lt.s32.totalorder %s20, 1
      %s1029 = scalar_select %p1028, %s20, 1
      %s1030 = smul.addr %s1029, 2
      %s1031 = smul.addr %s1030, 2
      %s1032 = scalar_lea.vmem %s9, %s1031
      // Predicated region
      $region57: #{distribution_encoder_forward.6} parent=55 // pred_check
        %p1033 = pneg %p232
      $region58: #{distribution_encoder_forward.6} parent=55 // pred_check_branch
        %1035 = sbr.rel (%p1033) target = $region60
      $region59: #{distribution_encoder_forward.6} parent=55 // pred_region
        _
      $region60: #{distribution_encoder_forward.6} parent=55 // pred_fallthru
        _
    $region56: #{distribution_encoder_forward.6} parent=5 // pred_fallthru
      _
    %p1036 = scmp.le.s32.totalorder 2, %s15
    // Predicated region
    $region61: #{distribution_encoder_forward.6} parent=5 // pred_check
      %p1037 = pneg %p1036
    $region62: #{distribution_encoder_forward.6} parent=5 // pred_check_branch
      %1039 = sbr.rel (%p1037) target = $region64
    $region63: #{distribution_encoder_forward.6} parent=5 // pred_region
      %s1040 = ssub.s32 %s15, 2
      // Predicated region
      $region65: #{distribution_encoder_forward.6} parent=63 // pred_check
        %p1041 = pneg %p238
      $region66: #{distribution_encoder_forward.6} parent=63 // pred_check_branch
        %1043 = sbr.rel (%p1041) target = $region68
      $region67: #{distribution_encoder_forward.6} parent=63 // pred_region
        %p1044 = scmp.lt.s32.totalorder %s21, 1
        %s1045 = scalar_select %p1044, %s21, 1
        %s1046 = smul.addr %s1045, 2
        %s1047 = smul.addr %s1046, 2
        %s1048 = scalar_lea.vmem %s9, %s1047
      $region68: #{distribution_encoder_forward.6} parent=63 // pred_fallthru
        _
    $region64: #{distribution_encoder_forward.6} parent=5 // pred_fallthru
      _
  $region6: #{distribution_encoder_forward.6} parent=0 // loop_footer
    %s19 = sadd.s32 1, %s15
  $region7: #{distribution_encoder_forward.6} parent=0 // loop_footer_branch
    %14 = sbr.rel target = $region3
  $region8: #{distribution_encoder_forward.6} parent=0 // loop_exit
    _

// kernel: distribution_encoder_forward.7
$region0: #{distribution_encoder_forward.7}
  #allocation0 [shape = 'u32[]', space=smem, size = 0x4, offset = 0x4, fixed_abs, tag = 'smem constant byte address 0x4 - core index']
  #allocation1 [shape = 'u32[144,128]{1,0:T(1,128)}', space=vmem, size = 0x12000, scoped, tag = 'internal scratch']
  #allocation2 [shape = 'f32[2,2,32]{2,1,0:T(2,128)}', space=vmem, size = 0x800, scoped, tag = 'scratch operand']
  %s0 = inlined_call_operand.vmem [shape: f32[2,1,1,64], index: 0, kind: input, shape index: {}]
  %s1 = inlined_call_operand.vmem [shape: f32[64,32], index: 1, kind: input, shape index: {}]
  %s2 = inlined_call_operand.vmem [shape: f32[1,32], index: 2, kind: input, shape index: {}]
  %s3 = inlined_call_operand.vmem [shape: f32[4,32,8], index: 3, kind: input, shape index: {}]
  %s4 = inlined_call_operand.vmem [shape: f32[1,8], index: 4, kind: input, shape index: {}]
  %s5 = inlined_call_operand.vmem [shape: f32[8,16], index: 5, kind: input, shape index: {}]
  %s6 = inlined_call_operand.vmem [shape: f32[1,16], index: 6, kind: input, shape index: {}]
  %s7 = inlined_call_operand.vmem [shape: f32[16,16], index: 7, kind: input, shape index: {}]
  %s8 = inlined_call_operand.vmem [shape: f32[1,16], index: 8, kind: input, shape index: {}]
  %s9 = inlined_call_operand.hbm [shape: f32[2,1,1,16], index: 9, kind: output, shape index: {}]
  %s10 = sld [smem:[#allocation0]]
  $region69: #{distribution_encoder_forward.7} parent=0
    _
  %s12 = ssub.s32 1, %s10
  %s13 = scalar_select 0, %s12, %s10
  $region1: #{distribution_encoder_forward.7} parent=0
    #allocation3 [shape = 'u8[1024]{0}', space=vmem, size = 0x400, scoped, tag = 'output window, operand 0']
    #allocation4 [shape = 's32[2]{0}', space=sflag, size = 0x8, scoped, tag = 'scoped memory for distribution_encoder_forward.7']
    %14 = vsyncpa [#allocation4], 0
    %s15 = scalar_lea.sflag [#allocation4], 1
    %16 = vsyncpa %s15, 0
    loop: start=0, step=1, limit=4
    $region2: #{distribution_encoder_forward.7} parent=1 // loop_pre_header
      _
    $region3: #{distribution_encoder_forward.7} parent=1 // loop_header
      %s18 = sphi 0, %s22
      %p19 = scmp.ge.s32.totalorder %s18, 4
      %s28 = sphi 0, %s30
      %s31 = sphi 0, %s28
      %s32 = sphi 0, %s31
      %s48 = sphi 0, %s32
      %s52 = sphi 0, %s52
      %s54 = sphi 0, %s52
      %s55 = sphi 0, %s54
      %s69 = sphi 0, %s55
      %s73 = sphi 0, %s73
      %s75 = sphi 0, %s73
      %s76 = sphi 0, %s75
      %s90 = sphi 0, %s76
      %s94 = sphi 0, %s94
      %s96 = sphi 0, %s94
      %s97 = sphi 0, %s96
      %s111 = sphi 0, %s97
      %s115 = sphi 0, %s115
      %s117 = sphi 0, %s115
      %s118 = sphi 0, %s117
      %s132 = sphi 0, %s118
      %s136 = sphi 0, %s136
      %s138 = sphi 0, %s136
      %s139 = sphi 0, %s138
      %s153 = sphi 0, %s139
      %s157 = sphi 0, %s157
      %s159 = sphi 0, %s157
      %s160 = sphi 0, %s159
      %s174 = sphi 0, %s160
      %s178 = sphi 0, %s178
      %s180 = sphi 0, %s178
      %s181 = sphi 0, %s180
      %s195 = sphi 0, %s181
      %s199 = sphi 0, %s199
      %s201 = sphi 0, %s199
      %s202 = sphi 0, %s201
      %s216 = sphi 0, %s202
      %s222 = sphi 0, %s224
      %s225 = sphi 0, %s222
      %s226 = sphi 0, %s225
      %s242 = sphi 0, %s226
    $region4: #{distribution_encoder_forward.7} parent=1 // loop_header_branch
      %21 = sbr.rel (%p19) target = $region8
    $region5: #{distribution_encoder_forward.7} parent=1 // loop_body
      %s23 = ssub.s32 %s18, 1
      %s24 = ssub.s32 %s18, 2
      %s25 = sadd.s32 %s18, 1
      %s26 = ssub.s32 %s18, %s25
      %p27 = scmp.eq.s32.totalorder %s26, 0
      %s29 = sadd.s32 %s28, 1
      %s30 = scalar_select %p27, %s28, %s29
      %p33 = pneg %p27
      %p34 = scmp.eq.s32.totalorder %s18, 1
      %p35 = por %p33, %p34
      %p36 = scmp.ne.s32.totalorder %s28, %s31
      %p37 = scmp.eq.s32.totalorder %s18, 0
      %p38 = por %p36, %p37
      %p39 = scmp.ne.s32.totalorder %s28, %s31
      %p40 = scmp.eq.s32.totalorder %s23, 1
      %p41 = por %p39, %p40
      %p42 = scmp.ne.s32.totalorder %s31, %s32
      %p43 = scmp.eq.s32.totalorder %s23, 0
      %p44 = por %p42, %p43
      %p45 = scmp.ne.s32.totalorder %s31, %s32
      %p46 = scmp.eq.s32.totalorder %s24, 1
      %p47 = por %p45, %p46
      %p49 = scmp.ne.s32.totalorder %s32, %s48
      %p50 = scmp.eq.s32.totalorder %s24, 0
      %p51 = por %p49, %p50
      %s53 = sadd.s32 %s52, 1
      %p56 = scmp.eq.s32.totalorder %s18, 1
      %p57 = scmp.ne.s32.totalorder %s52, %s54
      %p58 = scmp.eq.s32.totalorder %s18, 0
      %p59 = por %p57, %p58
      %p60 = scmp.ne.s32.totalorder %s52, %s54
      %p61 = scmp.eq.s32.totalorder %s23, 1
      %p62 = por %p60, %p61
      %p63 = scmp.ne.s32.totalorder %s54, %s55
      %p64 = scmp.eq.s32.totalorder %s23, 0
      %p65 = por %p63, %p64
      %p66 = scmp.ne.s32.totalorder %s54, %s55
      %p67 = scmp.eq.s32.totalorder %s24, 1
      %p68 = por %p66, %p67
      %p70 = scmp.ne.s32.totalorder %s55, %s69
      %p71 = scmp.eq.s32.totalorder %s24, 0
      %p72 = por %p70, %p71
      %s74 = sadd.s32 %s73, 1
      %p77 = scmp.eq.s32.totalorder %s18, 1
      %p78 = scmp.ne.s32.totalorder %s73, %s75
      %p79 = scmp.eq.s32.totalorder %s18, 0
      %p80 = por %p78, %p79
      %p81 = scmp.ne.s32.totalorder %s73, %s75
      %p82 = scmp.eq.s32.totalorder %s23, 1
      %p83 = por %p81, %p82
      %p84 = scmp.ne.s32.totalorder %s75, %s76
      %p85 = scmp.eq.s32.totalorder %s23, 0
      %p86 = por %p84, %p85
      %p87 = scmp.ne.s32.totalorder %s75, %s76
      %p88 = scmp.eq.s32.totalorder %s24, 1
      %p89 = por %p87, %p88
      %p91 = scmp.ne.s32.totalorder %s76, %s90
      %p92 = scmp.eq.s32.totalorder %s24, 0
      %p93 = por %p91, %p92
      %s95 = sadd.s32 %s94, 1
      %p98 = scmp.eq.s32.totalorder %s18, 1
      %p99 = scmp.ne.s32.totalorder %s94, %s96
      %p100 = scmp.eq.s32.totalorder %s18, 0
      %p101 = por %p99, %p100
      %p102 = scmp.ne.s32.totalorder %s94, %s96
      %p103 = scmp.eq.s32.totalorder %s23, 1
      %p104 = por %p102, %p103
      %p105 = scmp.ne.s32.totalorder %s96, %s97
      %p106 = scmp.eq.s32.totalorder %s23, 0
      %p107 = por %p105, %p106
      %p108 = scmp.ne.s32.totalorder %s96, %s97
      %p109 = scmp.eq.s32.totalorder %s24, 1
      %p110 = por %p108, %p109
      %p112 = scmp.ne.s32.totalorder %s97, %s111
      %p113 = scmp.eq.s32.totalorder %s24, 0
      %p114 = por %p112, %p113
      %s116 = sadd.s32 %s115, 1
      %p119 = scmp.eq.s32.totalorder %s18, 1
      %p120 = scmp.ne.s32.totalorder %s115, %s117
      %p121 = scmp.eq.s32.totalorder %s18, 0
      %p122 = por %p120, %p121
      %p123 = scmp.ne.s32.totalorder %s115, %s117
      %p124 = scmp.eq.s32.totalorder %s23, 1
      %p125 = por %p123, %p124
      %p126 = scmp.ne.s32.totalorder %s117, %s118
      %p127 = scmp.eq.s32.totalorder %s23, 0
      %p128 = por %p126, %p127
      %p129 = scmp.ne.s32.totalorder %s117, %s118
      %p130 = scmp.eq.s32.totalorder %s24, 1
      %p131 = por %p129, %p130
      %p133 = scmp.ne.s32.totalorder %s118, %s132
      %p134 = scmp.eq.s32.totalorder %s24, 0
      %p135 = por %p133, %p134
      %s137 = sadd.s32 %s136, 1
      %p140 = scmp.eq.s32.totalorder %s18, 1
      %p141 = scmp.ne.s32.totalorder %s136, %s138
      %p142 = scmp.eq.s32.totalorder %s18, 0
      %p143 = por %p141, %p142
      %p144 = scmp.ne.s32.totalorder %s136, %s138
      %p145 = scmp.eq.s32.totalorder %s23, 1
      %p146 = por %p144, %p145
      %p147 = scmp.ne.s32.totalorder %s138, %s139
      %p148 = scmp.eq.s32.totalorder %s23, 0
      %p149 = por %p147, %p148
      %p150 = scmp.ne.s32.totalorder %s138, %s139
      %p151 = scmp.eq.s32.totalorder %s24, 1
      %p152 = por %p150, %p151
      %p154 = scmp.ne.s32.totalorder %s139, %s153
      %p155 = scmp.eq.s32.totalorder %s24, 0
      %p156 = por %p154, %p155
      %s158 = sadd.s32 %s157, 1
      %p161 = scmp.eq.s32.totalorder %s18, 1
      %p162 = scmp.ne.s32.totalorder %s157, %s159
      %p163 = scmp.eq.s32.totalorder %s18, 0
      %p164 = por %p162, %p163
      %p165 = scmp.ne.s32.totalorder %s157, %s159
      %p166 = scmp.eq.s32.totalorder %s23, 1
      %p167 = por %p165, %p166
      %p168 = scmp.ne.s32.totalorder %s159, %s160
      %p169 = scmp.eq.s32.totalorder %s23, 0
      %p170 = por %p168, %p169
      %p171 = scmp.ne.s32.totalorder %s159, %s160
      %p172 = scmp.eq.s32.totalorder %s24, 1
      %p173 = por %p171, %p172
      %p175 = scmp.ne.s32.totalorder %s160, %s174
      %p176 = scmp.eq.s32.totalorder %s24, 0
      %p177 = por %p175, %p176
      %s179 = sadd.s32 %s178, 1
      %p182 = scmp.eq.s32.totalorder %s18, 1
      %p183 = scmp.ne.s32.totalorder %s178, %s180
      %p184 = scmp.eq.s32.totalorder %s18, 0
      %p185 = por %p183, %p184
      %p186 = scmp.ne.s32.totalorder %s178, %s180
      %p187 = scmp.eq.s32.totalorder %s23, 1
      %p188 = por %p186, %p187
      %p189 = scmp.ne.s32.totalorder %s180, %s181
      %p190 = scmp.eq.s32.totalorder %s23, 0
      %p191 = por %p189, %p190
      %p192 = scmp.ne.s32.totalorder %s180, %s181
      %p193 = scmp.eq.s32.totalorder %s24, 1
      %p194 = por %p192, %p193
      %p196 = scmp.ne.s32.totalorder %s181, %s195
      %p197 = scmp.eq.s32.totalorder %s24, 0
      %p198 = por %p196, %p197
      %s200 = sadd.s32 %s199, 1
      %p203 = scmp.eq.s32.totalorder %s18, 1
      %p204 = scmp.ne.s32.totalorder %s199, %s201
      %p205 = scmp.eq.s32.totalorder %s18, 0
      %p206 = por %p204, %p205
      %p207 = scmp.ne.s32.totalorder %s199, %s201
      %p208 = scmp.eq.s32.totalorder %s23, 1
      %p209 = por %p207, %p208
      %p210 = scmp.ne.s32.totalorder %s201, %s202
      %p211 = scmp.eq.s32.totalorder %s23, 0
      %p212 = por %p210, %p211
      %p213 = scmp.ne.s32.totalorder %s201, %s202
      %p214 = scmp.eq.s32.totalorder %s24, 1
      %p215 = por %p213, %p214
      %p217 = scmp.ne.s32.totalorder %s202, %s216
      %p218 = scmp.eq.s32.totalorder %s24, 0
      %p219 = por %p217, %p218
      %s220 = ssub.s32 %s18, %s25
      %p221 = scmp.eq.s32.totalorder %s220, 0
      %s223 = sadd.s32 %s222, 1
      %s224 = scalar_select %p221, %s222, %s223
      %p227 = pneg %p221
      %p228 = scmp.eq.s32.totalorder %s18, 1
      %p229 = por %p227, %p228
      %p230 = scmp.ne.s32.totalorder %s222, %s225
      %p231 = scmp.eq.s32.totalorder %s18, 0
      %p232 = por %p230, %p231
      %p233 = scmp.ne.s32.totalorder %s222, %s225
      %p234 = scmp.eq.s32.totalorder %s23, 1
      %p235 = por %p233, %p234
      %p236 = scmp.ne.s32.totalorder %s225, %s226
      %p237 = scmp.eq.s32.totalorder %s23, 0
      %p238 = por %p236, %p237
      %p239 = scmp.ne.s32.totalorder %s225, %s226
      %p240 = scmp.eq.s32.totalorder %s24, 1
      %p241 = por %p239, %p240
      %p243 = scmp.ne.s32.totalorder %s226, %s242
      %p244 = scmp.eq.s32.totalorder %s24, 0
      %p245 = por %p243, %p244
      %p246 = scmp.le.s32.totalorder 1, %s18
      %p247 = scmp.lt.s32.totalorder %s18, 3
      %p248 = pnand %p246, %p247
      %p249 = pneg %p248
      // Predicated region
      $region9: #{distribution_encoder_forward.7} parent=5 // pred_check
        _
      $region10: #{distribution_encoder_forward.7} parent=5 // pred_check_branch
        %251 = sbr.rel (%p248) target = $region12
      $region11: #{distribution_encoder_forward.7} parent=5 // pred_region
        %s252 = ssub.s32 %s18, 1
        // Predicated region
        $region13: #{distribution_encoder_forward.7} parent=11 // pred_check
          %p253 = pneg %p65
        $region14: #{distribution_encoder_forward.7} parent=11 // pred_check_branch
          %255 = sbr.rel (%p253) target = $region16
        $region15: #{distribution_encoder_forward.7} parent=11 // pred_region
          _
        $region16: #{distribution_encoder_forward.7} parent=11 // pred_fallthru
          _
        // Predicated region
        $region17: #{distribution_encoder_forward.7} parent=11 // pred_check
          %p256 = pneg %p86
        $region18: #{distribution_encoder_forward.7} parent=11 // pred_check_branch
          %258 = sbr.rel (%p256) target = $region20
        $region19: #{distribution_encoder_forward.7} parent=11 // pred_region
          _
        $region20: #{distribution_encoder_forward.7} parent=11 // pred_fallthru
          _
        // Predicated region
        $region21: #{distribution_encoder_forward.7} parent=11 // pred_check
          %p259 = pneg %p107
        $region22: #{distribution_encoder_forward.7} parent=11 // pred_check_branch
          %261 = sbr.rel (%p259) target = $region24
        $region23: #{distribution_encoder_forward.7} parent=11 // pred_region
          _
        $region24: #{distribution_encoder_forward.7} parent=11 // pred_fallthru
          _
        // Predicated region
        $region25: #{distribution_encoder_forward.7} parent=11 // pred_check
          %p262 = pneg %p128
        $region26: #{distribution_encoder_forward.7} parent=11 // pred_check_branch
          %264 = sbr.rel (%p262) target = $region28
        $region27: #{distribution_encoder_forward.7} parent=11 // pred_region
          _
        $region28: #{distribution_encoder_forward.7} parent=11 // pred_fallthru
          _
        // Predicated region
        $region29: #{distribution_encoder_forward.7} parent=11 // pred_check
          %p265 = pneg %p149
        $region30: #{distribution_encoder_forward.7} parent=11 // pred_check_branch
          %267 = sbr.rel (%p265) target = $region32
        $region31: #{distribution_encoder_forward.7} parent=11 // pred_region
          _
        $region32: #{distribution_encoder_forward.7} parent=11 // pred_fallthru
          _
        // Predicated region
        $region33: #{distribution_encoder_forward.7} parent=11 // pred_check
          %p268 = pneg %p170
        $region34: #{distribution_encoder_forward.7} parent=11 // pred_check_branch
          %270 = sbr.rel (%p268) target = $region36
        $region35: #{distribution_encoder_forward.7} parent=11 // pred_region
          _
        $region36: #{distribution_encoder_forward.7} parent=11 // pred_fallthru
          _
        // Predicated region
        $region37: #{distribution_encoder_forward.7} parent=11 // pred_check
          %p271 = pneg %p191
        $region38: #{distribution_encoder_forward.7} parent=11 // pred_check_branch
          %273 = sbr.rel (%p271) target = $region40
        $region39: #{distribution_encoder_forward.7} parent=11 // pred_region
          _
        $region40: #{distribution_encoder_forward.7} parent=11 // pred_fallthru
          _
        // Predicated region
        $region41: #{distribution_encoder_forward.7} parent=11 // pred_check
          %p274 = pneg %p212
        $region42: #{distribution_encoder_forward.7} parent=11 // pred_check_branch
          %276 = sbr.rel (%p274) target = $region44
        $region43: #{distribution_encoder_forward.7} parent=11 // pred_region
          _
        $region44: #{distribution_encoder_forward.7} parent=11 // pred_fallthru
          _
      $region12: #{distribution_encoder_forward.7} parent=5 // pred_fallthru
        _
      %p277 = scmp.lt.s32.totalorder %s18, 2
      // Predicated region
      $region45: #{distribution_encoder_forward.7} parent=5 // pred_check
        %p278 = pneg %p277
      $region46: #{distribution_encoder_forward.7} parent=5 // pred_check_branch
        %280 = sbr.rel (%p278) target = $region48
      $region47: #{distribution_encoder_forward.7} parent=5 // pred_region
        // Predicated region
        $region49: #{distribution_encoder_forward.7} parent=47 // pred_check
          %p281 = pneg %p38
        $region50: #{distribution_encoder_forward.7} parent=47 // pred_check_branch
          %283 = sbr.rel (%p281) target = $region52
        $region51: #{distribution_encoder_forward.7} parent=47 // pred_region
          %p284 = scmp.lt.s32.totalorder %s18, 1
          %s285 = scalar_select %p284, %s18, 1
          %s286 = scalar_lea.vmem %s0, %s285
        $region52: #{distribution_encoder_forward.7} parent=47 // pred_fallthru
          _
      $region48: #{distribution_encoder_forward.7} parent=5 // pred_fallthru
        _
      %p287 = scmp.le.s32.totalorder 1, %s18
      %p288 = scmp.lt.s32.totalorder %s18, 3
      %p289 = pnand %p287, %p288
      %p290 = pneg %p289
      // Predicated region
      $region53: #{distribution_encoder_forward.7} parent=5 // pred_check
        _
      $region54: #{distribution_encoder_forward.7} parent=5 // pred_check_branch
        %292 = sbr.rel (%p289) target = $region56
      $region55: #{distribution_encoder_forward.7} parent=5 // pred_region
        %s293 = ssub.s32 %s18, 1
        %p294 = scmp.lt.s32.totalorder %s23, 1
        %s295 = scalar_select %p294, %s23, 1
        %s296 = scalar_lea.vmem %s0, %s295
        %p297 = pneg %p44
        %p298 = pneg %p41
        %p299 = pneg %p65
        %p300 = pneg %p62
        %p301 = pneg %p86
        %p302 = pneg %p83
        %p303 = pneg %p107
        %p304 = pneg %p104
        %p305 = pneg %p128
        %p306 = pneg %p125
        %p307 = pneg %p149
        %p308 = pneg %p146
        %p309 = pneg %p170
        %p310 = pneg %p167
        %p311 = pneg %p191
        %p312 = pneg %p188
        %p313 = pneg %p212
        %p314 = pneg %p209
        %p315 = pneg %p238
        %p316 = pneg %p235
        %s317 = sand.u32 %s225, 1
        %s318 = scalar_lea.sflag [#allocation4], %s317
        %s319 = sand.u32 %s225, 1
        %s320 = scalar_lea.vmem [#allocation3], %s319
        %p321 = scmp.lt.s32.totalorder %s23, 1
        %s322 = scalar_select %p321, %s23, 1
        %s323 = scalar_lea.vmem %s0, %s322
        %v324 = vld [vmem:[%s323] sm:$0x1]
        %v325 = vld [vmem:[%s1] sm:$0xff]
        %v326 = vld [vmem:[%s1 + $0x8] sm:$0xff]
        %v327 = vld [vmem:[%s1 + $0x10] sm:$0xff]
        %v328 = vld [vmem:[%s1 + $0x18] sm:$0xff]
        %v329 = vld [vmem:[%s1 + $0x20] sm:$0xff]
        %v330 = vld [vmem:[%s1 + $0x28] sm:$0xff]
        %v331 = vld [vmem:[%s1 + $0x30] sm:$0xff]
        %v332 = vld [vmem:[%s1 + $0x38] sm:$0xff]
        %v333 = vld [vmem:[%s2] sm:$0x1]
        %vm334 = vcmask 523264
        %v336 = vsel %vm334, %v324, 0
        %338 = vmatprep.subr.mxu0 0.0
        %339 = vmatpush1.msra.mxu0 0.0
        %340 = vmatprep.subr.mxu0 0.0
        %341 = vmatpush1.msra.mxu0 0.0
        %342 = vmatprep.subr.mxu0 0.0
        %343 = vmatpush1.msra.mxu0 0.0
        %344 = vmatprep.subr.mxu0 0.0
        %345 = vmatpush1.msra.mxu0 0.0
        %346 = vmatprep.subr.mxu0 0.0
        %347 = vmatpush1.msra.mxu0 0.0
        %348 = vmatprep.subr.mxu0 0.0
        %349 = vmatpush1.msra.mxu0 0.0
        %350 = vmatprep.subr.mxu0 0.0
        %351 = vmatpush1.msra.mxu0 0.0
        %352 = vmatprep.subr.mxu0 0.0
        %353 = vmatpush1.msra.mxu0 0.0
        %354 = vmatprep.subr.mxu0 0.0
        %355 = vmatpush1.msra.mxu0 %v332
        %356 = vmatprep.subr.mxu0 0.0
        %357 = vmatpush1.msra.mxu0 %v331
        %358 = vmatprep.subr.mxu0 0.0
        %359 = vmatpush1.msra.mxu0 %v330
        %360 = vmatprep.subr.mxu0 0.0
        %361 = vmatpush1.msra.mxu0 %v329
        %362 = vmatprep.subr.mxu0 0.0
        %363 = vmatpush1.msra.mxu0 %v328
        %364 = vmatprep.subr.mxu0 0.0
        %365 = vmatpush1.msra.mxu0 %v327
        %366 = vmatprep.subr.mxu0 0.0
        %367 = vmatpush1.msra.mxu0 %v326
        %368 = vmatprep.subr.mxu0 0.0
        %369 = vmatpush1.msra.mxu0 %v325
        %370 = vmatprep.subr.mxu0 0.0
        %371 = vmatpush2.msra.mxu0 0.0
        %372 = vmatprep.subr.mxu0 0.0
        %373 = vmatpush2.msra.mxu0 0.0
        %374 = vmatprep.subr.mxu0 0.0
        %375 = vmatpush2.msra.mxu0 0.0
        %376 = vmatprep.subr.mxu0 0.0
        %377 = vmatpush2.msra.mxu0 0.0
        %378 = vmatprep.subr.mxu0 0.0
        %379 = vmatpush2.msra.mxu0 0.0
        %380 = vmatprep.subr.mxu0 0.0
        %381 = vmatpush2.msra.mxu0 0.0
        %382 = vmatprep.subr.mxu0 0.0
        %383 = vmatpush2.msra.mxu0 0.0
        %384 = vmatprep.subr.mxu0 0.0
        %385 = vmatpush2.msra.mxu0 0.0
        %386 = vmatprep.subr.mxu0 0.0
        %387 = vmatpush2.msra.mxu0 0.0
        %388 = vmatprep.subr.mxu0 0.0
        %389 = vmatpush2.msra.mxu0 0.0
        %390 = vmatprep.subr.mxu0 0.0
        %391 = vmatpush2.msra.mxu0 0.0
        %392 = vmatprep.subr.mxu0 0.0
        %393 = vmatpush2.msra.mxu0 0.0
        %394 = vmatprep.subr.mxu0 0.0
        %395 = vmatpush2.msra.mxu0 0.0
        %396 = vmatprep.subr.mxu0 0.0
        %397 = vmatpush2.msra.mxu0 0.0
        %398 = vmatprep.subr.mxu0 0.0
        %399 = vmatpush2.msra.mxu0 0.0
        %400 = vmatprep.subr.mxu0 0.0
        %401 = vmatpush2.msra.mxu0 0.0
        %402 = vmatprep.mubr.f32.mxu0 0.0
        %403 = vmatmul.mubr.f32.gmra.mxu0 %v336
        %v404 = vpop.f32.mrf.mxu0
        %v405 = vadd.f32 %v333, %v404
        %v406 = vpop.f32.mrf.mxu0
        %407 = vdwg.mxu0
        %v408 = vmax.f32 %v405, 0.0
        %vm409 = vcmask 254976
        %410 = vst.msk [vmem:[#allocation2] sm:$0x3] %vm409, 0.0
        %411 = vst.msk [vmem:[#allocation2 + $0x2] sm:$0x3] %vm409, 0.0
        %s412 = scalar_lea.vmem [#allocation2], 2
        %vm413 = vcmask 253952
        %414 = vst.msk [vmem:[%s412 + $0x1] sm:$0x1] %vm413, %v408
        %v415 = vld [vmem:[#allocation2] sm:$0x1]
        %v416 = vld [vmem:[%s3] sm:$0xff]
        %v417 = vld [vmem:[%s3 + $0x8] sm:$0xff]
        %v418 = vld [vmem:[%s3 + $0x10] sm:$0xff]
        %v419 = vld [vmem:[%s3 + $0x18] sm:$0xff]
        %v420 = vld [vmem:[#allocation2 + $0x1] sm:$0x1]
        %s421 = scalar_lea.vmem %s3, 32
        %v422 = vld [vmem:[%s421] sm:$0xff]
        %v423 = vld [vmem:[%s421 + $0x8] sm:$0xff]
        %v424 = vld [vmem:[%s421 + $0x10] sm:$0xff]
        %v425 = vld [vmem:[%s421 + $0x18] sm:$0xff]
        %vm426 = vcmask 261120
        %v428 = vsel %vm426, %v420, 0
        %430 = vmatprep.subr.mxu0 0.0
        %431 = vmatpush1.msra.mxu0 0.0
        %432 = vmatprep.subr.mxu0 0.0
        %433 = vmatpush1.msra.mxu0 0.0
        %434 = vmatprep.subr.mxu0 0.0
        %435 = vmatpush1.msra.mxu0 0.0
        %436 = vmatprep.subr.mxu0 0.0
        %437 = vmatpush1.msra.mxu0 0.0
        %438 = vmatprep.subr.mxu0 0.0
        %439 = vmatpush1.msra.mxu0 0.0
        %440 = vmatprep.subr.mxu0 0.0
        %441 = vmatpush1.msra.mxu0 0.0
        %442 = vmatprep.subr.mxu0 0.0
        %443 = vmatpush1.msra.mxu0 0.0
        %444 = vmatprep.subr.mxu0 0.0
        %445 = vmatpush1.msra.mxu0 0.0
        %446 = vmatprep.subr.mxu0 0.0
        %447 = vmatpush1.msra.mxu0 0.0
        %448 = vmatprep.subr.mxu0 0.0
        %449 = vmatpush1.msra.mxu0 0.0
        %450 = vmatprep.subr.mxu0 0.0
        %451 = vmatpush1.msra.mxu0 0.0
        %452 = vmatprep.subr.mxu0 0.0
        %453 = vmatpush1.msra.mxu0 0.0
        %454 = vmatprep.subr.mxu0 0.0
        %455 = vmatpush1.msra.mxu0 %v425
        %456 = vmatprep.subr.mxu0 0.0
        %457 = vmatpush1.msra.mxu0 %v424
        %458 = vmatprep.subr.mxu0 0.0
        %459 = vmatpush1.msra.mxu0 %v423
        %460 = vmatprep.subr.mxu0 0.0
        %461 = vmatpush1.msra.mxu0 %v422
        %462 = vmatprep.subr.mxu0 0.0
        %463 = vmatpush2.msra.mxu0 0.0
        %464 = vmatprep.subr.mxu0 0.0
        %465 = vmatpush2.msra.mxu0 0.0
        %466 = vmatprep.subr.mxu0 0.0
        %467 = vmatpush2.msra.mxu0 0.0
        %468 = vmatprep.subr.mxu0 0.0
        %469 = vmatpush2.msra.mxu0 0.0
        %470 = vmatprep.subr.mxu0 0.0
        %471 = vmatpush2.msra.mxu0 0.0
        %472 = vmatprep.subr.mxu0 0.0
        %473 = vmatpush2.msra.mxu0 0.0
        %474 = vmatprep.subr.mxu0 0.0
        %475 = vmatpush2.msra.mxu0 0.0
        %476 = vmatprep.subr.mxu0 0.0
        %477 = vmatpush2.msra.mxu0 0.0
        %478 = vmatprep.subr.mxu0 0.0
        %479 = vmatpush2.msra.mxu0 0.0
        %480 = vmatprep.subr.mxu0 0.0
        %481 = vmatpush2.msra.mxu0 0.0
        %482 = vmatprep.subr.mxu0 0.0
        %483 = vmatpush2.msra.mxu0 0.0
        %484 = vmatprep.subr.mxu0 0.0
        %485 = vmatpush2.msra.mxu0 0.0
        %486 = vmatprep.subr.mxu0 0.0
        %487 = vmatpush2.msra.mxu0 0.0
        %488 = vmatprep.subr.mxu0 0.0
        %489 = vmatpush2.msra.mxu0 0.0
        %490 = vmatprep.subr.mxu0 0.0
        %491 = vmatpush2.msra.mxu0 0.0
        %492 = vmatprep.subr.mxu0 0.0
        %493 = vmatpush2.msra.mxu0 0.0
        %494 = vmatprep.mubr.f32.mxu0 0.0
        %495 = vmatmul.mubr.f32.gmra.mxu0 %v428
        %v496 = vpop.f32.mrf.mxu0
        %v497 = vadd.f32 0.0, %v496
        %v498 = vpop.f32.mrf.mxu0
        %499 = vdwg.mxu0
        %v501 = vsel %vm426, %v415, 0
        %503 = vmatprep.subr.mxu0 0.0
        %504 = vmatpush1.msra.mxu0 0.0
        %505 = vmatprep.subr.mxu0 0.0
        %506 = vmatpush1.msra.mxu0 0.0
        %507 = vmatprep.subr.mxu0 0.0
        %508 = vmatpush1.msra.mxu0 0.0
        %509 = vmatprep.subr.mxu0 0.0
        %510 = vmatpush1.msra.mxu0 0.0
        %511 = vmatprep.subr.mxu0 0.0
        %512 = vmatpush1.msra.mxu0 0.0
        %513 = vmatprep.subr.mxu0 0.0
        %514 = vmatpush1.msra.mxu0 0.0
        %515 = vmatprep.subr.mxu0 0.0
        %516 = vmatpush1.msra.mxu0 0.0
        %517 = vmatprep.subr.mxu0 0.0
        %518 = vmatpush1.msra.mxu0 0.0
        %519 = vmatprep.subr.mxu0 0.0
        %520 = vmatpush1.msra.mxu0 0.0
        %521 = vmatprep.subr.mxu0 0.0
        %522 = vmatpush1.msra.mxu0 0.0
        %523 = vmatprep.subr.mxu0 0.0
        %524 = vmatpush1.msra.mxu0 0.0
        %525 = vmatprep.subr.mxu0 0.0
        %526 = vmatpush1.msra.mxu0 0.0
        %527 = vmatprep.subr.mxu0 0.0
        %528 = vmatpush1.msra.mxu0 %v419
        %529 = vmatprep.subr.mxu0 0.0
        %530 = vmatpush1.msra.mxu0 %v418
        %531 = vmatprep.subr.mxu0 0.0
        %532 = vmatpush1.msra.mxu0 %v417
        %533 = vmatprep.subr.mxu0 0.0
        %534 = vmatpush1.msra.mxu0 %v416
        %535 = vmatprep.subr.mxu0 0.0
        %536 = vmatpush2.msra.mxu0 0.0
        %537 = vmatprep.subr.mxu0 0.0
        %538 = vmatpush2.msra.mxu0 0.0
        %539 = vmatprep.subr.mxu0 0.0
        %540 = vmatpush2.msra.mxu0 0.0
        %541 = vmatprep.subr.mxu0 0.0
        %542 = vmatpush2.msra.mxu0 0.0
        %543 = vmatprep.subr.mxu0 0.0
        %544 = vmatpush2.msra.mxu0 0.0
        %545 = vmatprep.subr.mxu0 0.0
        %546 = vmatpush2.msra.mxu0 0.0
        %547 = vmatprep.subr.mxu0 0.0
        %548 = vmatpush2.msra.mxu0 0.0
        %549 = vmatprep.subr.mxu0 0.0
        %550 = vmatpush2.msra.mxu0 0.0
        %551 = vmatprep.subr.mxu0 0.0
        %552 = vmatpush2.msra.mxu0 0.0
        %553 = vmatprep.subr.mxu0 0.0
        %554 = vmatpush2.msra.mxu0 0.0
        %555 = vmatprep.subr.mxu0 0.0
        %556 = vmatpush2.msra.mxu0 0.0
        %557 = vmatprep.subr.mxu0 0.0
        %558 = vmatpush2.msra.mxu0 0.0
        %559 = vmatprep.subr.mxu0 0.0
        %560 = vmatpush2.msra.mxu0 0.0
        %561 = vmatprep.subr.mxu0 0.0
        %562 = vmatpush2.msra.mxu0 0.0
        %563 = vmatprep.subr.mxu0 0.0
        %564 = vmatpush2.msra.mxu0 0.0
        %565 = vmatprep.subr.mxu0 0.0
        %566 = vmatpush2.msra.mxu0 0.0
        %567 = vmatprep.mubr.f32.mxu0 0.0
        %568 = vmatmul.mubr.f32.gmra.mxu0 %v501
        %v569 = vpop.f32.mrf.mxu0
        %v570 = vadd.f32 %v497, %v569
        %v571 = vpop.f32.mrf.mxu0
        %572 = vdwg.mxu0
        %v573 = vld [vmem:[%s412] sm:$0x1]
        %s574 = scalar_lea.vmem %s3, 64
        %v575 = vld [vmem:[%s574] sm:$0xff]
        %v576 = vld [vmem:[%s574 + $0x8] sm:$0xff]
        %v577 = vld [vmem:[%s574 + $0x10] sm:$0xff]
        %v578 = vld [vmem:[%s574 + $0x18] sm:$0xff]
        %v580 = vsel %vm426, %v573, 0
        %582 = vmatprep.subr.mxu0 0.0
        %583 = vmatpush1.msra.mxu0 0.0
        %584 = vmatprep.subr.mxu0 0.0
        %585 = vmatpush1.msra.mxu0 0.0
        %586 = vmatprep.subr.mxu0 0.0
        %587 = vmatpush1.msra.mxu0 0.0
        %588 = vmatprep.subr.mxu0 0.0
        %589 = vmatpush1.msra.mxu0 0.0
        %590 = vmatprep.subr.mxu0 0.0
        %591 = vmatpush1.msra.mxu0 0.0
        %592 = vmatprep.subr.mxu0 0.0
        %593 = vmatpush1.msra.mxu0 0.0
        %594 = vmatprep.subr.mxu0 0.0
        %595 = vmatpush1.msra.mxu0 0.0
        %596 = vmatprep.subr.mxu0 0.0
        %597 = vmatpush1.msra.mxu0 0.0
        %598 = vmatprep.subr.mxu0 0.0
        %599 = vmatpush1.msra.mxu0 0.0
        %600 = vmatprep.subr.mxu0 0.0
        %601 = vmatpush1.msra.mxu0 0.0
        %602 = vmatprep.subr.mxu0 0.0
        %603 = vmatpush1.msra.mxu0 0.0
        %604 = vmatprep.subr.mxu0 0.0
        %605 = vmatpush1.msra.mxu0 0.0
        %606 = vmatprep.subr.mxu0 0.0
        %607 = vmatpush1.msra.mxu0 %v578
        %608 = vmatprep.subr.mxu0 0.0
        %609 = vmatpush1.msra.mxu0 %v577
        %610 = vmatprep.subr.mxu0 0.0
        %611 = vmatpush1.msra.mxu0 %v576
        %612 = vmatprep.subr.mxu0 0.0
        %613 = vmatpush1.msra.mxu0 %v575
        %614 = vmatprep.subr.mxu0 0.0
        %615 = vmatpush2.msra.mxu0 0.0
        %616 = vmatprep.subr.mxu0 0.0
        %617 = vmatpush2.msra.mxu0 0.0
        %618 = vmatprep.subr.mxu0 0.0
        %619 = vmatpush2.msra.mxu0 0.0
        %620 = vmatprep.subr.mxu0 0.0
        %621 = vmatpush2.msra.mxu0 0.0
        %622 = vmatprep.subr.mxu0 0.0
        %623 = vmatpush2.msra.mxu0 0.0
        %624 = vmatprep.subr.mxu0 0.0
        %625 = vmatpush2.msra.mxu0 0.0
        %626 = vmatprep.subr.mxu0 0.0
        %627 = vmatpush2.msra.mxu0 0.0
        %628 = vmatprep.subr.mxu0 0.0
        %629 = vmatpush2.msra.mxu0 0.0
        %630 = vmatprep.subr.mxu0 0.0
        %631 = vmatpush2.msra.mxu0 0.0
        %632 = vmatprep.subr.mxu0 0.0
        %633 = vmatpush2.msra.mxu0 0.0
        %634 = vmatprep.subr.mxu0 0.0
        %635 = vmatpush2.msra.mxu0 0.0
        %636 = vmatprep.subr.mxu0 0.0
        %637 = vmatpush2.msra.mxu0 0.0
        %638 = vmatprep.subr.mxu0 0.0
        %639 = vmatpush2.msra.mxu0 0.0
        %640 = vmatprep.subr.mxu0 0.0
        %641 = vmatpush2.msra.mxu0 0.0
        %642 = vmatprep.subr.mxu0 0.0
        %643 = vmatpush2.msra.mxu0 0.0
        %644 = vmatprep.subr.mxu0 0.0
        %645 = vmatpush2.msra.mxu0 0.0
        %646 = vmatprep.mubr.f32.mxu0 0.0
        %647 = vmatmul.mubr.f32.gmra.mxu0 %v580
        %v648 = vpop.f32.mrf.mxu0
        %v649 = vadd.f32 0.0, %v648
        %v650 = vpop.f32.mrf.mxu0
        %651 = vdwg.mxu0
        %v652 = vadd.f32 %v570, %v649
        %v653 = vld [vmem:[%s412 + $0x1] sm:$0x1]
        %s654 = scalar_lea.vmem %s3, 96
        %v655 = vld [vmem:[%s654] sm:$0xff]
        %v656 = vld [vmem:[%s654 + $0x8] sm:$0xff]
        %v657 = vld [vmem:[%s654 + $0x10] sm:$0xff]
        %v658 = vld [vmem:[%s654 + $0x18] sm:$0xff]
        %v660 = vsel %vm426, %v653, 0
        %662 = vmatprep.subr.mxu0 0.0
        %663 = vmatpush1.msra.mxu0 0.0
        %664 = vmatprep.subr.mxu0 0.0
        %665 = vmatpush1.msra.mxu0 0.0
        %666 = vmatprep.subr.mxu0 0.0
        %667 = vmatpush1.msra.mxu0 0.0
        %668 = vmatprep.subr.mxu0 0.0
        %669 = vmatpush1.msra.mxu0 0.0
        %670 = vmatprep.subr.mxu0 0.0
        %671 = vmatpush1.msra.mxu0 0.0
        %672 = vmatprep.subr.mxu0 0.0
        %673 = vmatpush1.msra.mxu0 0.0
        %674 = vmatprep.subr.mxu0 0.0
        %675 = vmatpush1.msra.mxu0 0.0
        %676 = vmatprep.subr.mxu0 0.0
        %677 = vmatpush1.msra.mxu0 0.0
        %678 = vmatprep.subr.mxu0 0.0
        %679 = vmatpush1.msra.mxu0 0.0
        %680 = vmatprep.subr.mxu0 0.0
        %681 = vmatpush1.msra.mxu0 0.0
        %682 = vmatprep.subr.mxu0 0.0
        %683 = vmatpush1.msra.mxu0 0.0
        %684 = vmatprep.subr.mxu0 0.0
        %685 = vmatpush1.msra.mxu0 0.0
        %686 = vmatprep.subr.mxu0 0.0
        %687 = vmatpush1.msra.mxu0 %v658
        %688 = vmatprep.subr.mxu0 0.0
        %689 = vmatpush1.msra.mxu0 %v657
        %690 = vmatprep.subr.mxu0 0.0
        %691 = vmatpush1.msra.mxu0 %v656
        %692 = vmatprep.subr.mxu0 0.0
        %693 = vmatpush1.msra.mxu0 %v655
        %694 = vmatprep.subr.mxu0 0.0
        %695 = vmatpush2.msra.mxu0 0.0
        %696 = vmatprep.subr.mxu0 0.0
        %697 = vmatpush2.msra.mxu0 0.0
        %698 = vmatprep.subr.mxu0 0.0
        %699 = vmatpush2.msra.mxu0 0.0
        %700 = vmatprep.subr.mxu0 0.0
        %701 = vmatpush2.msra.mxu0 0.0
        %702 = vmatprep.subr.mxu0 0.0
        %703 = vmatpush2.msra.mxu0 0.0
        %704 = vmatprep.subr.mxu0 0.0
        %705 = vmatpush2.msra.mxu0 0.0
        %706 = vmatprep.subr.mxu0 0.0
        %707 = vmatpush2.msra.mxu0 0.0
        %708 = vmatprep.subr.mxu0 0.0
        %709 = vmatpush2.msra.mxu0 0.0
        %710 = vmatprep.subr.mxu0 0.0
        %711 = vmatpush2.msra.mxu0 0.0
        %712 = vmatprep.subr.mxu0 0.0
        %713 = vmatpush2.msra.mxu0 0.0
        %714 = vmatprep.subr.mxu0 0.0
        %715 = vmatpush2.msra.mxu0 0.0
        %716 = vmatprep.subr.mxu0 0.0
        %717 = vmatpush2.msra.mxu0 0.0
        %718 = vmatprep.subr.mxu0 0.0
        %719 = vmatpush2.msra.mxu0 0.0
        %720 = vmatprep.subr.mxu0 0.0
        %721 = vmatpush2.msra.mxu0 0.0
        %722 = vmatprep.subr.mxu0 0.0
        %723 = vmatpush2.msra.mxu0 0.0
        %724 = vmatprep.subr.mxu0 0.0
        %725 = vmatpush2.msra.mxu0 0.0
        %726 = vmatprep.mubr.f32.mxu0 0.0
        %727 = vmatmul.mubr.f32.gmra.mxu0 %v660
        %v728 = vpop.f32.mrf.mxu0
        %v729 = vadd.f32 0.0, %v728
        %v730 = vpop.f32.mrf.mxu0
        %731 = vdwg.mxu0
        %v732 = vadd.f32 %v652, %v729
        %v733 = vld [vmem:[%s4] sm:$0x1]
        %v734 = vadd.f32 %v732, %v733
        %v735 = vmax.f32 %v734, 0.0
        %v736 = vld [vmem:[%s5] sm:$0xff]
        %v737 = vld [vmem:[%s6] sm:$0x1]
        %vm738 = vcmask 64512
        %v740 = vsel %vm738, %v735, 0
        %742 = vmatprep.subr.mxu0 0.0
        %743 = vmatpush1.msra.mxu0 0.0
        %744 = vmatprep.subr.mxu0 0.0
        %745 = vmatpush1.msra.mxu0 0.0
        %746 = vmatprep.subr.mxu0 0.0
        %747 = vmatpush1.msra.mxu0 0.0
        %748 = vmatprep.subr.mxu0 0.0
        %749 = vmatpush1.msra.mxu0 0.0
        %750 = vmatprep.subr.mxu0 0.0
        %751 = vmatpush1.msra.mxu0 0.0
        %752 = vmatprep.subr.mxu0 0.0
        %753 = vmatpush1.msra.mxu0 0.0
        %754 = vmatprep.subr.mxu0 0.0
        %755 = vmatpush1.msra.mxu0 0.0
        %756 = vmatprep.subr.mxu0 0.0
        %757 = vmatpush1.msra.mxu0 0.0
        %758 = vmatprep.subr.mxu0 0.0
        %759 = vmatpush1.msra.mxu0 0.0
        %760 = vmatprep.subr.mxu0 0.0
        %761 = vmatpush1.msra.mxu0 0.0
        %762 = vmatprep.subr.mxu0 0.0
        %763 = vmatpush1.msra.mxu0 0.0
        %764 = vmatprep.subr.mxu0 0.0
        %765 = vmatpush1.msra.mxu0 0.0
        %766 = vmatprep.subr.mxu0 0.0
        %767 = vmatpush1.msra.mxu0 0.0
        %768 = vmatprep.subr.mxu0 0.0
        %769 = vmatpush1.msra.mxu0 0.0
        %770 = vmatprep.subr.mxu0 0.0
        %771 = vmatpush1.msra.mxu0 0.0
        %772 = vmatprep.subr.mxu0 0.0
        %773 = vmatpush1.msra.mxu0 %v736
        %774 = vmatprep.subr.mxu0 0.0
        %775 = vmatpush2.msra.mxu0 0.0
        %776 = vmatprep.subr.mxu0 0.0
        %777 = vmatpush2.msra.mxu0 0.0
        %778 = vmatprep.subr.mxu0 0.0
        %779 = vmatpush2.msra.mxu0 0.0
        %780 = vmatprep.subr.mxu0 0.0
        %781 = vmatpush2.msra.mxu0 0.0
        %782 = vmatprep.subr.mxu0 0.0
        %783 = vmatpush2.msra.mxu0 0.0
        %784 = vmatprep.subr.mxu0 0.0
        %785 = vmatpush2.msra.mxu0 0.0
        %786 = vmatprep.subr.mxu0 0.0
        %787 = vmatpush2.msra.mxu0 0.0
        %788 = vmatprep.subr.mxu0 0.0
        %789 = vmatpush2.msra.mxu0 0.0
        %790 = vmatprep.subr.mxu0 0.0
        %791 = vmatpush2.msra.mxu0 0.0
        %792 = vmatprep.subr.mxu0 0.0
        %793 = vmatpush2.msra.mxu0 0.0
        %794 = vmatprep.subr.mxu0 0.0
        %795 = vmatpush2.msra.mxu0 0.0
        %796 = vmatprep.subr.mxu0 0.0
        %797 = vmatpush2.msra.mxu0 0.0
        %798 = vmatprep.subr.mxu0 0.0
        %799 = vmatpush2.msra.mxu0 0.0
        %800 = vmatprep.subr.mxu0 0.0
        %801 = vmatpush2.msra.mxu0 0.0
        %802 = vmatprep.subr.mxu0 0.0
        %803 = vmatpush2.msra.mxu0 0.0
        %804 = vmatprep.subr.mxu0 0.0
        %805 = vmatpush2.msra.mxu0 0.0
        %806 = vmatprep.mubr.f32.mxu0 0.0
        %807 = vmatmul.mubr.f32.gmra.mxu0 %v740
        %v808 = vpop.f32.mrf.mxu0
        %v809 = vadd.f32 %v737, %v808
        %v810 = vpop.f32.mrf.mxu0
        %811 = vdwg.mxu0
        %v812 = vmax.f32 %v809, 0.0
        %813 = vrot.lane.b32.xlu0 %v324, 112
        %v814 = vpop.permute.xlu0 %813
        %v816 = vmax.f32 %v324, %v814
        %818 = vrot.lane.b32.xlu0 %v816, 96
        %v819 = vpop.permute.xlu0 %818
        %v821 = vmax.f32 %v816, %v819
        %v822 = vld [vmem:[%s7] sm:$0xff]
        %v823 = vld [vmem:[%s7 + $0x8] sm:$0xff]
        %v824 = vld [vmem:[%s8] sm:$0x1]
        %vm825 = vcmask 130048
        %v827 = vsel %vm825, %v821, 0
        %829 = vmatprep.subr.mxu0 0.0
        %830 = vmatpush1.msra.mxu0 0.0
        %831 = vmatprep.subr.mxu0 0.0
        %832 = vmatpush1.msra.mxu0 0.0
        %833 = vmatprep.subr.mxu0 0.0
        %834 = vmatpush1.msra.mxu0 0.0
        %835 = vmatprep.subr.mxu0 0.0
        %836 = vmatpush1.msra.mxu0 0.0
        %837 = vmatprep.subr.mxu0 0.0
        %838 = vmatpush1.msra.mxu0 0.0
        %839 = vmatprep.subr.mxu0 0.0
        %840 = vmatpush1.msra.mxu0 0.0
        %841 = vmatprep.subr.mxu0 0.0
        %842 = vmatpush1.msra.mxu0 0.0
        %843 = vmatprep.subr.mxu0 0.0
        %844 = vmatpush1.msra.mxu0 0.0
        %845 = vmatprep.subr.mxu0 0.0
        %846 = vmatpush1.msra.mxu0 0.0
        %847 = vmatprep.subr.mxu0 0.0
        %848 = vmatpush1.msra.mxu0 0.0
        %849 = vmatprep.subr.mxu0 0.0
        %850 = vmatpush1.msra.mxu0 0.0
        %851 = vmatprep.subr.mxu0 0.0
        %852 = vmatpush1.msra.mxu0 0.0
        %853 = vmatprep.subr.mxu0 0.0
        %854 = vmatpush1.msra.mxu0 0.0
        %855 = vmatprep.subr.mxu0 0.0
        %856 = vmatpush1.msra.mxu0 0.0
        %857 = vmatprep.subr.mxu0 0.0
        %858 = vmatpush1.msra.mxu0 %v823
        %859 = vmatprep.subr.mxu0 0.0
        %860 = vmatpush1.msra.mxu0 %v822
        %861 = vmatprep.subr.mxu0 0.0
        %862 = vmatpush2.msra.mxu0 0.0
        %863 = vmatprep.subr.mxu0 0.0
        %864 = vmatpush2.msra.mxu0 0.0
        %865 = vmatprep.subr.mxu0 0.0
        %866 = vmatpush2.msra.mxu0 0.0
        %867 = vmatprep.subr.mxu0 0.0
        %868 = vmatpush2.msra.mxu0 0.0
        %869 = vmatprep.subr.mxu0 0.0
        %870 = vmatpush2.msra.mxu0 0.0
        %871 = vmatprep.subr.mxu0 0.0
        %872 = vmatpush2.msra.mxu0 0.0
        %873 = vmatprep.subr.mxu0 0.0
        %874 = vmatpush2.msra.mxu0 0.0
        %875 = vmatprep.subr.mxu0 0.0
        %876 = vmatpush2.msra.mxu0 0.0
        %877 = vmatprep.subr.mxu0 0.0
        %878 = vmatpush2.msra.mxu0 0.0
        %879 = vmatprep.subr.mxu0 0.0
        %880 = vmatpush2.msra.mxu0 0.0
        %881 = vmatprep.subr.mxu0 0.0
        %882 = vmatpush2.msra.mxu0 0.0
        %883 = vmatprep.subr.mxu0 0.0
        %884 = vmatpush2.msra.mxu0 0.0
        %885 = vmatprep.subr.mxu0 0.0
        %886 = vmatpush2.msra.mxu0 0.0
        %887 = vmatprep.subr.mxu0 0.0
        %888 = vmatpush2.msra.mxu0 0.0
        %889 = vmatprep.subr.mxu0 0.0
        %890 = vmatpush2.msra.mxu0 0.0
        %891 = vmatprep.subr.mxu0 0.0
        %892 = vmatpush2.msra.mxu0 0.0
        %893 = vmatprep.mubr.f32.mxu0 0.0
        %894 = vmatmul.mubr.f32.gmra.mxu0 %v827
        %v895 = vpop.f32.mrf.mxu0
        %v896 = vadd.f32 %v824, %v895
        %v897 = vpop.f32.mrf.mxu0
        %898 = vdwg.mxu0
        %v899 = vadd.f32 %v812, %v896
        %vm900 = vcmask 122880
        %901 = vst.msk [vmem:[%s320] sm:$0x1] %vm900, %v899
        %s902 = sand.u32 %s225, 1
        %s903 = scalar_lea.sflag [#allocation4], %s902
        %s904 = sand.u32 %s225, 1
        %s905 = scalar_lea.vmem [#allocation3], %s904
        // Predicated region
        $region57: #{distribution_encoder_forward.7} parent=55 // pred_check
          %p906 = pneg %p235
        $region58: #{distribution_encoder_forward.7} parent=55 // pred_check_branch
          %908 = sbr.rel (%p906) target = $region60
        $region59: #{distribution_encoder_forward.7} parent=55 // pred_region
          %s910 = ssub.s32 16, 16
          %911 = vsyncadd %s903, %s910
          %s912 = smul.addr %s23, 16
          %s913 = scalar_lea.hbm %s9, %s912
          %s915 = sshll.u32 %s905, 4
          %s916 = int_to_ptr.vmem [resolvable:$true] %s915
          %918 = dma.vmem_to_hbm [thread:$0]  %s916, 16, %s913, %s903
        $region60: #{distribution_encoder_forward.7} parent=55 // pred_fallthru
          _
      $region56: #{distribution_encoder_forward.7} parent=5 // pred_fallthru
        _
      %p919 = scmp.le.s32.totalorder 2, %s18
      // Predicated region
      $region61: #{distribution_encoder_forward.7} parent=5 // pred_check
        %p920 = pneg %p919
      $region62: #{distribution_encoder_forward.7} parent=5 // pred_check_branch
        %922 = sbr.rel (%p920) target = $region64
      $region63: #{distribution_encoder_forward.7} parent=5 // pred_region
        %s923 = ssub.s32 %s18, 2
        // Predicated region
        $region65: #{distribution_encoder_forward.7} parent=63 // pred_check
          %p924 = pneg %p241
        $region66: #{distribution_encoder_forward.7} parent=63 // pred_check_branch
          %926 = sbr.rel (%p924) target = $region68
        $region67: #{distribution_encoder_forward.7} parent=63 // pred_region
          %s927 = sand.u32 %s226, 1
          %s928 = scalar_lea.sflag [#allocation4], %s927
          %s929 = sand.u32 %s226, 1
          %s930 = scalar_lea.vmem [#allocation3], %s929
          %931 = dma.done %s928, 16
        $region68: #{distribution_encoder_forward.7} parent=63 // pred_fallthru
          _
      $region64: #{distribution_encoder_forward.7} parent=5 // pred_fallthru
        _
    $region6: #{distribution_encoder_forward.7} parent=1 // loop_footer
      %s22 = sadd.s32 1, %s18
    $region7: #{distribution_encoder_forward.7} parent=1 // loop_footer_branch
      %17 = sbr.rel target = $region3
    $region8: #{distribution_encoder_forward.7} parent=1 // loop_exit
      _
    %932 = vsyncpa [#allocation4], 1
    %s933 = scalar_lea.sflag [#allocation4], 1
    %934 = vsyncpa %s933, 1

</llo_original>
